<compile_context>
chip_gen: v7x
topology: tpu7x:2x2x1
jax: 0.10.0
libtpu: 0.0.40
codegen_flags: <defaults>
</compile_context>

<pallas_src>
import numpy as np

import jax
import jax.numpy as jnp
from jax.experimental import pallas as pl
from jax.experimental.pallas import tpu as pltpu

LATENT_DIM = 10


# ----------------------------------------------------------------------------
# Static slab layout (row offsets shared by prepare_params() and the kernel)
# ----------------------------------------------------------------------------
class _RowAlloc:
    """Tiny bump allocator for rows inside a constant slab."""

    def __init__(self):
        self.rows = 0

    def take(self, n):
        off = self.rows
        self.rows += n
        return off


# -- wide slab (1024 lanes): enc1 col matrices (dw lane-concat) + enc1 bias
_WA = _RowAlloc()
W_C1 = [_WA.take(32) for _ in range(3)]        # 28 rows used per tap
W_B1 = _WA.take(8)                             # bias row at +0
W_ROWS, W_LANES = _WA.rows, 1024               # (104, 1024)

# -- decoder col slab (768 lanes): lane-concatenated ConvTranspose col matrices
_DA = _RowAlloc()
D_CT = [_DA.take(128) for _ in range(3)]       # dect1/2/3: widths 384/640/768
D_ROWS, D_LANES = _DA.rows, 768                # (384, 768)

# -- narrow slab (128 lanes): everything else
_NA = _RowAlloc()
N_R1 = _NA.take(48)                            # enc1 row gather (lanes 0..27)
N_R2 = _NA.take(32)                            # enc2 row gather (lanes 0..6)
N_C2 = [[_NA.take(512) for _dw in range(2)] for _i in range(2)]  # enc2 col blocks
N_B2 = _NA.take(8)
N_M1 = [_NA.take(128) for _ in range(2)]       # flatten+fc1, per spatial row h
N_BFC1 = _NA.take(8)
N_M2 = _NA.take(128)                           # enc fc2 (latent padded to 128)
N_BFC2 = _NA.take(8)
N_M3 = _NA.take(128)                           # dec fc1
N_BD1 = _NA.take(8)
N_M4 = [_NA.take(128) for _ in range(2)]       # dec fc2, per spatial row h
N_BD2 = _NA.take(8)                            # rows +0/+1 hold the two h biases
N_S1 = _NA.take(24)                            # dect1 scatters: 3 taps x 8 rows
N_BT1 = _NA.take(8)
N_S2 = _NA.take(80)                            # dect2 scatters: 5 taps x 16 rows
N_BT2 = _NA.take(8)
N_S3 = _NA.take(192)                           # dect3 scatters: 6 taps x 32 rows
N_BT3 = _NA.take(8)
N_ROWS, N_LANES = _NA.rows, 128                # (3256, 128)


# ----------------------------------------------------------------------------
# Host-side (one-time, batch-independent) packing of PyTorch-layout weights
# ----------------------------------------------------------------------------
def prepare_params(params):
    """Pack PyTorch-layout weights into 3 matmul-ready bf16 constant slabs."""
    p = {k: np.asarray(v, np.float32) for k, v in params.items()}

    wide = np.zeros((W_ROWS, W_LANES), np.float32)
    dcol = np.zeros((D_ROWS, D_LANES), np.float32)
    nar = np.zeros((N_ROWS, N_LANES), np.float32)

    # ---- encoder stage 1: Conv2d(1, 64, 3, s=2, p=1) + ReLU + MaxPool2d(2) ----
    w1, b1 = p["enc_conv1_w"], p["enc_conv1_b"]          # (64,1,3,3), (64,)
    for i in range(3):                                   # kernel row (tap)
        for dh in range(2):                              # pooling height phase
            for o in range(7):                           # pooled output row
                hin = 4 * o + 2 * dh + i - 1
                if 0 <= hin < 28:
                    nar[N_R1 + 16 * i + 8 * dh + o, hin] = 1.0
        for dw in range(2):                              # pooling width phase
            for pw in range(7):                          # pooled output col
                for j in range(3):                       # kernel col
                    src = 4 * pw + 2 * dw + j - 1
                    if 0 <= src < 28:
                        c0 = 512 * dw + 64 * pw
                        wide[W_C1[i] + src, c0:c0 + 64] += w1[:, 0, i, j]
    for dw in range(2):
        for pw in range(7):
            wide[W_B1, 512 * dw + 64 * pw:512 * dw + 64 * pw + 64] = b1

    # ---- encoder stage 2: Conv2d(64, 48, 2, s=2, p=1) + ReLU + MaxPool2d(2) ----
    w2, b2 = p["enc_conv2_w"], p["enc_conv2_b"]          # (48,64,2,2), (48,)
    for i in range(2):
        for dh in range(2):
            for o in range(2):
                hin = 4 * o + 2 * dh + i - 1
                if 0 <= hin < 7:
                    nar[N_R2 + 16 * i + 8 * dh + o, hin] = 1.0
        for dw in range(2):
            for pw in range(2):
                for j in range(2):
                    src = 4 * pw + 2 * dw + j - 1
                    if 0 <= src < 7:
                        r0 = N_C2[i][dw] + 64 * src
                        nar[r0:r0 + 64, 48 * pw:48 * pw + 48] += w2[:, :, i, j].T
    for pw in range(2):
        nar[N_B2, 48 * pw:48 * pw + 48] = b2

    # ---- Flatten(1) + Linear(192, 128): split features by spatial row h ----
    wf1, bf1 = p["enc_fc1_w"], p["enc_fc1_b"]            # (128, 192), f = 4c+2h+w
    for h in range(2):
        for w in range(2):
            for c in range(48):
                nar[N_M1[h] + 48 * w + c, :] = wf1[:, 4 * c + 2 * h + w]
    nar[N_BFC1, :] = bf1

    # ---- Linear(128, LATENT_DIM): latent zero-padded to 128 lanes ----
    wf2, bf2 = p["enc_fc2_w"], p["enc_fc2_b"]
    nar[N_M2:N_M2 + 128, :LATENT_DIM] = wf2.T
    nar[N_BFC2, :LATENT_DIM] = bf2

    # ---- decoder Linear(LATENT_DIM, 128) ----
    wd1, bd1 = p["dec_fc1_w"], p["dec_fc1_b"]
    nar[N_M3:N_M3 + LATENT_DIM, :] = wd1.T
    nar[N_BD1, :] = bd1

    # ---- decoder Linear(128, 192) + reshape(48, 2, 2), per spatial row h ----
    wd2, bd2 = p["dec_fc2_w"], p["dec_fc2_b"]            # (192,128), f = 4c+2h+w
    for h in range(2):
        for w in range(2):
            for c in range(48):
                f = 4 * c + 2 * h + w
                nar[N_M4[h]:N_M4[h] + 128, 48 * w + c] = wd2[f, :]
                nar[N_BD2 + h, 48 * w + c] = bd2[f]

    # ---- decoder ConvTranspose2d layers ----
    def pack_convt(w, b, ct_off, cin_lane, cout_lane, n_in, n_out, stride, pad,
                   s_off, s_block, bias_off):
        cin, cout, kh, kw = w.shape
        for i in range(kh):
            # lane-concatenated col matrix: tap block i at lanes [128*i, 128*i+128)
            for iw in range(n_in):
                for j in range(kw):
                    ow = stride * iw + j - pad
                    if 0 <= ow < n_out:
                        r0 = ct_off + cin_lane * iw
                        c0 = 128 * i + cout_lane * ow
                        dcol[r0:r0 + cin, c0:c0 + cout] += w[:, :, i, j]
            # height scatter for tap i
            for ih in range(n_in):
                oh = stride * ih + i - pad
                if 0 <= oh < n_out:
                    nar[s_off + s_block * i + oh, ih] = 1.0
        for ow in range(n_out):
            nar[bias_off, cout_lane * ow:cout_lane * ow + cout] = b

    pack_convt(p["dec_convt1_w"], p["dec_convt1_b"], D_CT[0], 48, 16, 2, 5, 2, 0,
               N_S1, 8, N_BT1)
    pack_convt(p["dec_convt2_w"], p["dec_convt2_b"], D_CT[1], 16, 8, 5, 15, 3, 1,
               N_S2, 16, N_BT2)
    pack_convt(p["dec_convt3_w"], p["dec_convt3_b"], D_CT[2], 8, 1, 15, 32, 2, 1,
               N_S3, 32, N_BT3)

    return (jnp.asarray(wide, jnp.bfloat16),
            jnp.asarray(dcol, jnp.bfloat16),
            jnp.asarray(nar, jnp.bfloat16))


# ----------------------------------------------------------------------------
# The fused Pallas kernel (one image per grid step)
# ----------------------------------------------------------------------------
def _ae_kernel(x_ref, wide_ref, dcol_ref, nar_ref, o_ref):
    f32, bf16 = jnp.float32, jnp.bfloat16

    def mm(a, b):                                        # bf16 MXU dot, f32 acc
        return jnp.dot(a, b, preferred_element_type=f32)

    def nrow(off):                                       # (1, 128) f32 bias row
        return nar_ref[off:off + 1, :].astype(f32)

    x = x_ref[...]                                       # (28, 28) bf16

    # ---- encoder stage 1: Conv(1->64,3,s2,p1) + ReLU + MaxPool2, fused ----
    a1 = mm(nar_ref[N_R1:N_R1 + 48, :28], x).astype(bf16)          # (48, 28)
    u1 = wide_ref[W_B1:W_B1 + 1, :].astype(f32)                    # (1, 1024)
    for i in range(3):
        u1 = u1 + mm(a1[16 * i:16 * i + 16, :],
                     wide_ref[W_C1[i]:W_C1[i] + 28, :])            # (16, 1024)
    u1 = jnp.maximum(u1, 0.0)
    x2 = jnp.maximum(jnp.maximum(u1[0:7, 0:512], u1[0:7, 512:1024]),
                     jnp.maximum(u1[8:15, 0:512], u1[8:15, 512:1024]))
    x2 = x2.astype(bf16)                                           # (7, 512)

    # ---- encoder stage 2: Conv(64->48,2,s2,p1) + ReLU + MaxPool2, fused ----
    a2 = mm(nar_ref[N_R2:N_R2 + 32, :7], x2).astype(bf16)          # (32, 512)
    b2 = nrow(N_B2)
    u2 = []
    for dw in range(2):
        acc = b2
        for i in range(2):
            acc = acc + mm(a2[16 * i:16 * i + 16, :],
                           nar_ref[N_C2[i][dw]:N_C2[i][dw] + 512, :])
        u2.append(jnp.maximum(acc, 0.0))                           # (16, 128)
    p2 = jnp.maximum(jnp.maximum(u2[0][0:2], u2[0][8:10]),
                     jnp.maximum(u2[1][0:2], u2[1][8:10]))         # (2, 128)

    # ---- flatten + fc1 + ReLU ----
    h1 = nrow(N_BFC1)
    for h in range(2):
        h1 = h1 + mm(p2[h:h + 1, :].astype(bf16),
                     nar_ref[N_M1[h]:N_M1[h] + 128, :])
    h1 = jnp.maximum(h1, 0.0).astype(bf16)                         # (1, 128)

    # ---- fc2 -> latent (padded to 128 lanes) ----
    z = (mm(h1, nar_ref[N_M2:N_M2 + 128, :]) + nrow(N_BFC2)).astype(bf16)

    # ---- decoder fc1 + ReLU ----
    d1 = jnp.maximum(mm(z, nar_ref[N_M3:N_M3 + 128, :]) + nrow(N_BD1), 0.0)
    d1 = d1.astype(bf16)                                           # (1, 128)

    # ---- decoder fc2 + unflatten to (2 rows, 2*48 lanes) ----
    xd = jnp.concatenate(
        [mm(d1, nar_ref[N_M4[h]:N_M4[h] + 128, :]) + nrow(N_BD2 + h)
         for h in range(2)], axis=0).astype(bf16)                  # (2, 128)

    # ---- ConvTranspose stack: one wide col dot + kh height-scatter dots ----
    def conv_t(xin, ct_off, ct_width, kh, s_off, s_block, h_in, h_out, bias_off):
        v = mm(xin, dcol_ref[ct_off:ct_off + 128, :ct_width]).astype(bf16)
        out = nrow(bias_off)
        for i in range(kh):
            s = nar_ref[s_off + s_block * i:s_off + s_block * i + h_out, :h_in]
            out = out + mm(s, v[:, 128 * i:128 * i + 128])
        return out                                                 # (h_out, 128)

    t1 = jnp.maximum(conv_t(xd, D_CT[0], 384, 3, N_S1, 8, 2, 5, N_BT1),
                     0.0).astype(bf16)                             # (5, 128)
    t2 = jnp.maximum(conv_t(t1, D_CT[1], 640, 5, N_S2, 16, 5, 15, N_BT2),
                     0.0).astype(bf16)                             # (15, 128)
    t3 = conv_t(t2, D_CT[2], 768, 6, N_S3, 32, 15, 32, N_BT3)      # (32, 128)

    o_ref[...] = jnp.tanh(t3[:, :32])                              # (32, 32) f32


def autoencoder_forward(prep, x):
    """Fused forward pass.  `prep` comes from prepare_params(params) (batch-free)."""
    wide, dcol, nar = prep
    assert x.ndim == 4 and x.shape[1] == 1 and x.shape[2] == 28 and x.shape[3] == 28, x.shape
    B = x.shape[0]
    x2d = x.reshape(B, 28, 28).astype(jnp.bfloat16)

    out = pl.pallas_call(
        _ae_kernel,
        out_shape=jax.ShapeDtypeStruct((B, 32, 32), jnp.float32),
        grid=(B,),
        in_specs=[
            pl.BlockSpec((None, 28, 28), lambda b: (b, 0, 0)),
            pl.BlockSpec((W_ROWS, W_LANES), lambda b: (0, 0)),   # constant: resident
            pl.BlockSpec((D_ROWS, D_LANES), lambda b: (0, 0)),   # constant: resident
            pl.BlockSpec((N_ROWS, N_LANES), lambda b: (0, 0)),   # constant: resident
        ],
        out_specs=pl.BlockSpec((None, 32, 32), lambda b: (b, 0, 0)),
        compiler_params=pltpu.CompilerParams(dimension_semantics=("parallel",)),
    )(x2d, wide, dcol, nar)
    return out.reshape(B, 1, 32, 32)


# ----------------------------------------------------------------------------
# Parameters (deterministic synthetic init, PyTorch layouts)
# ----------------------------------------------------------------------------
def init_params(key):
    def p(k, shape, scale=0.1):
        return scale * jax.random.normal(k, shape, dtype=jnp.float32)
    ks = jax.random.split(key, 18)
    return {
        # encoder
        "enc_conv1_w": p(ks[0], (64, 1, 3, 3)),
        "enc_conv1_b": p(ks[1], (64,)),
        "enc_conv2_w": p(ks[2], (48, 64, 2, 2)),
        "enc_conv2_b": p(ks[3], (48,)),
        "enc_fc1_w": p(ks[4], (128, 192)),
        "enc_fc1_b": p(ks[5], (128,)),
        "enc_fc2_w": p(ks[6], (LATENT_DIM, 128)),
        "enc_fc2_b": p(ks[7], (LATENT_DIM,)),
        # decoder
        "dec_fc1_w": p(ks[8], (128, LATENT_DIM)),
        "dec_fc1_b": p(ks[9], (128,)),
        "dec_fc2_w": p(ks[10], (192, 128)),
        "dec_fc2_b": p(ks[11], (192,)),
        "dec_convt1_w": p(ks[12], (48, 16, 3, 3)),
        "dec_convt1_b": p(ks[13], (16,)),
        "dec_convt2_w": p(ks[14], (16, 8, 5, 5)),
        "dec_convt2_b": p(ks[15], (8,)),
        "dec_convt3_w": p(ks[16], (8, 1, 6, 6)),
        "dec_convt3_b": p(ks[17], (1,)),
    }


# ----------------------------------------------------------------------------
# Plain-NumPy reference of the PyTorch forward (host-side correctness check)
# ----------------------------------------------------------------------------
def _ref_conv2d(x, w, b, stride, pad):
    bsz, cin, h, wd = x.shape
    cout, _, kh, kw = w.shape
    xp = np.pad(x, ((0, 0), (0, 0), (pad, pad), (pad, pad)))
    ho = (h + 2 * pad - kh) // stride + 1
    wo = (wd + 2 * pad - kw) // stride + 1
    out = np.zeros((bsz, cout, ho, wo), np.float32)
    for i in range(kh):
        for j in range(kw):
            patch = xp[:, :, i:i + stride * ho:stride, j:j + stride * wo:stride]
            out += np.einsum("bchw,oc->bohw", patch, w[:, :, i, j])
    return out + b[None, :, None, None]


def _ref_conv_transpose2d(x, w, b, stride, pad):
    bsz, cin, h, wd = x.shape
    _, cout, kh, kw = w.shape
    ho = (h - 1) * stride - 2 * pad + kh
    wo = (wd - 1) * stride - 2 * pad + kw
    full = np.zeros((bsz, cout, ho + 2 * pad, wo + 2 * pad), np.float32)
    for i in range(kh):
        for j in range(kw):
            contrib = np.einsum("bchw,co->bohw", x, w[:, :, i, j])
            full[:, :, i:i + stride * h:stride, j:j + stride * wd:stride] += contrib
    return full[:, :, pad:pad + ho, pad:pad + wo] + b[None, :, None, None]


def _ref_maxpool2(x):
    return np.maximum(
        np.maximum(x[:, :, 0::2, 0::2], x[:, :, 0::2, 1::2]),
        np.maximum(x[:, :, 1::2, 0::2], x[:, :, 1::2, 1::2]))


def _reference_forward(params, x):
    p = {k: np.asarray(v, np.float32) for k, v in params.items()}
    h = np.maximum(_ref_conv2d(x, p["enc_conv1_w"], p["enc_conv1_b"], 2, 1), 0.0)
    h = _ref_maxpool2(h)
    h = np.maximum(_ref_conv2d(h, p["enc_conv2_w"], p["enc_conv2_b"], 2, 1), 0.0)
    h = _ref_maxpool2(h)
    bsz = h.shape[0]
    h = h.reshape(bsz, 192)
    h = np.maximum(h @ p["enc_fc1_w"].T + p["enc_fc1_b"], 0.0)
    z = h @ p["enc_fc2_w"].T + p["enc_fc2_b"]
    d = np.maximum(z @ p["dec_fc1_w"].T + p["dec_fc1_b"], 0.0)
    d = d @ p["dec_fc2_w"].T + p["dec_fc2_b"]
    d = d.reshape(bsz, 48, 2, 2)
    d = np.maximum(_ref_conv_transpose2d(d, p["dec_convt1_w"], p["dec_convt1_b"], 2, 0), 0.0)
    d = np.maximum(_ref_conv_transpose2d(d, p["dec_convt2_w"], p["dec_convt2_b"], 3, 1), 0.0)
    d = np.tanh(_ref_conv_transpose2d(d, p["dec_convt3_w"], p["dec_convt3_b"], 2, 1))
    return d.astype(np.float32)


if __name__ == "__main__":
    key = jax.random.PRNGKey(0)
    pkey, xkey = jax.random.split(key)
    params = init_params(pkey)

    B = 2
    # 28x28 input is forced by Flatten(1) -> Linear(192, ...) (48 * 2 * 2 = 192).
    x = jax.random.normal(xkey, (B, 1, 28, 28), dtype=jnp.float32)

    # One-time, batch-independent host-side weight packing (3 bf16 slabs).
    prep = prepare_params(params)

    fwd = jax.jit(autoencoder_forward)
    out = jax.block_until_ready(fwd(prep, x))

    assert out.shape == (B, 1, 32, 32), out.shape
    assert bool(jnp.all(jnp.isfinite(out)))
    assert bool(jnp.all(jnp.abs(out) <= 1.0))          # tanh output range

    # Numerical check against a plain NumPy f32 reference of the PyTorch forward.
    # The kernel deliberately uses bf16 MXU inputs with f32 accumulation; the
    # 5e-2 tolerance covers that quantization comfortably at this weight scale.
    ref = _reference_forward(params, np.asarray(x, np.float32))
    np.testing.assert_allclose(np.asarray(out), ref, rtol=5e-2, atol=5e-2)

    print("KERNEL_OK")
</pallas_src>

<mosaic_0001>
module attributes {stable_mosaic.version = 11 : i64} {
  func.func @_ae_kernel(%arg0: i32, %arg1: memref<1x28x28xbf16, #tpu.memory_space<vmem>>, %arg2: memref<104x1024xbf16, #tpu.memory_space<vmem>>, %arg3: memref<384x768xbf16, #tpu.memory_space<vmem>>, %arg4: memref<3256x128xbf16, #tpu.memory_space<vmem>>, %arg5: memref<1x32x32xf32, #tpu.memory_space<vmem>>) attributes {dimension_semantics = [#tpu.dimension_semantics<parallel>], iteration_bounds = array<i64: 2>, scalar_prefetch = 0 : i64, scratch_operands = 0 : i64, tpu.core_type = #tpu.core_type<tc>, window_params = [{transform_indices = @transform_0, window_bounds = array<i64: 1, 28, 28>}, {pipeline_mode = #tpu.pipeline_mode<synchronous>, transform_indices = @transform_1, window_bounds = array<i64: 104, 1024>}, {pipeline_mode = #tpu.pipeline_mode<synchronous>, transform_indices = @transform_2, window_bounds = array<i64: 384, 768>}, {pipeline_mode = #tpu.pipeline_mode<synchronous>, transform_indices = @transform_3, window_bounds = array<i64: 3256, 128>}, {transform_indices = @transform_4, window_bounds = array<i64: 1, 32, 32>}]} {
    %c0 = arith.constant 0 : index
    %c0_0 = arith.constant 0 : index
    %c0_1 = arith.constant 0 : index
    %0 = vector.load %arg1[%c0, %c0_0, %c0_1] : memref<1x28x28xbf16, #tpu.memory_space<vmem>>, vector<1x28x28xbf16>
    %1 = vector.shape_cast %0 : vector<1x28x28xbf16> to vector<28x28xbf16>
    %c0_2 = arith.constant 0 : index
    %c0_3 = arith.constant 0 : index
    %2 = vector.load %arg4[%c0_2, %c0_3] : memref<3256x128xbf16, #tpu.memory_space<vmem>>, vector<48x28xbf16>
    %cst = arith.constant dense<0.000000e+00> : vector<48x28xf32>
    %3 = tpu.matmul %2, %1, %cst {dimension_numbers = #tpu.dot_dimension_numbers<[1], [0], [0], [1], [0, 0, 1, 1], [], []>} : vector<48x28xbf16>, vector<28x28xbf16>, vector<48x28xf32> -> vector<48x28xf32>
    %4 = arith.truncf %3 : vector<48x28xf32> to vector<48x28xbf16>
    %c96 = arith.constant 96 : index
    %c0_4 = arith.constant 0 : index
    %5 = vector.load %arg2[%c96, %c0_4] : memref<104x1024xbf16, #tpu.memory_space<vmem>>, vector<1x1024xbf16>
    %6 = arith.extf %5 : vector<1x1024xbf16> to vector<1x1024xf32>
    %7 = vector.extract_strided_slice %4 {offsets = [0, 0], sizes = [16, 28], strides = [1, 1]} : vector<48x28xbf16> to vector<16x28xbf16>
    %c0_5 = arith.constant 0 : index
    %c0_6 = arith.constant 0 : index
    %8 = vector.load %arg2[%c0_5, %c0_6] : memref<104x1024xbf16, #tpu.memory_space<vmem>>, vector<28x1024xbf16>
    %cst_7 = arith.constant dense<0.000000e+00> : vector<16x1024xf32>
    %9 = tpu.matmul %7, %8, %cst_7 {dimension_numbers = #tpu.dot_dimension_numbers<[1], [0], [0], [1], [0, 0, 1, 1], [], []>} : vector<16x28xbf16>, vector<28x1024xbf16>, vector<16x1024xf32> -> vector<16x1024xf32>
    %10 = vector.broadcast %6 : vector<1x1024xf32> to vector<16x1024xf32>
    %11 = arith.addf %10, %9 : vector<16x1024xf32>
    %12 = vector.extract_strided_slice %4 {offsets = [16, 0], sizes = [16, 28], strides = [1, 1]} : vector<48x28xbf16> to vector<16x28xbf16>
    %c32 = arith.constant 32 : index
    %c0_8 = arith.constant 0 : index
    %13 = vector.load %arg2[%c32, %c0_8] : memref<104x1024xbf16, #tpu.memory_space<vmem>>, vector<28x1024xbf16>
    %cst_9 = arith.constant dense<0.000000e+00> : vector<16x1024xf32>
    %14 = tpu.matmul %12, %13, %cst_9 {dimension_numbers = #tpu.dot_dimension_numbers<[1], [0], [0], [1], [0, 0, 1, 1], [], []>} : vector<16x28xbf16>, vector<28x1024xbf16>, vector<16x1024xf32> -> vector<16x1024xf32>
    %15 = arith.addf %11, %14 : vector<16x1024xf32>
    %16 = vector.extract_strided_slice %4 {offsets = [32, 0], sizes = [16, 28], strides = [1, 1]} : vector<48x28xbf16> to vector<16x28xbf16>
    %c64 = arith.constant 64 : index
    %c0_10 = arith.constant 0 : index
    %17 = vector.load %arg2[%c64, %c0_10] : memref<104x1024xbf16, #tpu.memory_space<vmem>>, vector<28x1024xbf16>
    %cst_11 = arith.constant dense<0.000000e+00> : vector<16x1024xf32>
    %18 = tpu.matmul %16, %17, %cst_11 {dimension_numbers = #tpu.dot_dimension_numbers<[1], [0], [0], [1], [0, 0, 1, 1], [], []>} : vector<16x28xbf16>, vector<28x1024xbf16>, vector<16x1024xf32> -> vector<16x1024xf32>
    %19 = arith.addf %15, %18 : vector<16x1024xf32>
    %cst_12 = arith.constant 0.000000e+00 : f32
    %20 = vector.broadcast %cst_12 : f32 to vector<16x1024xf32>
    %21 = arith.maximumf %19, %20 : vector<16x1024xf32>
    %22 = vector.extract_strided_slice %21 {offsets = [0, 0], sizes = [7, 512], strides = [1, 1]} : vector<16x1024xf32> to vector<7x512xf32>
    %23 = vector.extract_strided_slice %21 {offsets = [0, 512], sizes = [7, 512], strides = [1, 1]} : vector<16x1024xf32> to vector<7x512xf32>
    %24 = arith.maximumf %22, %23 : vector<7x512xf32>
    %25 = vector.extract_strided_slice %21 {offsets = [8, 0], sizes = [7, 512], strides = [1, 1]} : vector<16x1024xf32> to vector<7x512xf32>
    %26 = vector.extract_strided_slice %21 {offsets = [8, 512], sizes = [7, 512], strides = [1, 1]} : vector<16x1024xf32> to vector<7x512xf32>
    %27 = arith.maximumf %25, %26 : vector<7x512xf32>
    %28 = arith.maximumf %24, %27 : vector<7x512xf32>
    %29 = arith.truncf %28 : vector<7x512xf32> to vector<7x512xbf16>
    %c48 = arith.constant 48 : index
    %c0_13 = arith.constant 0 : index
    %30 = vector.load %arg4[%c48, %c0_13] : memref<3256x128xbf16, #tpu.memory_space<vmem>>, vector<32x7xbf16>
    %cst_14 = arith.constant dense<0.000000e+00> : vector<32x512xf32>
    %31 = tpu.matmul %30, %29, %cst_14 {dimension_numbers = #tpu.dot_dimension_numbers<[1], [0], [0], [1], [0, 0, 1, 1], [], []>} : vector<32x7xbf16>, vector<7x512xbf16>, vector<32x512xf32> -> vector<32x512xf32>
    %32 = arith.truncf %31 : vector<32x512xf32> to vector<32x512xbf16>
    %c2128 = arith.constant 2128 : index
    %c0_15 = arith.constant 0 : index
    %33 = vector.load %arg4[%c2128, %c0_15] : memref<3256x128xbf16, #tpu.memory_space<vmem>>, vector<1x128xbf16>
    %34 = arith.extf %33 : vector<1x128xbf16> to vector<1x128xf32>
    %35 = vector.extract_strided_slice %32 {offsets = [0, 0], sizes = [16, 512], strides = [1, 1]} : vector<32x512xbf16> to vector<16x512xbf16>
    %c80 = arith.constant 80 : index
    %c0_16 = arith.constant 0 : index
    %36 = vector.load %arg4[%c80, %c0_16] : memref<3256x128xbf16, #tpu.memory_space<vmem>>, vector<512x128xbf16>
    %cst_17 = arith.constant dense<0.000000e+00> : vector<16x128xf32>
    %37 = tpu.matmul %35, %36, %cst_17 {dimension_numbers = #tpu.dot_dimension_numbers<[1], [0], [0], [1], [0, 0, 1, 1], [], []>} : vector<16x512xbf16>, vector<512x128xbf16>, vector<16x128xf32> -> vector<16x128xf32>
    %38 = vector.broadcast %34 : vector<1x128xf32> to vector<16x128xf32>
    %39 = arith.addf %38, %37 : vector<16x128xf32>
    %40 = vector.extract_strided_slice %32 {offsets = [16, 0], sizes = [16, 512], strides = [1, 1]} : vector<32x512xbf16> to vector<16x512xbf16>
    %c1104 = arith.constant 1104 : index
    %c0_18 = arith.constant 0 : index
    %41 = vector.load %arg4[%c1104, %c0_18] : memref<3256x128xbf16, #tpu.memory_space<vmem>>, vector<512x128xbf16>
    %cst_19 = arith.constant dense<0.000000e+00> : vector<16x128xf32>
    %42 = tpu.matmul %40, %41, %cst_19 {dimension_numbers = #tpu.dot_dimension_numbers<[1], [0], [0], [1], [0, 0, 1, 1], [], []>} : vector<16x512xbf16>, vector<512x128xbf16>, vector<16x128xf32> -> vector<16x128xf32>
    %43 = arith.addf %39, %42 : vector<16x128xf32>
    %cst_20 = arith.constant 0.000000e+00 : f32
    %44 = vector.broadcast %cst_20 : f32 to vector<16x128xf32>
    %45 = arith.maximumf %43, %44 : vector<16x128xf32>
    %46 = vector.extract_strided_slice %32 {offsets = [0, 0], sizes = [16, 512], strides = [1, 1]} : vector<32x512xbf16> to vector<16x512xbf16>
    %c592 = arith.constant 592 : index
    %c0_21 = arith.constant 0 : index
    %47 = vector.load %arg4[%c592, %c0_21] : memref<3256x128xbf16, #tpu.memory_space<vmem>>, vector<512x128xbf16>
    %cst_22 = arith.constant dense<0.000000e+00> : vector<16x128xf32>
    %48 = tpu.matmul %46, %47, %cst_22 {dimension_numbers = #tpu.dot_dimension_numbers<[1], [0], [0], [1], [0, 0, 1, 1], [], []>} : vector<16x512xbf16>, vector<512x128xbf16>, vector<16x128xf32> -> vector<16x128xf32>
    %49 = vector.broadcast %34 : vector<1x128xf32> to vector<16x128xf32>
    %50 = arith.addf %49, %48 : vector<16x128xf32>
    %51 = vector.extract_strided_slice %32 {offsets = [16, 0], sizes = [16, 512], strides = [1, 1]} : vector<32x512xbf16> to vector<16x512xbf16>
    %c1616 = arith.constant 1616 : index
    %c0_23 = arith.constant 0 : index
    %52 = vector.load %arg4[%c1616, %c0_23] : memref<3256x128xbf16, #tpu.memory_space<vmem>>, vector<512x128xbf16>
    %cst_24 = arith.constant dense<0.000000e+00> : vector<16x128xf32>
    %53 = tpu.matmul %51, %52, %cst_24 {dimension_numbers = #tpu.dot_dimension_numbers<[1], [0], [0], [1], [0, 0, 1, 1], [], []>} : vector<16x512xbf16>, vector<512x128xbf16>, vector<16x128xf32> -> vector<16x128xf32>
    %54 = arith.addf %50, %53 : vector<16x128xf32>
    %cst_25 = arith.constant 0.000000e+00 : f32
    %55 = vector.broadcast %cst_25 : f32 to vector<16x128xf32>
    %56 = arith.maximumf %54, %55 : vector<16x128xf32>
    %57 = vector.extract_strided_slice %45 {offsets = [0, 0], sizes = [2, 128], strides = [1, 1]} : vector<16x128xf32> to vector<2x128xf32>
    %58 = vector.extract_strided_slice %45 {offsets = [8, 0], sizes = [2, 128], strides = [1, 1]} : vector<16x128xf32> to vector<2x128xf32>
    %59 = arith.maximumf %57, %58 : vector<2x128xf32>
    %60 = vector.extract_strided_slice %56 {offsets = [0, 0], sizes = [2, 128], strides = [1, 1]} : vector<16x128xf32> to vector<2x128xf32>
    %61 = vector.extract_strided_slice %56 {offsets = [8, 0], sizes = [2, 128], strides = [1, 1]} : vector<16x128xf32> to vector<2x128xf32>
    %62 = arith.maximumf %60, %61 : vector<2x128xf32>
    %63 = arith.maximumf %59, %62 : vector<2x128xf32>
    %c2392 = arith.constant 2392 : index
    %c0_26 = arith.constant 0 : index
    %64 = vector.load %arg4[%c2392, %c0_26] : memref<3256x128xbf16, #tpu.memory_space<vmem>>, vector<1x128xbf16>
    %65 = arith.extf %64 : vector<1x128xbf16> to vector<1x128xf32>
    %66 = vector.extract_strided_slice %63 {offsets = [0, 0], sizes = [1, 128], strides = [1, 1]} : vector<2x128xf32> to vector<1x128xf32>
    %67 = arith.truncf %66 : vector<1x128xf32> to vector<1x128xbf16>
    %c2136 = arith.constant 2136 : index
    %c0_27 = arith.constant 0 : index
    %68 = vector.load %arg4[%c2136, %c0_27] : memref<3256x128xbf16, #tpu.memory_space<vmem>>, vector<128x128xbf16>
    %cst_28 = arith.constant dense<0.000000e+00> : vector<1x128xf32>
    %69 = tpu.matmul %67, %68, %cst_28 {dimension_numbers = #tpu.dot_dimension_numbers<[1], [0], [0], [1], [0, 0, 1, 1], [], []>} : vector<1x128xbf16>, vector<128x128xbf16>, vector<1x128xf32> -> vector<1x128xf32>
    %70 = arith.addf %65, %69 : vector<1x128xf32>
    %71 = vector.extract_strided_slice %63 {offsets = [1, 0], sizes = [1, 128], strides = [1, 1]} : vector<2x128xf32> to vector<1x128xf32>
    %72 = arith.truncf %71 : vector<1x128xf32> to vector<1x128xbf16>
    %c2264 = arith.constant 2264 : index
    %c0_29 = arith.constant 0 : index
    %73 = vector.load %arg4[%c2264, %c0_29] : memref<3256x128xbf16, #tpu.memory_space<vmem>>, vector<128x128xbf16>
    %cst_30 = arith.constant dense<0.000000e+00> : vector<1x128xf32>
    %74 = tpu.matmul %72, %73, %cst_30 {dimension_numbers = #tpu.dot_dimension_numbers<[1], [0], [0], [1], [0, 0, 1, 1], [], []>} : vector<1x128xbf16>, vector<128x128xbf16>, vector<1x128xf32> -> vector<1x128xf32>
    %75 = arith.addf %70, %74 : vector<1x128xf32>
    %cst_31 = arith.constant 0.000000e+00 : f32
    %76 = vector.broadcast %cst_31 : f32 to vector<1x128xf32>
    %77 = arith.maximumf %75, %76 : vector<1x128xf32>
    %78 = arith.truncf %77 : vector<1x128xf32> to vector<1x128xbf16>
    %c2400 = arith.constant 2400 : index
    %c0_32 = arith.constant 0 : index
    %79 = vector.load %arg4[%c2400, %c0_32] : memref<3256x128xbf16, #tpu.memory_space<vmem>>, vector<128x128xbf16>
    %cst_33 = arith.constant dense<0.000000e+00> : vector<1x128xf32>
    %80 = tpu.matmul %78, %79, %cst_33 {dimension_numbers = #tpu.dot_dimension_numbers<[1], [0], [0], [1], [0, 0, 1, 1], [], []>} : vector<1x128xbf16>, vector<128x128xbf16>, vector<1x128xf32> -> vector<1x128xf32>
    %c2528 = arith.constant 2528 : index
    %c0_34 = arith.constant 0 : index
    %81 = vector.load %arg4[%c2528, %c0_34] : memref<3256x128xbf16, #tpu.memory_space<vmem>>, vector<1x128xbf16>
    %82 = arith.extf %81 : vector<1x128xbf16> to vector<1x128xf32>
    %83 = arith.addf %80, %82 : vector<1x128xf32>
    %84 = arith.truncf %83 : vector<1x128xf32> to vector<1x128xbf16>
    %c2536 = arith.constant 2536 : index
    %c0_35 = arith.constant 0 : index
    %85 = vector.load %arg4[%c2536, %c0_35] : memref<3256x128xbf16, #tpu.memory_space<vmem>>, vector<128x128xbf16>
    %cst_36 = arith.constant dense<0.000000e+00> : vector<1x128xf32>
    %86 = tpu.matmul %84, %85, %cst_36 {dimension_numbers = #tpu.dot_dimension_numbers<[1], [0], [0], [1], [0, 0, 1, 1], [], []>} : vector<1x128xbf16>, vector<128x128xbf16>, vector<1x128xf32> -> vector<1x128xf32>
    %c2664 = arith.constant 2664 : index
    %c0_37 = arith.constant 0 : index
    %87 = vector.load %arg4[%c2664, %c0_37] : memref<3256x128xbf16, #tpu.memory_space<vmem>>, vector<1x128xbf16>
    %88 = arith.extf %87 : vector<1x128xbf16> to vector<1x128xf32>
    %89 = arith.addf %86, %88 : vector<1x128xf32>
    %cst_38 = arith.constant 0.000000e+00 : f32
    %90 = vector.broadcast %cst_38 : f32 to vector<1x128xf32>
    %91 = arith.maximumf %89, %90 : vector<1x128xf32>
    %92 = arith.truncf %91 : vector<1x128xf32> to vector<1x128xbf16>
    %c2672 = arith.constant 2672 : index
    %c0_39 = arith.constant 0 : index
    %93 = vector.load %arg4[%c2672, %c0_39] : memref<3256x128xbf16, #tpu.memory_space<vmem>>, vector<128x128xbf16>
    %cst_40 = arith.constant dense<0.000000e+00> : vector<1x128xf32>
    %94 = tpu.matmul %92, %93, %cst_40 {dimension_numbers = #tpu.dot_dimension_numbers<[1], [0], [0], [1], [0, 0, 1, 1], [], []>} : vector<1x128xbf16>, vector<128x128xbf16>, vector<1x128xf32> -> vector<1x128xf32>
    %c2928 = arith.constant 2928 : index
    %c0_41 = arith.constant 0 : index
    %95 = vector.load %arg4[%c2928, %c0_41] : memref<3256x128xbf16, #tpu.memory_space<vmem>>, vector<1x128xbf16>
    %96 = arith.extf %95 : vector<1x128xbf16> to vector<1x128xf32>
    %97 = arith.addf %94, %96 : vector<1x128xf32>
    %c2800 = arith.constant 2800 : index
    %c0_42 = arith.constant 0 : index
    %98 = vector.load %arg4[%c2800, %c0_42] : memref<3256x128xbf16, #tpu.memory_space<vmem>>, vector<128x128xbf16>
    %cst_43 = arith.constant dense<0.000000e+00> : vector<1x128xf32>
    %99 = tpu.matmul %92, %98, %cst_43 {dimension_numbers = #tpu.dot_dimension_numbers<[1], [0], [0], [1], [0, 0, 1, 1], [], []>} : vector<1x128xbf16>, vector<128x128xbf16>, vector<1x128xf32> -> vector<1x128xf32>
    %c2929 = arith.constant 2929 : index
    %c0_44 = arith.constant 0 : index
    %100 = vector.load %arg4[%c2929, %c0_44] : memref<3256x128xbf16, #tpu.memory_space<vmem>>, vector<1x128xbf16>
    %101 = arith.extf %100 : vector<1x128xbf16> to vector<1x128xf32>
    %102 = arith.addf %99, %101 : vector<1x128xf32>
    %103 = tpu.concatenate %97, %102 in 0 : vector<1x128xf32>, vector<1x128xf32> -> vector<2x128xf32>
    %104 = arith.truncf %103 : vector<2x128xf32> to vector<2x128xbf16>
    %c0_45 = arith.constant 0 : index
    %c0_46 = arith.constant 0 : index
    %105 = vector.load %arg3[%c0_45, %c0_46] : memref<384x768xbf16, #tpu.memory_space<vmem>>, vector<128x384xbf16>
    %cst_47 = arith.constant dense<0.000000e+00> : vector<2x384xf32>
    %106 = tpu.matmul %104, %105, %cst_47 {dimension_numbers = #tpu.dot_dimension_numbers<[1], [0], [0], [1], [0, 0, 1, 1], [], []>} : vector<2x128xbf16>, vector<128x384xbf16>, vector<2x384xf32> -> vector<2x384xf32>
    %107 = arith.truncf %106 : vector<2x384xf32> to vector<2x384xbf16>
    %c2960 = arith.constant 2960 : index
    %c0_48 = arith.constant 0 : index
    %108 = vector.load %arg4[%c2960, %c0_48] : memref<3256x128xbf16, #tpu.memory_space<vmem>>, vector<1x128xbf16>
    %109 = arith.extf %108 : vector<1x128xbf16> to vector<1x128xf32>
    %c2936 = arith.constant 2936 : index
    %c0_49 = arith.constant 0 : index
    %110 = vector.load %arg4[%c2936, %c0_49] : memref<3256x128xbf16, #tpu.memory_space<vmem>>, vector<5x2xbf16>
    %111 = vector.extract_strided_slice %107 {offsets = [0, 0], sizes = [2, 128], strides = [1, 1]} : vector<2x384xbf16> to vector<2x128xbf16>
    %cst_50 = arith.constant dense<0.000000e+00> : vector<5x128xf32>
    %112 = tpu.matmul %110, %111, %cst_50 {dimension_numbers = #tpu.dot_dimension_numbers<[1], [0], [0], [1], [0, 0, 1, 1], [], []>} : vector<5x2xbf16>, vector<2x128xbf16>, vector<5x128xf32> -> vector<5x128xf32>
    %113 = vector.broadcast %109 : vector<1x128xf32> to vector<5x128xf32>
    %114 = arith.addf %113, %112 : vector<5x128xf32>
    %c2944 = arith.constant 2944 : index
    %c0_51 = arith.constant 0 : index
    %115 = vector.load %arg4[%c2944, %c0_51] : memref<3256x128xbf16, #tpu.memory_space<vmem>>, vector<5x2xbf16>
    %116 = vector.extract_strided_slice %107 {offsets = [0, 128], sizes = [2, 128], strides = [1, 1]} : vector<2x384xbf16> to vector<2x128xbf16>
    %cst_52 = arith.constant dense<0.000000e+00> : vector<5x128xf32>
    %117 = tpu.matmul %115, %116, %cst_52 {dimension_numbers = #tpu.dot_dimension_numbers<[1], [0], [0], [1], [0, 0, 1, 1], [], []>} : vector<5x2xbf16>, vector<2x128xbf16>, vector<5x128xf32> -> vector<5x128xf32>
    %118 = arith.addf %114, %117 : vector<5x128xf32>
    %c2952 = arith.constant 2952 : index
    %c0_53 = arith.constant 0 : index
    %119 = vector.load %arg4[%c2952, %c0_53] : memref<3256x128xbf16, #tpu.memory_space<vmem>>, vector<5x2xbf16>
    %120 = vector.extract_strided_slice %107 {offsets = [0, 256], sizes = [2, 128], strides = [1, 1]} : vector<2x384xbf16> to vector<2x128xbf16>
    %cst_54 = arith.constant dense<0.000000e+00> : vector<5x128xf32>
    %121 = tpu.matmul %119, %120, %cst_54 {dimension_numbers = #tpu.dot_dimension_numbers<[1], [0], [0], [1], [0, 0, 1, 1], [], []>} : vector<5x2xbf16>, vector<2x128xbf16>, vector<5x128xf32> -> vector<5x128xf32>
    %122 = arith.addf %118, %121 : vector<5x128xf32>
    %cst_55 = arith.constant 0.000000e+00 : f32
    %123 = vector.broadcast %cst_55 : f32 to vector<5x128xf32>
    %124 = arith.maximumf %122, %123 : vector<5x128xf32>
    %125 = arith.truncf %124 : vector<5x128xf32> to vector<5x128xbf16>
    %c128 = arith.constant 128 : index
    %c0_56 = arith.constant 0 : index
    %126 = vector.load %arg3[%c128, %c0_56] : memref<384x768xbf16, #tpu.memory_space<vmem>>, vector<128x640xbf16>
    %cst_57 = arith.constant dense<0.000000e+00> : vector<5x640xf32>
    %127 = tpu.matmul %125, %126, %cst_57 {dimension_numbers = #tpu.dot_dimension_numbers<[1], [0], [0], [1], [0, 0, 1, 1], [], []>} : vector<5x128xbf16>, vector<128x640xbf16>, vector<5x640xf32> -> vector<5x640xf32>
    %128 = arith.truncf %127 : vector<5x640xf32> to vector<5x640xbf16>
    %c3048 = arith.constant 3048 : index
    %c0_58 = arith.constant 0 : index
    %129 = vector.load %arg4[%c3048, %c0_58] : memref<3256x128xbf16, #tpu.memory_space<vmem>>, vector<1x128xbf16>
    %130 = arith.extf %129 : vector<1x128xbf16> to vector<1x128xf32>
    %c2968 = arith.constant 2968 : index
    %c0_59 = arith.constant 0 : index
    %131 = vector.load %arg4[%c2968, %c0_59] : memref<3256x128xbf16, #tpu.memory_space<vmem>>, vector<15x5xbf16>
    %132 = vector.extract_strided_slice %128 {offsets = [0, 0], sizes = [5, 128], strides = [1, 1]} : vector<5x640xbf16> to vector<5x128xbf16>
    %cst_60 = arith.constant dense<0.000000e+00> : vector<15x128xf32>
    %133 = tpu.matmul %131, %132, %cst_60 {dimension_numbers = #tpu.dot_dimension_numbers<[1], [0], [0], [1], [0, 0, 1, 1], [], []>} : vector<15x5xbf16>, vector<5x128xbf16>, vector<15x128xf32> -> vector<15x128xf32>
    %134 = vector.broadcast %130 : vector<1x128xf32> to vector<15x128xf32>
    %135 = arith.addf %134, %133 : vector<15x128xf32>
    %c2984 = arith.constant 2984 : index
    %c0_61 = arith.constant 0 : index
    %136 = vector.load %arg4[%c2984, %c0_61] : memref<3256x128xbf16, #tpu.memory_space<vmem>>, vector<15x5xbf16>
    %137 = vector.extract_strided_slice %128 {offsets = [0, 128], sizes = [5, 128], strides = [1, 1]} : vector<5x640xbf16> to vector<5x128xbf16>
    %cst_62 = arith.constant dense<0.000000e+00> : vector<15x128xf32>
    %138 = tpu.matmul %136, %137, %cst_62 {dimension_numbers = #tpu.dot_dimension_numbers<[1], [0], [0], [1], [0, 0, 1, 1], [], []>} : vector<15x5xbf16>, vector<5x128xbf16>, vector<15x128xf32> -> vector<15x128xf32>
    %139 = arith.addf %135, %138 : vector<15x128xf32>
    %c3000 = arith.constant 3000 : index
    %c0_63 = arith.constant 0 : index
    %140 = vector.load %arg4[%c3000, %c0_63] : memref<3256x128xbf16, #tpu.memory_space<vmem>>, vector<15x5xbf16>
    %141 = vector.extract_strided_slice %128 {offsets = [0, 256], sizes = [5, 128], strides = [1, 1]} : vector<5x640xbf16> to vector<5x128xbf16>
    %cst_64 = arith.constant dense<0.000000e+00> : vector<15x128xf32>
    %142 = tpu.matmul %140, %141, %cst_64 {dimension_numbers = #tpu.dot_dimension_numbers<[1], [0], [0], [1], [0, 0, 1, 1], [], []>} : vector<15x5xbf16>, vector<5x128xbf16>, vector<15x128xf32> -> vector<15x128xf32>
    %143 = arith.addf %139, %142 : vector<15x128xf32>
    %c3016 = arith.constant 3016 : index
    %c0_65 = arith.constant 0 : index
    %144 = vector.load %arg4[%c3016, %c0_65] : memref<3256x128xbf16, #tpu.memory_space<vmem>>, vector<15x5xbf16>
    %145 = vector.extract_strided_slice %128 {offsets = [0, 384], sizes = [5, 128], strides = [1, 1]} : vector<5x640xbf16> to vector<5x128xbf16>
    %cst_66 = arith.constant dense<0.000000e+00> : vector<15x128xf32>
    %146 = tpu.matmul %144, %145, %cst_66 {dimension_numbers = #tpu.dot_dimension_numbers<[1], [0], [0], [1], [0, 0, 1, 1], [], []>} : vector<15x5xbf16>, vector<5x128xbf16>, vector<15x128xf32> -> vector<15x128xf32>
    %147 = arith.addf %143, %146 : vector<15x128xf32>
    %c3032 = arith.constant 3032 : index
    %c0_67 = arith.constant 0 : index
    %148 = vector.load %arg4[%c3032, %c0_67] : memref<3256x128xbf16, #tpu.memory_space<vmem>>, vector<15x5xbf16>
    %149 = vector.extract_strided_slice %128 {offsets = [0, 512], sizes = [5, 128], strides = [1, 1]} : vector<5x640xbf16> to vector<5x128xbf16>
    %cst_68 = arith.constant dense<0.000000e+00> : vector<15x128xf32>
    %150 = tpu.matmul %148, %149, %cst_68 {dimension_numbers = #tpu.dot_dimension_numbers<[1], [0], [0], [1], [0, 0, 1, 1], [], []>} : vector<15x5xbf16>, vector<5x128xbf16>, vector<15x128xf32> -> vector<15x128xf32>
    %151 = arith.addf %147, %150 : vector<15x128xf32>
    %cst_69 = arith.constant 0.000000e+00 : f32
    %152 = vector.broadcast %cst_69 : f32 to vector<15x128xf32>
    %153 = arith.maximumf %151, %152 : vector<15x128xf32>
    %154 = arith.truncf %153 : vector<15x128xf32> to vector<15x128xbf16>
    %c256 = arith.constant 256 : index
    %c0_70 = arith.constant 0 : index
    %155 = vector.load %arg3[%c256, %c0_70] : memref<384x768xbf16, #tpu.memory_space<vmem>>, vector<128x768xbf16>
    %cst_71 = arith.constant dense<0.000000e+00> : vector<15x768xf32>
    %156 = tpu.matmul %154, %155, %cst_71 {dimension_numbers = #tpu.dot_dimension_numbers<[1], [0], [0], [1], [0, 0, 1, 1], [], []>} : vector<15x128xbf16>, vector<128x768xbf16>, vector<15x768xf32> -> vector<15x768xf32>
    %157 = arith.truncf %156 : vector<15x768xf32> to vector<15x768xbf16>
    %c3248 = arith.constant 3248 : index
    %c0_72 = arith.constant 0 : index
    %158 = vector.load %arg4[%c3248, %c0_72] : memref<3256x128xbf16, #tpu.memory_space<vmem>>, vector<1x128xbf16>
    %159 = arith.extf %158 : vector<1x128xbf16> to vector<1x128xf32>
    %c3056 = arith.constant 3056 : index
    %c0_73 = arith.constant 0 : index
    %160 = vector.load %arg4[%c3056, %c0_73] : memref<3256x128xbf16, #tpu.memory_space<vmem>>, vector<32x15xbf16>
    %161 = vector.extract_strided_slice %157 {offsets = [0, 0], sizes = [15, 128], strides = [1, 1]} : vector<15x768xbf16> to vector<15x128xbf16>
    %cst_74 = arith.constant dense<0.000000e+00> : vector<32x128xf32>
    %162 = tpu.matmul %160, %161, %cst_74 {dimension_numbers = #tpu.dot_dimension_numbers<[1], [0], [0], [1], [0, 0, 1, 1], [], []>} : vector<32x15xbf16>, vector<15x128xbf16>, vector<32x128xf32> -> vector<32x128xf32>
    %163 = vector.broadcast %159 : vector<1x128xf32> to vector<32x128xf32>
    %164 = arith.addf %163, %162 : vector<32x128xf32>
    %c3088 = arith.constant 3088 : index
    %c0_75 = arith.constant 0 : index
    %165 = vector.load %arg4[%c3088, %c0_75] : memref<3256x128xbf16, #tpu.memory_space<vmem>>, vector<32x15xbf16>
    %166 = vector.extract_strided_slice %157 {offsets = [0, 128], sizes = [15, 128], strides = [1, 1]} : vector<15x768xbf16> to vector<15x128xbf16>
    %cst_76 = arith.constant dense<0.000000e+00> : vector<32x128xf32>
    %167 = tpu.matmul %165, %166, %cst_76 {dimension_numbers = #tpu.dot_dimension_numbers<[1], [0], [0], [1], [0, 0, 1, 1], [], []>} : vector<32x15xbf16>, vector<15x128xbf16>, vector<32x128xf32> -> vector<32x128xf32>
    %168 = arith.addf %164, %167 : vector<32x128xf32>
    %c3120 = arith.constant 3120 : index
    %c0_77 = arith.constant 0 : index
    %169 = vector.load %arg4[%c3120, %c0_77] : memref<3256x128xbf16, #tpu.memory_space<vmem>>, vector<32x15xbf16>
    %170 = vector.extract_strided_slice %157 {offsets = [0, 256], sizes = [15, 128], strides = [1, 1]} : vector<15x768xbf16> to vector<15x128xbf16>
    %cst_78 = arith.constant dense<0.000000e+00> : vector<32x128xf32>
    %171 = tpu.matmul %169, %170, %cst_78 {dimension_numbers = #tpu.dot_dimension_numbers<[1], [0], [0], [1], [0, 0, 1, 1], [], []>} : vector<32x15xbf16>, vector<15x128xbf16>, vector<32x128xf32> -> vector<32x128xf32>
    %172 = arith.addf %168, %171 : vector<32x128xf32>
    %c3152 = arith.constant 3152 : index
    %c0_79 = arith.constant 0 : index
    %173 = vector.load %arg4[%c3152, %c0_79] : memref<3256x128xbf16, #tpu.memory_space<vmem>>, vector<32x15xbf16>
    %174 = vector.extract_strided_slice %157 {offsets = [0, 384], sizes = [15, 128], strides = [1, 1]} : vector<15x768xbf16> to vector<15x128xbf16>
    %cst_80 = arith.constant dense<0.000000e+00> : vector<32x128xf32>
    %175 = tpu.matmul %173, %174, %cst_80 {dimension_numbers = #tpu.dot_dimension_numbers<[1], [0], [0], [1], [0, 0, 1, 1], [], []>} : vector<32x15xbf16>, vector<15x128xbf16>, vector<32x128xf32> -> vector<32x128xf32>
    %176 = arith.addf %172, %175 : vector<32x128xf32>
    %c3184 = arith.constant 3184 : index
    %c0_81 = arith.constant 0 : index
    %177 = vector.load %arg4[%c3184, %c0_81] : memref<3256x128xbf16, #tpu.memory_space<vmem>>, vector<32x15xbf16>
    %178 = vector.extract_strided_slice %157 {offsets = [0, 512], sizes = [15, 128], strides = [1, 1]} : vector<15x768xbf16> to vector<15x128xbf16>
    %cst_82 = arith.constant dense<0.000000e+00> : vector<32x128xf32>
    %179 = tpu.matmul %177, %178, %cst_82 {dimension_numbers = #tpu.dot_dimension_numbers<[1], [0], [0], [1], [0, 0, 1, 1], [], []>} : vector<32x15xbf16>, vector<15x128xbf16>, vector<32x128xf32> -> vector<32x128xf32>
    %180 = arith.addf %176, %179 : vector<32x128xf32>
    %c3216 = arith.constant 3216 : index
    %c0_83 = arith.constant 0 : index
    %181 = vector.load %arg4[%c3216, %c0_83] : memref<3256x128xbf16, #tpu.memory_space<vmem>>, vector<32x15xbf16>
    %182 = vector.extract_strided_slice %157 {offsets = [0, 640], sizes = [15, 128], strides = [1, 1]} : vector<15x768xbf16> to vector<15x128xbf16>
    %cst_84 = arith.constant dense<0.000000e+00> : vector<32x128xf32>
    %183 = tpu.matmul %181, %182, %cst_84 {dimension_numbers = #tpu.dot_dimension_numbers<[1], [0], [0], [1], [0, 0, 1, 1], [], []>} : vector<32x15xbf16>, vector<15x128xbf16>, vector<32x128xf32> -> vector<32x128xf32>
    %184 = arith.addf %180, %183 : vector<32x128xf32>
    %185 = vector.extract_strided_slice %184 {offsets = [0, 0], sizes = [32, 32], strides = [1, 1]} : vector<32x128xf32> to vector<32x32xf32>
    %186 = math.tanh %185 : vector<32x32xf32>
    %c0_85 = arith.constant 0 : index
    %c0_86 = arith.constant 0 : index
    %c0_87 = arith.constant 0 : index
    %187 = vector.load %arg5[%c0_85, %c0_86, %c0_87] : memref<1x32x32xf32, #tpu.memory_space<vmem>>, vector<1x32x32xf32>
    %188 = vector.shape_cast %187 : vector<1x32x32xf32> to vector<32x32xf32>
    %189 = vector.shape_cast %186 : vector<32x32xf32> to vector<1x32x32xf32>
    tpu.vector_store %arg5[%c0_85, %c0_86, %c0_87], %189 {strides = array<i32>} : memref<1x32x32xf32, #tpu.memory_space<vmem>>, vector<1x32x32xf32>,
    return
  }
  func.func @transform_0(%arg0: i32) -> (i32, i32, i32) {
    %c0_i32 = arith.constant 0 : i32
    %c0_i32_0 = arith.constant 0 : i32
    %c0_i32_1 = arith.constant 0 : i32
    return %arg0, %c0_i32, %c0_i32_0 : i32, i32, i32
  }
  func.func @transform_1(%arg0: i32) -> (i32, i32) {
    %c0_i32 = arith.constant 0 : i32
    %c0_i32_0 = arith.constant 0 : i32
    %c0_i32_1 = arith.constant 0 : i32
    return %c0_i32, %c0_i32_0 : i32, i32
  }
  func.func @transform_2(%arg0: i32) -> (i32, i32) {
    %c0_i32 = arith.constant 0 : i32
    %c0_i32_0 = arith.constant 0 : i32
    %c0_i32_1 = arith.constant 0 : i32
    return %c0_i32, %c0_i32_0 : i32, i32
  }
  func.func @transform_3(%arg0: i32) -> (i32, i32) {
    %c0_i32 = arith.constant 0 : i32
    %c0_i32_0 = arith.constant 0 : i32
    %c0_i32_1 = arith.constant 0 : i32
    return %c0_i32, %c0_i32_0 : i32, i32
  }
  func.func @transform_4(%arg0: i32) -> (i32, i32, i32) {
    %c0_i32 = arith.constant 0 : i32
    %c0_i32_0 = arith.constant 0 : i32
    %c0_i32_1 = arith.constant 0 : i32
    return %arg0, %c0_i32, %c0_i32_0 : i32, i32, i32
  }
}

</mosaic_0001>

<llo_original>
// kernel: autoencoder_forward.1
$region0: #{autoencoder_forward.1}
  #allocation0 [shape = 'u32[]', space=smem, size = 0x4, offset = 0x4, fixed_abs, tag = 'smem constant byte address 0x4 - core index']
  #allocation1 [shape = 'u32[144,128]{1,0:T(1,128)}', space=vmem, size = 0x12000, scoped, tag = 'internal scratch']
  %s0 = inlined_call_operand.vmem [shape: bf16[2,28,28], index: 0, kind: input, shape index: {}]
  %s1 = inlined_call_operand.hbm [shape: bf16[104,1024], index: 1, kind: input, shape index: {}]
  %s2 = inlined_call_operand.hbm [shape: bf16[384,768], index: 2, kind: input, shape index: {}]
  %s3 = inlined_call_operand.hbm [shape: bf16[3256,128], index: 3, kind: input, shape index: {}]
  %s4 = inlined_call_operand.hbm [shape: f32[2,32,32], index: 4, kind: output, shape index: {}]
  %s5 = sld [smem:[#allocation0]]
  $region61: #{autoencoder_forward.1} parent=0
    _
  %s7 = ssub.s32 1, %s5
  %s8 = scalar_select 0, %s7, %s5
  $region1: #{autoencoder_forward.1} parent=0
    #allocation2 [shape = 'u8[212992]{0}', space=vmem, size = 0x34000, scoped, tag = 'input window, operand 1, single buffered']
    #allocation3 [shape = 's32[2]{0}', space=sflag, size = 0x8, scoped, tag = 'scoped memory for autoencoder_forward.1']
    #allocation4 [shape = 's32[2]{0}', space=sflag, size = 0x8, scoped, tag = 'scoped memory for autoencoder_forward.1']
    #allocation5 [shape = 'u8[589824]{0}', space=vmem, size = 0x90000, scoped, tag = 'input window, operand 2, single buffered']
    #allocation6 [shape = 's32[1]{0}', space=sflag, size = 0x4, scoped, tag = 'scoped memory for autoencoder_forward.1']
    #allocation7 [shape = 'u8[833536]{0}', space=vmem, size = 0xcb800, scoped, tag = 'input window, operand 3, single buffered']
    #allocation8 [shape = 'u8[32768]{0}', space=vmem, size = 0x8000, scoped, tag = 'output window, operand 0']
    %9 = vsyncpa [#allocation3], 0
    %10 = vsyncpa [#allocation6], 0
    %11 = vsyncpa [#allocation4], 0
    %s12 = scalar_lea.sflag [#allocation4], 1
    %13 = vsyncpa %s12, 0
    loop: start=0, step=1, limit=4
    $region2: #{autoencoder_forward.1} parent=1 // loop_pre_header
      _
    $region3: #{autoencoder_forward.1} parent=1 // loop_header
      %s15 = sphi 0, %s19
      %p16 = scmp.ge.s32.totalorder %s15, 4
      %s25 = sphi 0, %s27
      %s28 = sphi 0, %s25
      %s29 = sphi 0, %s28
      %s45 = sphi 0, %s29
      %s49 = sphi 0, %s49
      %s51 = sphi 0, %s49
      %s52 = sphi 0, %s51
      %s66 = sphi 0, %s52
      %s70 = sphi 0, %s70
      %s72 = sphi 0, %s70
      %s73 = sphi 0, %s72
      %s87 = sphi 0, %s73
      %s91 = sphi 0, %s91
      %s93 = sphi 0, %s91
      %s94 = sphi 0, %s93
      %s108 = sphi 0, %s94
      %s114 = sphi 0, %s116
      %s117 = sphi 0, %s114
      %s118 = sphi 0, %s117
      %s134 = sphi 0, %s118
    $region4: #{autoencoder_forward.1} parent=1 // loop_header_branch
      %18 = sbr.rel (%p16) target = $region8
    $region5: #{autoencoder_forward.1} parent=1 // loop_body
      %s20 = ssub.s32 %s15, 1
      %s21 = ssub.s32 %s15, 2
      %s22 = sadd.s32 %s15, 1
      %s23 = ssub.s32 %s15, %s22
      %p24 = scmp.eq.s32.totalorder %s23, 0
      %s26 = sadd.s32 %s25, 1
      %s27 = scalar_select %p24, %s25, %s26
      %p30 = pneg %p24
      %p31 = scmp.eq.s32.totalorder %s15, 1
      %p32 = por %p30, %p31
      %p33 = scmp.ne.s32.totalorder %s25, %s28
      %p34 = scmp.eq.s32.totalorder %s15, 0
      %p35 = por %p33, %p34
      %p36 = scmp.ne.s32.totalorder %s25, %s28
      %p37 = scmp.eq.s32.totalorder %s20, 1
      %p38 = por %p36, %p37
      %p39 = scmp.ne.s32.totalorder %s28, %s29
      %p40 = scmp.eq.s32.totalorder %s20, 0
      %p41 = por %p39, %p40
      %p42 = scmp.ne.s32.totalorder %s28, %s29
      %p43 = scmp.eq.s32.totalorder %s21, 1
      %p44 = por %p42, %p43
      %p46 = scmp.ne.s32.totalorder %s29, %s45
      %p47 = scmp.eq.s32.totalorder %s21, 0
      %p48 = por %p46, %p47
      %s50 = sadd.s32 %s49, 1
      %p53 = scmp.eq.s32.totalorder %s15, 1
      %p54 = scmp.ne.s32.totalorder %s49, %s51
      %p55 = scmp.eq.s32.totalorder %s15, 0
      %p56 = por %p54, %p55
      %p57 = scmp.ne.s32.totalorder %s49, %s51
      %p58 = scmp.eq.s32.totalorder %s20, 1
      %p59 = por %p57, %p58
      %p60 = scmp.ne.s32.totalorder %s51, %s52
      %p61 = scmp.eq.s32.totalorder %s20, 0
      %p62 = por %p60, %p61
      %p63 = scmp.ne.s32.totalorder %s51, %s52
      %p64 = scmp.eq.s32.totalorder %s21, 1
      %p65 = por %p63, %p64
      %p67 = scmp.ne.s32.totalorder %s52, %s66
      %p68 = scmp.eq.s32.totalorder %s21, 0
      %p69 = por %p67, %p68
      %s71 = sadd.s32 %s70, 1
      %p74 = scmp.eq.s32.totalorder %s15, 1
      %p75 = scmp.ne.s32.totalorder %s70, %s72
      %p76 = scmp.eq.s32.totalorder %s15, 0
      %p77 = por %p75, %p76
      %p78 = scmp.ne.s32.totalorder %s70, %s72
      %p79 = scmp.eq.s32.totalorder %s20, 1
      %p80 = por %p78, %p79
      %p81 = scmp.ne.s32.totalorder %s72, %s73
      %p82 = scmp.eq.s32.totalorder %s20, 0
      %p83 = por %p81, %p82
      %p84 = scmp.ne.s32.totalorder %s72, %s73
      %p85 = scmp.eq.s32.totalorder %s21, 1
      %p86 = por %p84, %p85
      %p88 = scmp.ne.s32.totalorder %s73, %s87
      %p89 = scmp.eq.s32.totalorder %s21, 0
      %p90 = por %p88, %p89
      %s92 = sadd.s32 %s91, 1
      %p95 = scmp.eq.s32.totalorder %s15, 1
      %p96 = scmp.ne.s32.totalorder %s91, %s93
      %p97 = scmp.eq.s32.totalorder %s15, 0
      %p98 = por %p96, %p97
      %p99 = scmp.ne.s32.totalorder %s91, %s93
      %p100 = scmp.eq.s32.totalorder %s20, 1
      %p101 = por %p99, %p100
      %p102 = scmp.ne.s32.totalorder %s93, %s94
      %p103 = scmp.eq.s32.totalorder %s20, 0
      %p104 = por %p102, %p103
      %p105 = scmp.ne.s32.totalorder %s93, %s94
      %p106 = scmp.eq.s32.totalorder %s21, 1
      %p107 = por %p105, %p106
      %p109 = scmp.ne.s32.totalorder %s94, %s108
      %p110 = scmp.eq.s32.totalorder %s21, 0
      %p111 = por %p109, %p110
      %s112 = ssub.s32 %s15, %s22
      %p113 = scmp.eq.s32.totalorder %s112, 0
      %s115 = sadd.s32 %s114, 1
      %s116 = scalar_select %p113, %s114, %s115
      %p119 = pneg %p113
      %p120 = scmp.eq.s32.totalorder %s15, 1
      %p121 = por %p119, %p120
      %p122 = scmp.ne.s32.totalorder %s114, %s117
      %p123 = scmp.eq.s32.totalorder %s15, 0
      %p124 = por %p122, %p123
      %p125 = scmp.ne.s32.totalorder %s114, %s117
      %p126 = scmp.eq.s32.totalorder %s20, 1
      %p127 = por %p125, %p126
      %p128 = scmp.ne.s32.totalorder %s117, %s118
      %p129 = scmp.eq.s32.totalorder %s20, 0
      %p130 = por %p128, %p129
      %p131 = scmp.ne.s32.totalorder %s117, %s118
      %p132 = scmp.eq.s32.totalorder %s21, 1
      %p133 = por %p131, %p132
      %p135 = scmp.ne.s32.totalorder %s118, %s134
      %p136 = scmp.eq.s32.totalorder %s21, 0
      %p137 = por %p135, %p136
      %p138 = scmp.le.s32.totalorder 1, %s15
      %p139 = scmp.lt.s32.totalorder %s15, 3
      %p140 = pnand %p138, %p139
      %p141 = pneg %p140
      // Predicated region
      $region9: #{autoencoder_forward.1} parent=5 // pred_check
        _
      $region10: #{autoencoder_forward.1} parent=5 // pred_check_branch
        %143 = sbr.rel (%p140) target = $region12
      $region11: #{autoencoder_forward.1} parent=5 // pred_region
        %s144 = ssub.s32 %s15, 1
        // Predicated region
        $region13: #{autoencoder_forward.1} parent=11 // pred_check
          %p145 = pneg %p62
        $region14: #{autoencoder_forward.1} parent=11 // pred_check_branch
          %147 = sbr.rel (%p145) target = $region16
        $region15: #{autoencoder_forward.1} parent=11 // pred_region
          %s149 = ssub.s32 6656, 6656
          %150 = vsyncadd [#allocation3], %s149
          %s151 = sshll.u32 [#allocation2], 4
          %s152 = int_to_ptr.vmem [resolvable:$true] %s151
          %157 = dma.hbm_to_vmem [thread:$0]  %s1, 6656, %s152, [#allocation3], 512, 512, 32
        $region16: #{autoencoder_forward.1} parent=11 // pred_fallthru
          _
        // Predicated region
        $region17: #{autoencoder_forward.1} parent=11 // pred_check
          %p158 = pneg %p83
        $region18: #{autoencoder_forward.1} parent=11 // pred_check_branch
          %160 = sbr.rel (%p158) target = $region20
        $region19: #{autoencoder_forward.1} parent=11 // pred_region
          %s162 = ssub.s32 18432, 18432
          %163 = vsyncadd [#allocation6], %s162
          %s164 = sshll.u32 [#allocation5], 4
          %s165 = int_to_ptr.vmem [resolvable:$true] %s164
          %170 = dma.hbm_to_vmem [thread:$0]  %s2, 18432, %s165, [#allocation6], 384, 384, 24
        $region20: #{autoencoder_forward.1} parent=11 // pred_fallthru
          _
        // Predicated region
        $region21: #{autoencoder_forward.1} parent=11 // pred_check
          %p171 = pneg %p104
        $region22: #{autoencoder_forward.1} parent=11 // pred_check_branch
          %173 = sbr.rel (%p171) target = $region24
        $region23: #{autoencoder_forward.1} parent=11 // pred_region
          %s175 = ssub.s32 26048, 26048
          %176 = vsyncadd [#allocation6], %s175
          %s177 = sshll.u32 [#allocation7], 4
          %s178 = int_to_ptr.vmem [resolvable:$true] %s177
          %183 = dma.hbm_to_vmem [thread:$0]  %s3, 26048, %s178, [#allocation6], 64, 64, 4
        $region24: #{autoencoder_forward.1} parent=11 // pred_fallthru
          _
      $region12: #{autoencoder_forward.1} parent=5 // pred_fallthru
        _
      %p184 = scmp.lt.s32.totalorder %s15, 2
      // Predicated region
      $region25: #{autoencoder_forward.1} parent=5 // pred_check
        %p185 = pneg %p184
      $region26: #{autoencoder_forward.1} parent=5 // pred_check_branch
        %187 = sbr.rel (%p185) target = $region28
      $region27: #{autoencoder_forward.1} parent=5 // pred_region
        // Predicated region
        $region29: #{autoencoder_forward.1} parent=27 // pred_check
          %p188 = pneg %p35
        $region30: #{autoencoder_forward.1} parent=27 // pred_check_branch
          %190 = sbr.rel (%p188) target = $region32
        $region31: #{autoencoder_forward.1} parent=27 // pred_region
          %p191 = scmp.lt.s32.totalorder %s15, 1
          %s192 = scalar_select %p191, %s15, 1
          %s193 = smul.addr %s192, 4
          %s194 = smul.addr %s193, 4
          %s195 = scalar_lea.vmem %s0, %s194
        $region32: #{autoencoder_forward.1} parent=27 // pred_fallthru
          _
      $region28: #{autoencoder_forward.1} parent=5 // pred_fallthru
        _
      %p196 = scmp.le.s32.totalorder 1, %s15
      %p197 = scmp.lt.s32.totalorder %s15, 3
      %p198 = pnand %p196, %p197
      %p199 = pneg %p198
      // Predicated region
      $region33: #{autoencoder_forward.1} parent=5 // pred_check
        _
      $region34: #{autoencoder_forward.1} parent=5 // pred_check_branch
        %201 = sbr.rel (%p198) target = $region36
      $region35: #{autoencoder_forward.1} parent=5 // pred_region
        %s202 = ssub.s32 %s15, 1
        // Predicated region
        $region37: #{autoencoder_forward.1} parent=35 // pred_check
          %p203 = pneg %p62
        $region38: #{autoencoder_forward.1} parent=35 // pred_check_branch
          %205 = sbr.rel (%p203) target = $region40
        $region39: #{autoencoder_forward.1} parent=35 // pred_region
          %206 = dma.done [#allocation3], 6656
        $region40: #{autoencoder_forward.1} parent=35 // pred_fallthru
          _
        // Predicated region
        $region41: #{autoencoder_forward.1} parent=35 // pred_check
          %p207 = pneg %p83
        $region42: #{autoencoder_forward.1} parent=35 // pred_check_branch
          %209 = sbr.rel (%p207) target = $region44
        $region43: #{autoencoder_forward.1} parent=35 // pred_region
          %210 = dma.done [#allocation6], 18432
        $region44: #{autoencoder_forward.1} parent=35 // pred_fallthru
          _
        // Predicated region
        $region45: #{autoencoder_forward.1} parent=35 // pred_check
          %p211 = pneg %p104
        $region46: #{autoencoder_forward.1} parent=35 // pred_check_branch
          %213 = sbr.rel (%p211) target = $region48
        $region47: #{autoencoder_forward.1} parent=35 // pred_region
          %214 = dma.done [#allocation6], 26048
        $region48: #{autoencoder_forward.1} parent=35 // pred_fallthru
          _
        %p215 = scmp.lt.s32.totalorder %s20, 1
        %s216 = scalar_select %p215, %s20, 1
        %s217 = smul.addr %s216, 4
        %s218 = smul.addr %s217, 4
        %s219 = scalar_lea.vmem %s0, %s218
        %p220 = pneg %p41
        %p221 = pneg %p38
        %p222 = pneg %p62
        %p223 = pneg %p59
        %p224 = pneg %p83
        %p225 = pneg %p80
        %p226 = pneg %p104
        %p227 = pneg %p101
        %p228 = pneg %p130
        %p229 = pneg %p127
        %s230 = sand.u32 %s117, 1
        %s231 = scalar_lea.sflag [#allocation4], %s230
        %s232 = sand.u32 %s117, 1
        %s233 = smul.addr %s232, 32
        %s234 = scalar_lea.vmem [#allocation8], %s233
        %p235 = scmp.lt.s32.totalorder %s20, 1
        %s236 = scalar_select %p235, %s20, 1
        %s237 = smul.addr %s236, 4
        %s238 = smul.addr %s237, 4
        %s239 = scalar_lea.vmem %s0, %s238
        %v241 = vld [vmem:[%s239] sm:$0xf]
        %v242 = vld [vmem:[%s239 + $0x4] sm:$0xf]
        %v243 = vld [vmem:[%s239 + $0x8] sm:$0xf]
        %v244 = vld [vmem:[%s239 + $0xc] sm:$0x3]
        %v245 = vld [vmem:[#allocation7] sm:$0xf]
        %v246 = vld [vmem:[#allocation7 + $0x4] sm:$0xf]
        %v247 = vld [vmem:[#allocation7 + $0x8] sm:$0xf]
        %v248 = vld [vmem:[#allocation7 + $0xc] sm:$0xf]
        %v249 = vld [vmem:[#allocation7 + $0x10] sm:$0xf]
        %v250 = vld [vmem:[#allocation7 + $0x14] sm:$0xf]
        %v257 = vunpack.c.l.b16 %v245
        %v258 = vunpack.c.l.b16 %v246
        %v259 = vunpack.c.l.b16 %v247
        %v260 = vunpack.c.l.b16 %v248
        %v261 = vunpack.c.l.b16 %v249
        %v262 = vunpack.c.l.b16 %v250
        %v263 = vpack.c.b16 %v258, %v257
        %v264 = vpack.c.b16 %v260, %v259
        %v265 = vpack.c.b16 %v262, %v261
        %v270 = vunpack.c.l.b16 %v241
        %v271 = vunpack.c.l.b16 %v242
        %v272 = vunpack.c.l.b16 %v243
        %v273 = vunpack.c.l.b16 %v244
        %v274 = vpack.c.b16 %v271, %v270
        %v275 = vpack.c.b16 %v273, %v272
        %vm277 = vcmask 228352
        %v279 = vsel %vm277, %v263, 0
        %v282 = vsel %vm277, %v264, 0
        %v285 = vsel %vm277, %v265, 0
        %vm287 = vcmask 1045504
        %v289 = vsel %vm287, %v275, 0
        %291 = vmatprep.subr.bf16.mxu0 0
        %292 = vmatpush1.bf16.msra.mxu0 %v274
        %293 = vmatprep.subr.bf16.mxu0 0
        %294 = vmatpush1.bf16.msra.mxu0 %v289
        %295 = vmatprep.subr.bf16.mxu0 0
        %296 = vmatpush1.bf16.msra.mxu0 0
        %297 = vmatprep.subr.bf16.mxu0 0
        %298 = vmatpush1.bf16.msra.mxu0 0
        %299 = vmatprep.subr.bf16.mxu0 0
        %300 = vmatpush1.bf16.msra.mxu0 0
        %301 = vmatprep.subr.bf16.mxu0 0
        %302 = vmatpush1.bf16.msra.mxu0 0
        %303 = vmatprep.subr.bf16.mxu0 0
        %304 = vmatpush1.bf16.msra.mxu0 0
        %305 = vmatprep.subr.bf16.mxu0 0
        %306 = vmatpush1.bf16.msra.mxu0 0
        %307 = vmatprep.subr.bf16.mxu0 0
        %308 = vmatpush1.bf16.msra.mxu0 0
        %309 = vmatprep.subr.bf16.mxu0 0
        %310 = vmatpush1.bf16.msra.mxu0 0
        %311 = vmatprep.subr.bf16.mxu0 0
        %312 = vmatpush1.bf16.msra.mxu0 0
        %313 = vmatprep.subr.bf16.mxu0 0
        %314 = vmatpush1.bf16.msra.mxu0 0
        %315 = vmatprep.subr.bf16.mxu0 0
        %316 = vmatpush1.bf16.msra.mxu0 0
        %317 = vmatprep.subr.bf16.mxu0 0
        %318 = vmatpush1.bf16.msra.mxu0 0
        %319 = vmatprep.subr.bf16.mxu0 0
        %320 = vmatpush1.bf16.msra.mxu0 0
        %321 = vmatprep.subr.bf16.mxu0 0
        %322 = vmatpush1.bf16.msra.mxu0 0
        %323 = vmatprep.mubr.bf16.mxu0 0
        %324 = vmatmul.mubr.bf16.gmra.mrb[0].mxu0 %v279
        %v325 = vpop.f32.mrb[0].mxu0
        %v326 = vadd.f32 0.0, %v325
        %v327 = vpop.f32.mrb[0].mxu0
        %v328 = vpop.f32.mrb[0].mxu0
        %v329 = vadd.f32 0.0, %v328
        %v330 = vpop.f32.mrb[0].mxu0
        %331 = vmatprep.mubr.bf16.mxu0 0
        %332 = vmatmul.mubr.bf16.gmra.mrb[0].mxu0 %v282
        %v333 = vpop.f32.mrb[0].mxu0
        %v334 = vadd.f32 0.0, %v333
        %v335 = vpop.f32.mrb[0].mxu0
        %v336 = vpop.f32.mrb[0].mxu0
        %v337 = vadd.f32 0.0, %v336
        %v338 = vpop.f32.mrb[0].mxu0
        %339 = vmatprep.mubr.bf16.mxu0 0
        %340 = vmatmul.mubr.bf16.gmra.mrb[0].mxu0 %v285
        %v341 = vpop.f32.mrb[0].mxu0
        %v342 = vadd.f32 0.0, %v341
        %v343 = vpop.f32.mrb[0].mxu0
        %v344 = vpop.f32.mrb[0].mxu0
        %v345 = vadd.f32 0.0, %v344
        %v346 = vpop.f32.mrb[0].mxu0
        %347 = vdwg.mxu0
        %v348 = vpack.c.bf16 %v329, %v326
        %v349 = vpack.c.bf16 %v337, %v334
        %v350 = vpack.c.bf16 %v345, %v342
        %v351 = vld [vmem:[#allocation2 + $0x180] sm:$0x11]
        %v352 = vld [vmem:[#allocation2 + $0x188] sm:$0x11]
        %v353 = vld [vmem:[#allocation2 + $0x190] sm:$0x11]
        %v354 = vld [vmem:[#allocation2 + $0x198] sm:$0x11]
        %v355 = vunpack.c.l.bf16 %v351
        %v356 = vunpack.c.h.bf16 %v351
        %v357 = vunpack.c.l.bf16 %v352
        %v358 = vunpack.c.h.bf16 %v352
        %v359 = vunpack.c.l.bf16 %v353
        %v360 = vunpack.c.h.bf16 %v353
        %v361 = vunpack.c.l.bf16 %v354
        %v362 = vunpack.c.h.bf16 %v354
        %v363 = vld [vmem:[#allocation2] sm:$0xff]
        %v364 = vld [vmem:[#allocation2 + $0x8] sm:$0xff]
        %v365 = vld [vmem:[#allocation2 + $0x10] sm:$0xff]
        %v366 = vld [vmem:[#allocation2 + $0x18] sm:$0xff]
        %v367 = vld [vmem:[#allocation2 + $0x20] sm:$0xff]
        %v368 = vld [vmem:[#allocation2 + $0x28] sm:$0xff]
        %v369 = vld [vmem:[#allocation2 + $0x30] sm:$0xff]
        %v370 = vld [vmem:[#allocation2 + $0x38] sm:$0xff]
        %v371 = vld [vmem:[#allocation2 + $0x40] sm:$0xff]
        %v372 = vld [vmem:[#allocation2 + $0x48] sm:$0xff]
        %v373 = vld [vmem:[#allocation2 + $0x50] sm:$0xff]
        %v374 = vld [vmem:[#allocation2 + $0x58] sm:$0xff]
        %v375 = vld [vmem:[#allocation2 + $0x60] sm:$0x33]
        %v376 = vld [vmem:[#allocation2 + $0x68] sm:$0x33]
        %v377 = vld [vmem:[#allocation2 + $0x70] sm:$0x33]
        %v378 = vld [vmem:[#allocation2 + $0x78] sm:$0x33]
        %v395 = vunpack.c.l.b16 %v363
        %v396 = vunpack.c.h.b16 %v363
        %v397 = vunpack.c.l.b16 %v364
        %v398 = vunpack.c.h.b16 %v364
        %v399 = vunpack.c.l.b16 %v365
        %v400 = vunpack.c.h.b16 %v365
        %v401 = vunpack.c.l.b16 %v366
        %v402 = vunpack.c.h.b16 %v366
        %v403 = vunpack.c.l.b16 %v367
        %v404 = vunpack.c.h.b16 %v367
        %v405 = vunpack.c.l.b16 %v368
        %v406 = vunpack.c.h.b16 %v368
        %v407 = vunpack.c.l.b16 %v369
        %v408 = vunpack.c.h.b16 %v369
        %v409 = vunpack.c.l.b16 %v370
        %v410 = vunpack.c.h.b16 %v370
        %v411 = vunpack.c.l.b16 %v371
        %v412 = vunpack.c.h.b16 %v371
        %v413 = vunpack.c.l.b16 %v372
        %v414 = vunpack.c.h.b16 %v372
        %v415 = vunpack.c.l.b16 %v373
        %v416 = vunpack.c.h.b16 %v373
        %v417 = vunpack.c.l.b16 %v374
        %v418 = vunpack.c.h.b16 %v374
        %v419 = vunpack.c.l.b16 %v375
        %v420 = vunpack.c.h.b16 %v375
        %v421 = vunpack.c.l.b16 %v376
        %v422 = vunpack.c.h.b16 %v376
        %v423 = vunpack.c.l.b16 %v377
        %v424 = vunpack.c.h.b16 %v377
        %v425 = vunpack.c.l.b16 %v378
        %v426 = vunpack.c.h.b16 %v378
        %v427 = vpack.c.b16 %v403, %v395
        %v428 = vpack.c.b16 %v404, %v396
        %v429 = vpack.c.b16 %v405, %v397
        %v430 = vpack.c.b16 %v406, %v398
        %v431 = vpack.c.b16 %v407, %v399
        %v432 = vpack.c.b16 %v408, %v400
        %v433 = vpack.c.b16 %v409, %v401
        %v434 = vpack.c.b16 %v410, %v402
        %v435 = vpack.c.b16 %v419, %v411
        %v436 = vpack.c.b16 %v420, %v412
        %v437 = vpack.c.b16 %v421, %v413
        %v438 = vpack.c.b16 %v422, %v414
        %v439 = vpack.c.b16 %v423, %v415
        %v440 = vpack.c.b16 %v424, %v416
        %v441 = vpack.c.b16 %v425, %v417
        %v442 = vpack.c.b16 %v426, %v418
        %v452 = vsel %vm277, %v348, 0
        %v455 = vsel %vm287, %v435, 0
        %v458 = vsel %vm287, %v436, 0
        %v461 = vsel %vm287, %v437, 0
        %v464 = vsel %vm287, %v438, 0
        %v467 = vsel %vm287, %v439, 0
        %v470 = vsel %vm287, %v440, 0
        %v473 = vsel %vm287, %v441, 0
        %v476 = vsel %vm287, %v442, 0
        %478 = vmatprep.subr.bf16.mxu0 %v428
        %479 = vmatpush1.bf16.msra.mxu0 %v427
        %480 = vmatprep.subr.bf16.mxu0 %v458
        %481 = vmatpush1.bf16.msra.mxu0 %v455
        %482 = vmatprep.subr.bf16.mxu0 0
        %483 = vmatpush1.bf16.msra.mxu0 0
        %484 = vmatprep.subr.bf16.mxu0 0
        %485 = vmatpush1.bf16.msra.mxu0 0
        %486 = vmatprep.subr.bf16.mxu0 0
        %487 = vmatpush1.bf16.msra.mxu0 0
        %488 = vmatprep.subr.bf16.mxu0 0
        %489 = vmatpush1.bf16.msra.mxu0 0
        %490 = vmatprep.subr.bf16.mxu0 0
        %491 = vmatpush1.bf16.msra.mxu0 0
        %492 = vmatprep.subr.bf16.mxu0 0
        %493 = vmatpush1.bf16.msra.mxu0 0
        %494 = vmatprep.subr.bf16.mxu0 0
        %495 = vmatpush1.bf16.msra.mxu0 0
        %496 = vmatprep.subr.bf16.mxu0 0
        %497 = vmatpush1.bf16.msra.mxu0 0
        %498 = vmatprep.subr.bf16.mxu0 0
        %499 = vmatpush1.bf16.msra.mxu0 0
        %500 = vmatprep.subr.bf16.mxu0 0
        %501 = vmatpush1.bf16.msra.mxu0 0
        %502 = vmatprep.subr.bf16.mxu0 0
        %503 = vmatpush1.bf16.msra.mxu0 0
        %504 = vmatprep.subr.bf16.mxu0 0
        %505 = vmatpush1.bf16.msra.mxu0 0
        %506 = vmatprep.subr.bf16.mxu0 0
        %507 = vmatpush1.bf16.msra.mxu0 0
        %508 = vmatprep.subr.bf16.mxu0 0
        %509 = vmatpush1.bf16.msra.mxu0 0
        %510 = vmatprep.mubr.bf16.mxu0 0
        %511 = vmatmul.mubr.bf16.gmra.mrb[0].mxu0 %v452
        %v512 = vpop.f32.mrb[0].mxu0
        %v513 = vadd.f32 0.0, %v512
        %v514 = vpop.f32.mrb[0].mxu0
        %v515 = vadd.f32 0.0, %v514
        %v516 = vpop.f32.mrb[0].mxu0
        %v517 = vadd.f32 0.0, %v516
        %v518 = vpop.f32.mrb[0].mxu0
        %v519 = vadd.f32 0.0, %v518
        %520 = vdwg.mxu0
        %521 = vmatprep.subr.bf16.mxu0 %v430
        %522 = vmatpush1.bf16.msra.mxu0 %v429
        %523 = vmatprep.subr.bf16.mxu0 %v464
        %524 = vmatpush1.bf16.msra.mxu0 %v461
        %525 = vmatprep.subr.bf16.mxu0 0
        %526 = vmatpush1.bf16.msra.mxu0 0
        %527 = vmatprep.subr.bf16.mxu0 0
        %528 = vmatpush1.bf16.msra.mxu0 0
        %529 = vmatprep.subr.bf16.mxu0 0
        %530 = vmatpush1.bf16.msra.mxu0 0
        %531 = vmatprep.subr.bf16.mxu0 0
        %532 = vmatpush1.bf16.msra.mxu0 0
        %533 = vmatprep.subr.bf16.mxu0 0
        %534 = vmatpush1.bf16.msra.mxu0 0
        %535 = vmatprep.subr.bf16.mxu0 0
        %536 = vmatpush1.bf16.msra.mxu0 0
        %537 = vmatprep.subr.bf16.mxu0 0
        %538 = vmatpush1.bf16.msra.mxu0 0
        %539 = vmatprep.subr.bf16.mxu0 0
        %540 = vmatpush1.bf16.msra.mxu0 0
        %541 = vmatprep.subr.bf16.mxu0 0
        %542 = vmatpush1.bf16.msra.mxu0 0
        %543 = vmatprep.subr.bf16.mxu0 0
        %544 = vmatpush1.bf16.msra.mxu0 0
        %545 = vmatprep.subr.bf16.mxu0 0
        %546 = vmatpush1.bf16.msra.mxu0 0
        %547 = vmatprep.subr.bf16.mxu0 0
        %548 = vmatpush1.bf16.msra.mxu0 0
        %549 = vmatprep.subr.bf16.mxu0 0
        %550 = vmatpush1.bf16.msra.mxu0 0
        %551 = vmatprep.subr.bf16.mxu0 0
        %552 = vmatpush1.bf16.msra.mxu0 0
        %553 = vmatprep.mubr.bf16.mxu0 0
        %554 = vmatmul.mubr.bf16.gmra.mrb[0].mxu0 %v452
        %v555 = vpop.f32.mrb[0].mxu0
        %v556 = vadd.f32 0.0, %v555
        %v557 = vpop.f32.mrb[0].mxu0
        %v558 = vadd.f32 0.0, %v557
        %v559 = vpop.f32.mrb[0].mxu0
        %v560 = vadd.f32 0.0, %v559
        %v561 = vpop.f32.mrb[0].mxu0
        %v562 = vadd.f32 0.0, %v561
        %563 = vdwg.mxu0
        %564 = vmatprep.subr.bf16.mxu0 %v432
        %565 = vmatpush1.bf16.msra.mxu0 %v431
        %566 = vmatprep.subr.bf16.mxu0 %v470
        %567 = vmatpush1.bf16.msra.mxu0 %v467
        %568 = vmatprep.subr.bf16.mxu0 0
        %569 = vmatpush1.bf16.msra.mxu0 0
        %570 = vmatprep.subr.bf16.mxu0 0
        %571 = vmatpush1.bf16.msra.mxu0 0
        %572 = vmatprep.subr.bf16.mxu0 0
        %573 = vmatpush1.bf16.msra.mxu0 0
        %574 = vmatprep.subr.bf16.mxu0 0
        %575 = vmatpush1.bf16.msra.mxu0 0
        %576 = vmatprep.subr.bf16.mxu0 0
        %577 = vmatpush1.bf16.msra.mxu0 0
        %578 = vmatprep.subr.bf16.mxu0 0
        %579 = vmatpush1.bf16.msra.mxu0 0
        %580 = vmatprep.subr.bf16.mxu0 0
        %581 = vmatpush1.bf16.msra.mxu0 0
        %582 = vmatprep.subr.bf16.mxu0 0
        %583 = vmatpush1.bf16.msra.mxu0 0
        %584 = vmatprep.subr.bf16.mxu0 0
        %585 = vmatpush1.bf16.msra.mxu0 0
        %586 = vmatprep.subr.bf16.mxu0 0
        %587 = vmatpush1.bf16.msra.mxu0 0
        %588 = vmatprep.subr.bf16.mxu0 0
        %589 = vmatpush1.bf16.msra.mxu0 0
        %590 = vmatprep.subr.bf16.mxu0 0
        %591 = vmatpush1.bf16.msra.mxu0 0
        %592 = vmatprep.subr.bf16.mxu0 0
        %593 = vmatpush1.bf16.msra.mxu0 0
        %594 = vmatprep.subr.bf16.mxu0 0
        %595 = vmatpush1.bf16.msra.mxu0 0
        %596 = vmatprep.mubr.bf16.mxu0 0
        %597 = vmatmul.mubr.bf16.gmra.mrb[0].mxu0 %v452
        %v598 = vpop.f32.mrb[0].mxu0
        %v599 = vadd.f32 0.0, %v598
        %v600 = vpop.f32.mrb[0].mxu0
        %v601 = vadd.f32 0.0, %v600
        %v602 = vpop.f32.mrb[0].mxu0
        %v603 = vadd.f32 0.0, %v602
        %v604 = vpop.f32.mrb[0].mxu0
        %v605 = vadd.f32 0.0, %v604
        %606 = vdwg.mxu0
        %607 = vmatprep.subr.bf16.mxu0 %v434
        %608 = vmatpush1.bf16.msra.mxu0 %v433
        %609 = vmatprep.subr.bf16.mxu0 %v476
        %610 = vmatpush1.bf16.msra.mxu0 %v473
        %611 = vmatprep.subr.bf16.mxu0 0
        %612 = vmatpush1.bf16.msra.mxu0 0
        %613 = vmatprep.subr.bf16.mxu0 0
        %614 = vmatpush1.bf16.msra.mxu0 0
        %615 = vmatprep.subr.bf16.mxu0 0
        %616 = vmatpush1.bf16.msra.mxu0 0
        %617 = vmatprep.subr.bf16.mxu0 0
        %618 = vmatpush1.bf16.msra.mxu0 0
        %619 = vmatprep.subr.bf16.mxu0 0
        %620 = vmatpush1.bf16.msra.mxu0 0
        %621 = vmatprep.subr.bf16.mxu0 0
        %622 = vmatpush1.bf16.msra.mxu0 0
        %623 = vmatprep.subr.bf16.mxu0 0
        %624 = vmatpush1.bf16.msra.mxu0 0
        %625 = vmatprep.subr.bf16.mxu0 0
        %626 = vmatpush1.bf16.msra.mxu0 0
        %627 = vmatprep.subr.bf16.mxu0 0
        %628 = vmatpush1.bf16.msra.mxu0 0
        %629 = vmatprep.subr.bf16.mxu0 0
        %630 = vmatpush1.bf16.msra.mxu0 0
        %631 = vmatprep.subr.bf16.mxu0 0
        %632 = vmatpush1.bf16.msra.mxu0 0
        %633 = vmatprep.subr.bf16.mxu0 0
        %634 = vmatpush1.bf16.msra.mxu0 0
        %635 = vmatprep.subr.bf16.mxu0 0
        %636 = vmatpush1.bf16.msra.mxu0 0
        %637 = vmatprep.subr.bf16.mxu0 0
        %638 = vmatpush1.bf16.msra.mxu0 0
        %639 = vmatprep.mubr.bf16.mxu0 0
        %640 = vmatmul.mubr.bf16.gmra.mrb[0].mxu0 %v452
        %v641 = vpop.f32.mrb[0].mxu0
        %v642 = vadd.f32 0.0, %v641
        %v643 = vpop.f32.mrb[0].mxu0
        %v644 = vadd.f32 0.0, %v643
        %v645 = vpop.f32.mrb[0].mxu0
        %v646 = vadd.f32 0.0, %v645
        %v647 = vpop.f32.mrb[0].mxu0
        %v648 = vadd.f32 0.0, %v647
        %649 = vdwg.mxu0
        %v650 = vlaneseq
        %v651 = vshrl.u32 %v650, 7
        %v652 = vsub.s32 0, %v651
        %v653 = vrot.slane %v355, %v652
        %v654 = vlaneseq
        %v655 = vshrl.u32 %v654, 7
        %v656 = vsub.s32 0, %v655
        %v657 = vrot.slane %v356, %v656
        %v658 = vlaneseq
        %v659 = vshrl.u32 %v658, 7
        %v660 = vsub.s32 0, %v659
        %v661 = vrot.slane %v357, %v660
        %v662 = vlaneseq
        %v663 = vshrl.u32 %v662, 7
        %v664 = vsub.s32 0, %v663
        %v665 = vrot.slane %v358, %v664
        %v666 = vlaneseq
        %v667 = vshrl.u32 %v666, 7
        %v668 = vsub.s32 0, %v667
        %v669 = vrot.slane %v359, %v668
        %v670 = vlaneseq
        %v671 = vshrl.u32 %v670, 7
        %v672 = vsub.s32 0, %v671
        %v673 = vrot.slane %v360, %v672
        %v674 = vlaneseq
        %v675 = vshrl.u32 %v674, 7
        %v676 = vsub.s32 0, %v675
        %v677 = vrot.slane %v361, %v676
        %v678 = vlaneseq
        %v679 = vshrl.u32 %v678, 7
        %v680 = vsub.s32 0, %v679
        %v681 = vrot.slane %v362, %v680
        %v682 = vadd.f32 %v653, %v513
        %v683 = vadd.f32 %v657, %v515
        %v684 = vadd.f32 %v661, %v556
        %v685 = vadd.f32 %v665, %v558
        %v686 = vadd.f32 %v669, %v599
        %v687 = vadd.f32 %v673, %v601
        %v688 = vadd.f32 %v677, %v642
        %v689 = vadd.f32 %v681, %v644
        %v690 = vadd.f32 %v653, %v517
        %v691 = vadd.f32 %v657, %v519
        %v692 = vadd.f32 %v661, %v560
        %v693 = vadd.f32 %v665, %v562
        %v694 = vadd.f32 %v669, %v603
        %v695 = vadd.f32 %v673, %v605
        %v696 = vadd.f32 %v677, %v646
        %v697 = vadd.f32 %v681, %v648
        %v698 = vld [vmem:[#allocation2 + $0x80] sm:$0xff]
        %v699 = vld [vmem:[#allocation2 + $0x88] sm:$0xff]
        %v700 = vld [vmem:[#allocation2 + $0x90] sm:$0xff]
        %v701 = vld [vmem:[#allocation2 + $0x98] sm:$0xff]
        %v702 = vld [vmem:[#allocation2 + $0xa0] sm:$0xff]
        %v703 = vld [vmem:[#allocation2 + $0xa8] sm:$0xff]
        %v704 = vld [vmem:[#allocation2 + $0xb0] sm:$0xff]
        %v705 = vld [vmem:[#allocation2 + $0xb8] sm:$0xff]
        %v706 = vld [vmem:[#allocation2 + $0xc0] sm:$0xff]
        %v707 = vld [vmem:[#allocation2 + $0xc8] sm:$0xff]
        %v708 = vld [vmem:[#allocation2 + $0xd0] sm:$0xff]
        %v709 = vld [vmem:[#allocation2 + $0xd8] sm:$0xff]
        %v710 = vld [vmem:[#allocation2 + $0xe0] sm:$0x33]
        %v711 = vld [vmem:[#allocation2 + $0xe8] sm:$0x33]
        %v712 = vld [vmem:[#allocation2 + $0xf0] sm:$0x33]
        %v713 = vld [vmem:[#allocation2 + $0xf8] sm:$0x33]
        %v730 = vunpack.c.l.b16 %v698
        %v731 = vunpack.c.h.b16 %v698
        %v732 = vunpack.c.l.b16 %v699
        %v733 = vunpack.c.h.b16 %v699
        %v734 = vunpack.c.l.b16 %v700
        %v735 = vunpack.c.h.b16 %v700
        %v736 = vunpack.c.l.b16 %v701
        %v737 = vunpack.c.h.b16 %v701
        %v738 = vunpack.c.l.b16 %v702
        %v739 = vunpack.c.h.b16 %v702
        %v740 = vunpack.c.l.b16 %v703
        %v741 = vunpack.c.h.b16 %v703
        %v742 = vunpack.c.l.b16 %v704
        %v743 = vunpack.c.h.b16 %v704
        %v744 = vunpack.c.l.b16 %v705
        %v745 = vunpack.c.h.b16 %v705
        %v746 = vunpack.c.l.b16 %v706
        %v747 = vunpack.c.h.b16 %v706
        %v748 = vunpack.c.l.b16 %v707
        %v749 = vunpack.c.h.b16 %v707
        %v750 = vunpack.c.l.b16 %v708
        %v751 = vunpack.c.h.b16 %v708
        %v752 = vunpack.c.l.b16 %v709
        %v753 = vunpack.c.h.b16 %v709
        %v754 = vunpack.c.l.b16 %v710
        %v755 = vunpack.c.h.b16 %v710
        %v756 = vunpack.c.l.b16 %v711
        %v757 = vunpack.c.h.b16 %v711
        %v758 = vunpack.c.l.b16 %v712
        %v759 = vunpack.c.h.b16 %v712
        %v760 = vunpack.c.l.b16 %v713
        %v761 = vunpack.c.h.b16 %v713
        %v762 = vpack.c.b16 %v738, %v730
        %v763 = vpack.c.b16 %v739, %v731
        %v764 = vpack.c.b16 %v740, %v732
        %v765 = vpack.c.b16 %v741, %v733
        %v766 = vpack.c.b16 %v742, %v734
        %v767 = vpack.c.b16 %v743, %v735
        %v768 = vpack.c.b16 %v744, %v736
        %v769 = vpack.c.b16 %v745, %v737
        %v770 = vpack.c.b16 %v754, %v746
        %v771 = vpack.c.b16 %v755, %v747
        %v772 = vpack.c.b16 %v756, %v748
        %v773 = vpack.c.b16 %v757, %v749
        %v774 = vpack.c.b16 %v758, %v750
        %v775 = vpack.c.b16 %v759, %v751
        %v776 = vpack.c.b16 %v760, %v752
        %v777 = vpack.c.b16 %v761, %v753
        %v787 = vsel %vm277, %v349, 0
        %v790 = vsel %vm287, %v770, 0
        %v793 = vsel %vm287, %v771, 0
        %v796 = vsel %vm287, %v772, 0
        %v799 = vsel %vm287, %v773, 0
        %v802 = vsel %vm287, %v774, 0
        %v805 = vsel %vm287, %v775, 0
        %v808 = vsel %vm287, %v776, 0
        %v811 = vsel %vm287, %v777, 0
        %813 = vmatprep.subr.bf16.mxu0 %v763
        %814 = vmatpush1.bf16.msra.mxu0 %v762
        %815 = vmatprep.subr.bf16.mxu0 %v793
        %816 = vmatpush1.bf16.msra.mxu0 %v790
        %817 = vmatprep.subr.bf16.mxu0 0
        %818 = vmatpush1.bf16.msra.mxu0 0
        %819 = vmatprep.subr.bf16.mxu0 0
        %820 = vmatpush1.bf16.msra.mxu0 0
        %821 = vmatprep.subr.bf16.mxu0 0
        %822 = vmatpush1.bf16.msra.mxu0 0
        %823 = vmatprep.subr.bf16.mxu0 0
        %824 = vmatpush1.bf16.msra.mxu0 0
        %825 = vmatprep.subr.bf16.mxu0 0
        %826 = vmatpush1.bf16.msra.mxu0 0
        %827 = vmatprep.subr.bf16.mxu0 0
        %828 = vmatpush1.bf16.msra.mxu0 0
        %829 = vmatprep.subr.bf16.mxu0 0
        %830 = vmatpush1.bf16.msra.mxu0 0
        %831 = vmatprep.subr.bf16.mxu0 0
        %832 = vmatpush1.bf16.msra.mxu0 0
        %833 = vmatprep.subr.bf16.mxu0 0
        %834 = vmatpush1.bf16.msra.mxu0 0
        %835 = vmatprep.subr.bf16.mxu0 0
        %836 = vmatpush1.bf16.msra.mxu0 0
        %837 = vmatprep.subr.bf16.mxu0 0
        %838 = vmatpush1.bf16.msra.mxu0 0
        %839 = vmatprep.subr.bf16.mxu0 0
        %840 = vmatpush1.bf16.msra.mxu0 0
        %841 = vmatprep.subr.bf16.mxu0 0
        %842 = vmatpush1.bf16.msra.mxu0 0
        %843 = vmatprep.subr.bf16.mxu0 0
        %844 = vmatpush1.bf16.msra.mxu0 0
        %845 = vmatprep.mubr.bf16.mxu0 0
        %846 = vmatmul.mubr.bf16.gmra.mrb[0].mxu0 %v787
        %v847 = vpop.f32.mrb[0].mxu0
        %v848 = vadd.f32 0.0, %v847
        %v849 = vpop.f32.mrb[0].mxu0
        %v850 = vadd.f32 0.0, %v849
        %v851 = vpop.f32.mrb[0].mxu0
        %v852 = vadd.f32 0.0, %v851
        %v853 = vpop.f32.mrb[0].mxu0
        %v854 = vadd.f32 0.0, %v853
        %855 = vdwg.mxu0
        %856 = vmatprep.subr.bf16.mxu0 %v765
        %857 = vmatpush1.bf16.msra.mxu0 %v764
        %858 = vmatprep.subr.bf16.mxu0 %v799
        %859 = vmatpush1.bf16.msra.mxu0 %v796
        %860 = vmatprep.subr.bf16.mxu0 0
        %861 = vmatpush1.bf16.msra.mxu0 0
        %862 = vmatprep.subr.bf16.mxu0 0
        %863 = vmatpush1.bf16.msra.mxu0 0
        %864 = vmatprep.subr.bf16.mxu0 0
        %865 = vmatpush1.bf16.msra.mxu0 0
        %866 = vmatprep.subr.bf16.mxu0 0
        %867 = vmatpush1.bf16.msra.mxu0 0
        %868 = vmatprep.subr.bf16.mxu0 0
        %869 = vmatpush1.bf16.msra.mxu0 0
        %870 = vmatprep.subr.bf16.mxu0 0
        %871 = vmatpush1.bf16.msra.mxu0 0
        %872 = vmatprep.subr.bf16.mxu0 0
        %873 = vmatpush1.bf16.msra.mxu0 0
        %874 = vmatprep.subr.bf16.mxu0 0
        %875 = vmatpush1.bf16.msra.mxu0 0
        %876 = vmatprep.subr.bf16.mxu0 0
        %877 = vmatpush1.bf16.msra.mxu0 0
        %878 = vmatprep.subr.bf16.mxu0 0
        %879 = vmatpush1.bf16.msra.mxu0 0
        %880 = vmatprep.subr.bf16.mxu0 0
        %881 = vmatpush1.bf16.msra.mxu0 0
        %882 = vmatprep.subr.bf16.mxu0 0
        %883 = vmatpush1.bf16.msra.mxu0 0
        %884 = vmatprep.subr.bf16.mxu0 0
        %885 = vmatpush1.bf16.msra.mxu0 0
        %886 = vmatprep.subr.bf16.mxu0 0
        %887 = vmatpush1.bf16.msra.mxu0 0
        %888 = vmatprep.mubr.bf16.mxu0 0
        %889 = vmatmul.mubr.bf16.gmra.mrb[0].mxu0 %v787
        %v890 = vpop.f32.mrb[0].mxu0
        %v891 = vadd.f32 0.0, %v890
        %v892 = vpop.f32.mrb[0].mxu0
        %v893 = vadd.f32 0.0, %v892
        %v894 = vpop.f32.mrb[0].mxu0
        %v895 = vadd.f32 0.0, %v894
        %v896 = vpop.f32.mrb[0].mxu0
        %v897 = vadd.f32 0.0, %v896
        %898 = vdwg.mxu0
        %899 = vmatprep.subr.bf16.mxu0 %v767
        %900 = vmatpush1.bf16.msra.mxu0 %v766
        %901 = vmatprep.subr.bf16.mxu0 %v805
        %902 = vmatpush1.bf16.msra.mxu0 %v802
        %903 = vmatprep.subr.bf16.mxu0 0
        %904 = vmatpush1.bf16.msra.mxu0 0
        %905 = vmatprep.subr.bf16.mxu0 0
        %906 = vmatpush1.bf16.msra.mxu0 0
        %907 = vmatprep.subr.bf16.mxu0 0
        %908 = vmatpush1.bf16.msra.mxu0 0
        %909 = vmatprep.subr.bf16.mxu0 0
        %910 = vmatpush1.bf16.msra.mxu0 0
        %911 = vmatprep.subr.bf16.mxu0 0
        %912 = vmatpush1.bf16.msra.mxu0 0
        %913 = vmatprep.subr.bf16.mxu0 0
        %914 = vmatpush1.bf16.msra.mxu0 0
        %915 = vmatprep.subr.bf16.mxu0 0
        %916 = vmatpush1.bf16.msra.mxu0 0
        %917 = vmatprep.subr.bf16.mxu0 0
        %918 = vmatpush1.bf16.msra.mxu0 0
        %919 = vmatprep.subr.bf16.mxu0 0
        %920 = vmatpush1.bf16.msra.mxu0 0
        %921 = vmatprep.subr.bf16.mxu0 0
        %922 = vmatpush1.bf16.msra.mxu0 0
        %923 = vmatprep.subr.bf16.mxu0 0
        %924 = vmatpush1.bf16.msra.mxu0 0
        %925 = vmatprep.subr.bf16.mxu0 0
        %926 = vmatpush1.bf16.msra.mxu0 0
        %927 = vmatprep.subr.bf16.mxu0 0
        %928 = vmatpush1.bf16.msra.mxu0 0
        %929 = vmatprep.subr.bf16.mxu0 0
        %930 = vmatpush1.bf16.msra.mxu0 0
        %931 = vmatprep.mubr.bf16.mxu0 0
        %932 = vmatmul.mubr.bf16.gmra.mrb[0].mxu0 %v787
        %v933 = vpop.f32.mrb[0].mxu0
        %v934 = vadd.f32 0.0, %v933
        %v935 = vpop.f32.mrb[0].mxu0
        %v936 = vadd.f32 0.0, %v935
        %v937 = vpop.f32.mrb[0].mxu0
        %v938 = vadd.f32 0.0, %v937
        %v939 = vpop.f32.mrb[0].mxu0
        %v940 = vadd.f32 0.0, %v939
        %941 = vdwg.mxu0
        %942 = vmatprep.subr.bf16.mxu0 %v769
        %943 = vmatpush1.bf16.msra.mxu0 %v768
        %944 = vmatprep.subr.bf16.mxu0 %v811
        %945 = vmatpush1.bf16.msra.mxu0 %v808
        %946 = vmatprep.subr.bf16.mxu0 0
        %947 = vmatpush1.bf16.msra.mxu0 0
        %948 = vmatprep.subr.bf16.mxu0 0
        %949 = vmatpush1.bf16.msra.mxu0 0
        %950 = vmatprep.subr.bf16.mxu0 0
        %951 = vmatpush1.bf16.msra.mxu0 0
        %952 = vmatprep.subr.bf16.mxu0 0
        %953 = vmatpush1.bf16.msra.mxu0 0
        %954 = vmatprep.subr.bf16.mxu0 0
        %955 = vmatpush1.bf16.msra.mxu0 0
        %956 = vmatprep.subr.bf16.mxu0 0
        %957 = vmatpush1.bf16.msra.mxu0 0
        %958 = vmatprep.subr.bf16.mxu0 0
        %959 = vmatpush1.bf16.msra.mxu0 0
        %960 = vmatprep.subr.bf16.mxu0 0
        %961 = vmatpush1.bf16.msra.mxu0 0
        %962 = vmatprep.subr.bf16.mxu0 0
        %963 = vmatpush1.bf16.msra.mxu0 0
        %964 = vmatprep.subr.bf16.mxu0 0
        %965 = vmatpush1.bf16.msra.mxu0 0
        %966 = vmatprep.subr.bf16.mxu0 0
        %967 = vmatpush1.bf16.msra.mxu0 0
        %968 = vmatprep.subr.bf16.mxu0 0
        %969 = vmatpush1.bf16.msra.mxu0 0
        %970 = vmatprep.subr.bf16.mxu0 0
        %971 = vmatpush1.bf16.msra.mxu0 0
        %972 = vmatprep.subr.bf16.mxu0 0
        %973 = vmatpush1.bf16.msra.mxu0 0
        %974 = vmatprep.mubr.bf16.mxu0 0
        %975 = vmatmul.mubr.bf16.gmra.mrb[0].mxu0 %v787
        %v976 = vpop.f32.mrb[0].mxu0
        %v977 = vadd.f32 0.0, %v976
        %v978 = vpop.f32.mrb[0].mxu0
        %v979 = vadd.f32 0.0, %v978
        %v980 = vpop.f32.mrb[0].mxu0
        %v981 = vadd.f32 0.0, %v980
        %v982 = vpop.f32.mrb[0].mxu0
        %v983 = vadd.f32 0.0, %v982
        %984 = vdwg.mxu0
        %v985 = vadd.f32 %v682, %v848
        %v986 = vadd.f32 %v683, %v850
        %v987 = vadd.f32 %v684, %v891
        %v988 = vadd.f32 %v685, %v893
        %v989 = vadd.f32 %v686, %v934
        %v990 = vadd.f32 %v687, %v936
        %v991 = vadd.f32 %v688, %v977
        %v992 = vadd.f32 %v689, %v979
        %v993 = vadd.f32 %v690, %v852
        %v994 = vadd.f32 %v691, %v854
        %v995 = vadd.f32 %v692, %v895
        %v996 = vadd.f32 %v693, %v897
        %v997 = vadd.f32 %v694, %v938
        %v998 = vadd.f32 %v695, %v940
        %v999 = vadd.f32 %v696, %v981
        %v1000 = vadd.f32 %v697, %v983
        %v1001 = vld [vmem:[#allocation2 + $0x100] sm:$0xff]
        %v1002 = vld [vmem:[#allocation2 + $0x108] sm:$0xff]
        %v1003 = vld [vmem:[#allocation2 + $0x110] sm:$0xff]
        %v1004 = vld [vmem:[#allocation2 + $0x118] sm:$0xff]
        %v1005 = vld [vmem:[#allocation2 + $0x120] sm:$0xff]
        %v1006 = vld [vmem:[#allocation2 + $0x128] sm:$0xff]
        %v1007 = vld [vmem:[#allocation2 + $0x130] sm:$0xff]
        %v1008 = vld [vmem:[#allocation2 + $0x138] sm:$0xff]
        %v1009 = vld [vmem:[#allocation2 + $0x140] sm:$0xff]
        %v1010 = vld [vmem:[#allocation2 + $0x148] sm:$0xff]
        %v1011 = vld [vmem:[#allocation2 + $0x150] sm:$0xff]
        %v1012 = vld [vmem:[#allocation2 + $0x158] sm:$0xff]
        %v1013 = vld [vmem:[#allocation2 + $0x160] sm:$0x33]
        %v1014 = vld [vmem:[#allocation2 + $0x168] sm:$0x33]
        %v1015 = vld [vmem:[#allocation2 + $0x170] sm:$0x33]
        %v1016 = vld [vmem:[#allocation2 + $0x178] sm:$0x33]
        %v1033 = vunpack.c.l.b16 %v1001
        %v1034 = vunpack.c.h.b16 %v1001
        %v1035 = vunpack.c.l.b16 %v1002
        %v1036 = vunpack.c.h.b16 %v1002
        %v1037 = vunpack.c.l.b16 %v1003
        %v1038 = vunpack.c.h.b16 %v1003
        %v1039 = vunpack.c.l.b16 %v1004
        %v1040 = vunpack.c.h.b16 %v1004
        %v1041 = vunpack.c.l.b16 %v1005
        %v1042 = vunpack.c.h.b16 %v1005
        %v1043 = vunpack.c.l.b16 %v1006
        %v1044 = vunpack.c.h.b16 %v1006
        %v1045 = vunpack.c.l.b16 %v1007
        %v1046 = vunpack.c.h.b16 %v1007
        %v1047 = vunpack.c.l.b16 %v1008
        %v1048 = vunpack.c.h.b16 %v1008
        %v1049 = vunpack.c.l.b16 %v1009
        %v1050 = vunpack.c.h.b16 %v1009
        %v1051 = vunpack.c.l.b16 %v1010
        %v1052 = vunpack.c.h.b16 %v1010
        %v1053 = vunpack.c.l.b16 %v1011
        %v1054 = vunpack.c.h.b16 %v1011
        %v1055 = vunpack.c.l.b16 %v1012
        %v1056 = vunpack.c.h.b16 %v1012
        %v1057 = vunpack.c.l.b16 %v1013
        %v1058 = vunpack.c.h.b16 %v1013
        %v1059 = vunpack.c.l.b16 %v1014
        %v1060 = vunpack.c.h.b16 %v1014
        %v1061 = vunpack.c.l.b16 %v1015
        %v1062 = vunpack.c.h.b16 %v1015
        %v1063 = vunpack.c.l.b16 %v1016
        %v1064 = vunpack.c.h.b16 %v1016
        %v1065 = vpack.c.b16 %v1041, %v1033
        %v1066 = vpack.c.b16 %v1042, %v1034
        %v1067 = vpack.c.b16 %v1043, %v1035
        %v1068 = vpack.c.b16 %v1044, %v1036
        %v1069 = vpack.c.b16 %v1045, %v1037
        %v1070 = vpack.c.b16 %v1046, %v1038
        %v1071 = vpack.c.b16 %v1047, %v1039
        %v1072 = vpack.c.b16 %v1048, %v1040
        %v1073 = vpack.c.b16 %v1057, %v1049
        %v1074 = vpack.c.b16 %v1058, %v1050
        %v1075 = vpack.c.b16 %v1059, %v1051
        %v1076 = vpack.c.b16 %v1060, %v1052
        %v1077 = vpack.c.b16 %v1061, %v1053
        %v1078 = vpack.c.b16 %v1062, %v1054
        %v1079 = vpack.c.b16 %v1063, %v1055
        %v1080 = vpack.c.b16 %v1064, %v1056
        %v1090 = vsel %vm277, %v350, 0
        %v1093 = vsel %vm287, %v1073, 0
        %v1096 = vsel %vm287, %v1074, 0
        %v1099 = vsel %vm287, %v1075, 0
        %v1102 = vsel %vm287, %v1076, 0
        %v1105 = vsel %vm287, %v1077, 0
        %v1108 = vsel %vm287, %v1078, 0
        %v1111 = vsel %vm287, %v1079, 0
        %v1114 = vsel %vm287, %v1080, 0
        %1116 = vmatprep.subr.bf16.mxu0 %v1066
        %1117 = vmatpush1.bf16.msra.mxu0 %v1065
        %1118 = vmatprep.subr.bf16.mxu0 %v1096
        %1119 = vmatpush1.bf16.msra.mxu0 %v1093
        %1120 = vmatprep.subr.bf16.mxu0 0
        %1121 = vmatpush1.bf16.msra.mxu0 0
        %1122 = vmatprep.subr.bf16.mxu0 0
        %1123 = vmatpush1.bf16.msra.mxu0 0
        %1124 = vmatprep.subr.bf16.mxu0 0
        %1125 = vmatpush1.bf16.msra.mxu0 0
        %1126 = vmatprep.subr.bf16.mxu0 0
        %1127 = vmatpush1.bf16.msra.mxu0 0
        %1128 = vmatprep.subr.bf16.mxu0 0
        %1129 = vmatpush1.bf16.msra.mxu0 0
        %1130 = vmatprep.subr.bf16.mxu0 0
        %1131 = vmatpush1.bf16.msra.mxu0 0
        %1132 = vmatprep.subr.bf16.mxu0 0
        %1133 = vmatpush1.bf16.msra.mxu0 0
        %1134 = vmatprep.subr.bf16.mxu0 0
        %1135 = vmatpush1.bf16.msra.mxu0 0
        %1136 = vmatprep.subr.bf16.mxu0 0
        %1137 = vmatpush1.bf16.msra.mxu0 0
        %1138 = vmatprep.subr.bf16.mxu0 0
        %1139 = vmatpush1.bf16.msra.mxu0 0
        %1140 = vmatprep.subr.bf16.mxu0 0
        %1141 = vmatpush1.bf16.msra.mxu0 0
        %1142 = vmatprep.subr.bf16.mxu0 0
        %1143 = vmatpush1.bf16.msra.mxu0 0
        %1144 = vmatprep.subr.bf16.mxu0 0
        %1145 = vmatpush1.bf16.msra.mxu0 0
        %1146 = vmatprep.subr.bf16.mxu0 0
        %1147 = vmatpush1.bf16.msra.mxu0 0
        %1148 = vmatprep.mubr.bf16.mxu0 0
        %1149 = vmatmul.mubr.bf16.gmra.mrb[0].mxu0 %v1090
        %v1150 = vpop.f32.mrb[0].mxu0
        %v1151 = vadd.f32 0.0, %v1150
        %v1152 = vpop.f32.mrb[0].mxu0
        %v1153 = vadd.f32 0.0, %v1152
        %v1154 = vpop.f32.mrb[0].mxu0
        %v1155 = vadd.f32 0.0, %v1154
        %v1156 = vpop.f32.mrb[0].mxu0
        %v1157 = vadd.f32 0.0, %v1156
        %1158 = vdwg.mxu0
        %1159 = vmatprep.subr.bf16.mxu0 %v1068
        %1160 = vmatpush1.bf16.msra.mxu0 %v1067
        %1161 = vmatprep.subr.bf16.mxu0 %v1102
        %1162 = vmatpush1.bf16.msra.mxu0 %v1099
        %1163 = vmatprep.subr.bf16.mxu0 0
        %1164 = vmatpush1.bf16.msra.mxu0 0
        %1165 = vmatprep.subr.bf16.mxu0 0
        %1166 = vmatpush1.bf16.msra.mxu0 0
        %1167 = vmatprep.subr.bf16.mxu0 0
        %1168 = vmatpush1.bf16.msra.mxu0 0
        %1169 = vmatprep.subr.bf16.mxu0 0
        %1170 = vmatpush1.bf16.msra.mxu0 0
        %1171 = vmatprep.subr.bf16.mxu0 0
        %1172 = vmatpush1.bf16.msra.mxu0 0
        %1173 = vmatprep.subr.bf16.mxu0 0
        %1174 = vmatpush1.bf16.msra.mxu0 0
        %1175 = vmatprep.subr.bf16.mxu0 0
        %1176 = vmatpush1.bf16.msra.mxu0 0
        %1177 = vmatprep.subr.bf16.mxu0 0
        %1178 = vmatpush1.bf16.msra.mxu0 0
        %1179 = vmatprep.subr.bf16.mxu0 0
        %1180 = vmatpush1.bf16.msra.mxu0 0
        %1181 = vmatprep.subr.bf16.mxu0 0
        %1182 = vmatpush1.bf16.msra.mxu0 0
        %1183 = vmatprep.subr.bf16.mxu0 0
        %1184 = vmatpush1.bf16.msra.mxu0 0
        %1185 = vmatprep.subr.bf16.mxu0 0
        %1186 = vmatpush1.bf16.msra.mxu0 0
        %1187 = vmatprep.subr.bf16.mxu0 0
        %1188 = vmatpush1.bf16.msra.mxu0 0
        %1189 = vmatprep.subr.bf16.mxu0 0
        %1190 = vmatpush1.bf16.msra.mxu0 0
        %1191 = vmatprep.mubr.bf16.mxu0 0
        %1192 = vmatmul.mubr.bf16.gmra.mrb[0].mxu0 %v1090
        %v1193 = vpop.f32.mrb[0].mxu0
        %v1194 = vadd.f32 0.0, %v1193
        %v1195 = vpop.f32.mrb[0].mxu0
        %v1196 = vadd.f32 0.0, %v1195
        %v1197 = vpop.f32.mrb[0].mxu0
        %v1198 = vadd.f32 0.0, %v1197
        %v1199 = vpop.f32.mrb[0].mxu0
        %v1200 = vadd.f32 0.0, %v1199
        %1201 = vdwg.mxu0
        %1202 = vmatprep.subr.bf16.mxu0 %v1070
        %1203 = vmatpush1.bf16.msra.mxu0 %v1069
        %1204 = vmatprep.subr.bf16.mxu0 %v1108
        %1205 = vmatpush1.bf16.msra.mxu0 %v1105
        %1206 = vmatprep.subr.bf16.mxu0 0
        %1207 = vmatpush1.bf16.msra.mxu0 0
        %1208 = vmatprep.subr.bf16.mxu0 0
        %1209 = vmatpush1.bf16.msra.mxu0 0
        %1210 = vmatprep.subr.bf16.mxu0 0
        %1211 = vmatpush1.bf16.msra.mxu0 0
        %1212 = vmatprep.subr.bf16.mxu0 0
        %1213 = vmatpush1.bf16.msra.mxu0 0
        %1214 = vmatprep.subr.bf16.mxu0 0
        %1215 = vmatpush1.bf16.msra.mxu0 0
        %1216 = vmatprep.subr.bf16.mxu0 0
        %1217 = vmatpush1.bf16.msra.mxu0 0
        %1218 = vmatprep.subr.bf16.mxu0 0
        %1219 = vmatpush1.bf16.msra.mxu0 0
        %1220 = vmatprep.subr.bf16.mxu0 0
        %1221 = vmatpush1.bf16.msra.mxu0 0
        %1222 = vmatprep.subr.bf16.mxu0 0
        %1223 = vmatpush1.bf16.msra.mxu0 0
        %1224 = vmatprep.subr.bf16.mxu0 0
        %1225 = vmatpush1.bf16.msra.mxu0 0
        %1226 = vmatprep.subr.bf16.mxu0 0
        %1227 = vmatpush1.bf16.msra.mxu0 0
        %1228 = vmatprep.subr.bf16.mxu0 0
        %1229 = vmatpush1.bf16.msra.mxu0 0
        %1230 = vmatprep.subr.bf16.mxu0 0
        %1231 = vmatpush1.bf16.msra.mxu0 0
        %1232 = vmatprep.subr.bf16.mxu0 0
        %1233 = vmatpush1.bf16.msra.mxu0 0
        %1234 = vmatprep.mubr.bf16.mxu0 0
        %1235 = vmatmul.mubr.bf16.gmra.mrb[0].mxu0 %v1090
        %v1236 = vpop.f32.mrb[0].mxu0
        %v1237 = vadd.f32 0.0, %v1236
        %v1238 = vpop.f32.mrb[0].mxu0
        %v1239 = vadd.f32 0.0, %v1238
        %v1240 = vpop.f32.mrb[0].mxu0
        %v1241 = vadd.f32 0.0, %v1240
        %v1242 = vpop.f32.mrb[0].mxu0
        %v1243 = vadd.f32 0.0, %v1242
        %1244 = vdwg.mxu0
        %1245 = vmatprep.subr.bf16.mxu0 %v1072
        %1246 = vmatpush1.bf16.msra.mxu0 %v1071
        %1247 = vmatprep.subr.bf16.mxu0 %v1114
        %1248 = vmatpush1.bf16.msra.mxu0 %v1111
        %1249 = vmatprep.subr.bf16.mxu0 0
        %1250 = vmatpush1.bf16.msra.mxu0 0
        %1251 = vmatprep.subr.bf16.mxu0 0
        %1252 = vmatpush1.bf16.msra.mxu0 0
        %1253 = vmatprep.subr.bf16.mxu0 0
        %1254 = vmatpush1.bf16.msra.mxu0 0
        %1255 = vmatprep.subr.bf16.mxu0 0
        %1256 = vmatpush1.bf16.msra.mxu0 0
        %1257 = vmatprep.subr.bf16.mxu0 0
        %1258 = vmatpush1.bf16.msra.mxu0 0
        %1259 = vmatprep.subr.bf16.mxu0 0
        %1260 = vmatpush1.bf16.msra.mxu0 0
        %1261 = vmatprep.subr.bf16.mxu0 0
        %1262 = vmatpush1.bf16.msra.mxu0 0
        %1263 = vmatprep.subr.bf16.mxu0 0
        %1264 = vmatpush1.bf16.msra.mxu0 0
        %1265 = vmatprep.subr.bf16.mxu0 0
        %1266 = vmatpush1.bf16.msra.mxu0 0
        %1267 = vmatprep.subr.bf16.mxu0 0
        %1268 = vmatpush1.bf16.msra.mxu0 0
        %1269 = vmatprep.subr.bf16.mxu0 0
        %1270 = vmatpush1.bf16.msra.mxu0 0
        %1271 = vmatprep.subr.bf16.mxu0 0
        %1272 = vmatpush1.bf16.msra.mxu0 0
        %1273 = vmatprep.subr.bf16.mxu0 0
        %1274 = vmatpush1.bf16.msra.mxu0 0
        %1275 = vmatprep.subr.bf16.mxu0 0
        %1276 = vmatpush1.bf16.msra.mxu0 0
        %1277 = vmatprep.mubr.bf16.mxu0 0
        %1278 = vmatmul.mubr.bf16.gmra.mrb[0].mxu0 %v1090
        %v1279 = vpop.f32.mrb[0].mxu0
        %v1280 = vadd.f32 0.0, %v1279
        %v1281 = vpop.f32.mrb[0].mxu0
        %v1282 = vadd.f32 0.0, %v1281
        %v1283 = vpop.f32.mrb[0].mxu0
        %v1284 = vadd.f32 0.0, %v1283
        %v1285 = vpop.f32.mrb[0].mxu0
        %v1286 = vadd.f32 0.0, %v1285
        %1287 = vdwg.mxu0
        %v1288 = vadd.f32 %v985, %v1151
        %v1289 = vadd.f32 %v986, %v1153
        %v1290 = vadd.f32 %v987, %v1194
        %v1291 = vadd.f32 %v988, %v1196
        %v1292 = vadd.f32 %v989, %v1237
        %v1293 = vadd.f32 %v990, %v1239
        %v1294 = vadd.f32 %v991, %v1280
        %v1295 = vadd.f32 %v992, %v1282
        %v1296 = vadd.f32 %v993, %v1155
        %v1297 = vadd.f32 %v994, %v1157
        %v1298 = vadd.f32 %v995, %v1198
        %v1299 = vadd.f32 %v996, %v1200
        %v1300 = vadd.f32 %v997, %v1241
        %v1301 = vadd.f32 %v998, %v1243
        %v1302 = vadd.f32 %v999, %v1284
        %v1303 = vadd.f32 %v1000, %v1286
        %v1304 = vmax.f32 %v1288, 0.0
        %v1305 = vmax.f32 %v1289, 0.0
        %v1306 = vmax.f32 %v1290, 0.0
        %v1307 = vmax.f32 %v1291, 0.0
        %v1308 = vmax.f32 %v1292, 0.0
        %v1309 = vmax.f32 %v1293, 0.0
        %v1310 = vmax.f32 %v1294, 0.0
        %v1311 = vmax.f32 %v1295, 0.0
        %v1312 = vmax.f32 %v1296, 0.0
        %v1313 = vmax.f32 %v1297, 0.0
        %v1314 = vmax.f32 %v1298, 0.0
        %v1315 = vmax.f32 %v1299, 0.0
        %v1316 = vmax.f32 %v1300, 0.0
        %v1317 = vmax.f32 %v1301, 0.0
        %v1318 = vmax.f32 %v1302, 0.0
        %v1319 = vmax.f32 %v1303, 0.0
        %v1320 = vmax.f32 %v1304, %v1308
        %v1321 = vmax.f32 %v1305, %v1309
        %v1322 = vmax.f32 %v1306, %v1310
        %v1323 = vmax.f32 %v1307, %v1311
        %v1324 = vmax.f32 %v1312, %v1316
        %v1325 = vmax.f32 %v1313, %v1317
        %v1326 = vmax.f32 %v1314, %v1318
        %v1327 = vmax.f32 %v1315, %v1319
        %v1328 = vmax.f32 %v1320, %v1324
        %v1329 = vmax.f32 %v1321, %v1325
        %v1330 = vmax.f32 %v1322, %v1326
        %v1331 = vmax.f32 %v1323, %v1327
        %v1332 = vpack.c.bf16 %v1328, %v1328
        %v1333 = vpack.c.bf16 %v1329, %v1329
        %v1334 = vpack.c.bf16 %v1330, %v1330
        %v1335 = vpack.c.bf16 %v1331, %v1331
        %v1336 = vld [vmem:[#allocation7 + $0x18] sm:$0xf]
        %v1337 = vld [vmem:[#allocation7 + $0x1c] sm:$0xf]
        %v1338 = vld [vmem:[#allocation7 + $0x20] sm:$0xf]
        %v1339 = vld [vmem:[#allocation7 + $0x24] sm:$0xf]
        %v1344 = vunpack.c.l.b16 %v1336
        %v1345 = vunpack.c.l.b16 %v1337
        %v1346 = vunpack.c.l.b16 %v1338
        %v1347 = vunpack.c.l.b16 %v1339
        %v1348 = vpack.c.b16 %v1345, %v1344
        %v1349 = vpack.c.b16 %v1347, %v1346
        %vm1350 = vcmask 56320
        %v1352 = vsel %vm1350, %v1348, 0
        %v1355 = vsel %vm1350, %v1349, 0
        %vm1357 = vcmask 1042432
        %vm1358 = vcmask 1043456
        %v1359 = vsel %vm1357, 4294967295, 65535
        %v1360 = vsel %vm1358, %v1359, 0
        %v1362 = vand.u32 %v1332, %v1360
        %v1365 = vand.u32 %v1333, %v1360
        %v1368 = vand.u32 %v1334, %v1360
        %v1371 = vand.u32 %v1335, %v1360
        %1373 = vmatprep.subr.bf16.mxu0 %v1365
        %1374 = vmatpush1.bf16.msra.mxu0 %v1362
        %1375 = vmatprep.subr.bf16.mxu0 0
        %1376 = vmatpush1.bf16.msra.mxu0 0
        %1377 = vmatprep.subr.bf16.mxu0 0
        %1378 = vmatpush1.bf16.msra.mxu0 0
        %1379 = vmatprep.subr.bf16.mxu0 0
        %1380 = vmatpush1.bf16.msra.mxu0 0
        %1381 = vmatprep.subr.bf16.mxu0 0
        %1382 = vmatpush1.bf16.msra.mxu0 0
        %1383 = vmatprep.subr.bf16.mxu0 0
        %1384 = vmatpush1.bf16.msra.mxu0 0
        %1385 = vmatprep.subr.bf16.mxu0 0
        %1386 = vmatpush1.bf16.msra.mxu0 0
        %1387 = vmatprep.subr.bf16.mxu0 0
        %1388 = vmatpush1.bf16.msra.mxu0 0
        %1389 = vmatprep.subr.bf16.mxu0 0
        %1390 = vmatpush1.bf16.msra.mxu0 0
        %1391 = vmatprep.subr.bf16.mxu0 0
        %1392 = vmatpush1.bf16.msra.mxu0 0
        %1393 = vmatprep.subr.bf16.mxu0 0
        %1394 = vmatpush1.bf16.msra.mxu0 0
        %1395 = vmatprep.subr.bf16.mxu0 0
        %1396 = vmatpush1.bf16.msra.mxu0 0
        %1397 = vmatprep.subr.bf16.mxu0 0
        %1398 = vmatpush1.bf16.msra.mxu0 0
        %1399 = vmatprep.subr.bf16.mxu0 0
        %1400 = vmatpush1.bf16.msra.mxu0 0
        %1401 = vmatprep.subr.bf16.mxu0 0
        %1402 = vmatpush1.bf16.msra.mxu0 0
        %1403 = vmatprep.subr.bf16.mxu0 0
        %1404 = vmatpush1.bf16.msra.mxu0 0
        %1405 = vmatprep.mubr.bf16.mxu0 0
        %1406 = vmatmul.mubr.bf16.gmra.mrb[0].mxu0 %v1352
        %v1407 = vpop.f32.mrb[0].mxu0
        %v1408 = vadd.f32 0.0, %v1407
        %v1409 = vpop.f32.mrb[0].mxu0
        %v1410 = vadd.f32 0.0, %v1409
        %v1411 = vpop.f32.mrb[0].mxu0
        %v1412 = vadd.f32 0.0, %v1411
        %v1413 = vpop.f32.mrb[0].mxu0
        %v1414 = vadd.f32 0.0, %v1413
        %1415 = vmatprep.mubr.bf16.mxu0 0
        %1416 = vmatmul.mubr.bf16.gmra.mrb[0].mxu0 %v1355
        %v1417 = vpop.f32.mrb[0].mxu0
        %v1418 = vadd.f32 0.0, %v1417
        %v1419 = vpop.f32.mrb[0].mxu0
        %v1420 = vadd.f32 0.0, %v1419
        %v1421 = vpop.f32.mrb[0].mxu0
        %v1422 = vadd.f32 0.0, %v1421
        %v1423 = vpop.f32.mrb[0].mxu0
        %v1424 = vadd.f32 0.0, %v1423
        %1425 = vdwg.mxu0
        %1426 = vmatprep.subr.bf16.mxu0 %v1371
        %1427 = vmatpush1.bf16.msra.mxu0 %v1368
        %1428 = vmatprep.subr.bf16.mxu0 0
        %1429 = vmatpush1.bf16.msra.mxu0 0
        %1430 = vmatprep.subr.bf16.mxu0 0
        %1431 = vmatpush1.bf16.msra.mxu0 0
        %1432 = vmatprep.subr.bf16.mxu0 0
        %1433 = vmatpush1.bf16.msra.mxu0 0
        %1434 = vmatprep.subr.bf16.mxu0 0
        %1435 = vmatpush1.bf16.msra.mxu0 0
        %1436 = vmatprep.subr.bf16.mxu0 0
        %1437 = vmatpush1.bf16.msra.mxu0 0
        %1438 = vmatprep.subr.bf16.mxu0 0
        %1439 = vmatpush1.bf16.msra.mxu0 0
        %1440 = vmatprep.subr.bf16.mxu0 0
        %1441 = vmatpush1.bf16.msra.mxu0 0
        %1442 = vmatprep.subr.bf16.mxu0 0
        %1443 = vmatpush1.bf16.msra.mxu0 0
        %1444 = vmatprep.subr.bf16.mxu0 0
        %1445 = vmatpush1.bf16.msra.mxu0 0
        %1446 = vmatprep.subr.bf16.mxu0 0
        %1447 = vmatpush1.bf16.msra.mxu0 0
        %1448 = vmatprep.subr.bf16.mxu0 0
        %1449 = vmatpush1.bf16.msra.mxu0 0
        %1450 = vmatprep.subr.bf16.mxu0 0
        %1451 = vmatpush1.bf16.msra.mxu0 0
        %1452 = vmatprep.subr.bf16.mxu0 0
        %1453 = vmatpush1.bf16.msra.mxu0 0
        %1454 = vmatprep.subr.bf16.mxu0 0
        %1455 = vmatpush1.bf16.msra.mxu0 0
        %1456 = vmatprep.subr.bf16.mxu0 0
        %1457 = vmatpush1.bf16.msra.mxu0 0
        %1458 = vmatprep.mubr.bf16.mxu0 0
        %1459 = vmatmul.mubr.bf16.gmra.mrb[0].mxu0 %v1352
        %v1460 = vpop.f32.mrb[0].mxu0
        %v1461 = vadd.f32 0.0, %v1460
        %v1462 = vpop.f32.mrb[0].mxu0
        %v1463 = vadd.f32 0.0, %v1462
        %v1464 = vpop.f32.mrb[0].mxu0
        %v1465 = vadd.f32 0.0, %v1464
        %v1466 = vpop.f32.mrb[0].mxu0
        %v1467 = vadd.f32 0.0, %v1466
        %1468 = vmatprep.mubr.bf16.mxu0 0
        %1469 = vmatmul.mubr.bf16.gmra.mrb[0].mxu0 %v1355
        %v1470 = vpop.f32.mrb[0].mxu0
        %v1471 = vadd.f32 0.0, %v1470
        %v1472 = vpop.f32.mrb[0].mxu0
        %v1473 = vadd.f32 0.0, %v1472
        %v1474 = vpop.f32.mrb[0].mxu0
        %v1475 = vadd.f32 0.0, %v1474
        %v1476 = vpop.f32.mrb[0].mxu0
        %v1477 = vadd.f32 0.0, %v1476
        %1478 = vdwg.mxu0
        %v1479 = vpack.c.bf16 %v1412, %v1408
        %v1480 = vpack.c.bf16 %v1414, %v1410
        %v1481 = vpack.c.bf16 %v1465, %v1461
        %v1482 = vpack.c.bf16 %v1467, %v1463
        %v1483 = vpack.c.bf16 %v1422, %v1418
        %v1484 = vpack.c.bf16 %v1424, %v1420
        %v1485 = vpack.c.bf16 %v1475, %v1471
        %v1486 = vpack.c.bf16 %v1477, %v1473
        %v1487 = vld [vmem:[#allocation7 + $0x428] sm:$0x1]
        %v1488 = vunpack.c.l.bf16 %v1487
        %v1489 = vld [vmem:[#allocation7 + $0x28] sm:$0xf]
        %v1490 = vld [vmem:[#allocation7 + $0x2c] sm:$0xf]
        %v1491 = vld [vmem:[#allocation7 + $0x30] sm:$0xf]
        %v1492 = vld [vmem:[#allocation7 + $0x34] sm:$0xf]
        %v1493 = vld [vmem:[#allocation7 + $0x38] sm:$0xf]
        %v1494 = vld [vmem:[#allocation7 + $0x3c] sm:$0xf]
        %v1495 = vld [vmem:[#allocation7 + $0x40] sm:$0xf]
        %v1496 = vld [vmem:[#allocation7 + $0x44] sm:$0xf]
        %v1497 = vld [vmem:[#allocation7 + $0x48] sm:$0xf]
        %v1498 = vld [vmem:[#allocation7 + $0x4c] sm:$0xf]
        %v1499 = vld [vmem:[#allocation7 + $0x50] sm:$0xf]
        %v1500 = vld [vmem:[#allocation7 + $0x54] sm:$0xf]
        %v1501 = vld [vmem:[#allocation7 + $0x58] sm:$0xf]
        %v1502 = vld [vmem:[#allocation7 + $0x5c] sm:$0xf]
        %v1503 = vld [vmem:[#allocation7 + $0x60] sm:$0xf]
        %v1504 = vld [vmem:[#allocation7 + $0x64] sm:$0xf]
        %v1505 = vld [vmem:[#allocation7 + $0x68] sm:$0xf]
        %v1506 = vld [vmem:[#allocation7 + $0x6c] sm:$0xf]
        %v1507 = vld [vmem:[#allocation7 + $0x70] sm:$0xf]
        %v1508 = vld [vmem:[#allocation7 + $0x74] sm:$0xf]
        %v1509 = vld [vmem:[#allocation7 + $0x78] sm:$0xf]
        %v1510 = vld [vmem:[#allocation7 + $0x7c] sm:$0xf]
        %v1511 = vld [vmem:[#allocation7 + $0x80] sm:$0xf]
        %v1512 = vld [vmem:[#allocation7 + $0x84] sm:$0xf]
        %v1513 = vld [vmem:[#allocation7 + $0x88] sm:$0xf]
        %v1514 = vld [vmem:[#allocation7 + $0x8c] sm:$0xf]
        %v1515 = vld [vmem:[#allocation7 + $0x90] sm:$0xf]
        %v1516 = vld [vmem:[#allocation7 + $0x94] sm:$0xf]
        %v1517 = vld [vmem:[#allocation7 + $0x98] sm:$0xf]
        %v1518 = vld [vmem:[#allocation7 + $0x9c] sm:$0xf]
        %v1519 = vld [vmem:[#allocation7 + $0xa0] sm:$0xf]
        %v1520 = vld [vmem:[#allocation7 + $0xa4] sm:$0xf]
        %v1521 = vld [vmem:[#allocation7 + $0xa8] sm:$0xf]
        %v1522 = vld [vmem:[#allocation7 + $0xac] sm:$0xf]
        %v1523 = vld [vmem:[#allocation7 + $0xb0] sm:$0xf]
        %v1524 = vld [vmem:[#allocation7 + $0xb4] sm:$0xf]
        %v1525 = vld [vmem:[#allocation7 + $0xb8] sm:$0xf]
        %v1526 = vld [vmem:[#allocation7 + $0xbc] sm:$0xf]
        %v1527 = vld [vmem:[#allocation7 + $0xc0] sm:$0xf]
        %v1528 = vld [vmem:[#allocation7 + $0xc4] sm:$0xf]
        %v1529 = vld [vmem:[#allocation7 + $0xc8] sm:$0xf]
        %v1530 = vld [vmem:[#allocation7 + $0xcc] sm:$0xf]
        %v1531 = vld [vmem:[#allocation7 + $0xd0] sm:$0xf]
        %v1532 = vld [vmem:[#allocation7 + $0xd4] sm:$0xf]
        %v1533 = vld [vmem:[#allocation7 + $0xd8] sm:$0xf]
        %v1534 = vld [vmem:[#allocation7 + $0xdc] sm:$0xf]
        %v1535 = vld [vmem:[#allocation7 + $0xe0] sm:$0xf]
        %v1536 = vld [vmem:[#allocation7 + $0xe4] sm:$0xf]
        %v1537 = vld [vmem:[#allocation7 + $0xe8] sm:$0xf]
        %v1538 = vld [vmem:[#allocation7 + $0xec] sm:$0xf]
        %v1539 = vld [vmem:[#allocation7 + $0xf0] sm:$0xf]
        %v1540 = vld [vmem:[#allocation7 + $0xf4] sm:$0xf]
        %v1541 = vld [vmem:[#allocation7 + $0xf8] sm:$0xf]
        %v1542 = vld [vmem:[#allocation7 + $0xfc] sm:$0xf]
        %v1543 = vld [vmem:[#allocation7 + $0x100] sm:$0xf]
        %v1544 = vld [vmem:[#allocation7 + $0x104] sm:$0xf]
        %v1545 = vld [vmem:[#allocation7 + $0x108] sm:$0xf]
        %v1546 = vld [vmem:[#allocation7 + $0x10c] sm:$0xf]
        %v1547 = vld [vmem:[#allocation7 + $0x110] sm:$0xf]
        %v1548 = vld [vmem:[#allocation7 + $0x114] sm:$0xf]
        %v1549 = vld [vmem:[#allocation7 + $0x118] sm:$0xf]
        %v1550 = vld [vmem:[#allocation7 + $0x11c] sm:$0xf]
        %v1551 = vld [vmem:[#allocation7 + $0x120] sm:$0xf]
        %v1552 = vld [vmem:[#allocation7 + $0x124] sm:$0xf]
        %v1617 = vunpack.c.l.b16 %v1489
        %v1618 = vunpack.c.l.b16 %v1490
        %v1619 = vunpack.c.l.b16 %v1491
        %v1620 = vunpack.c.l.b16 %v1492
        %v1621 = vunpack.c.l.b16 %v1493
        %v1622 = vunpack.c.l.b16 %v1494
        %v1623 = vunpack.c.l.b16 %v1495
        %v1624 = vunpack.c.l.b16 %v1496
        %v1625 = vunpack.c.l.b16 %v1497
        %v1626 = vunpack.c.l.b16 %v1498
        %v1627 = vunpack.c.l.b16 %v1499
        %v1628 = vunpack.c.l.b16 %v1500
        %v1629 = vunpack.c.l.b16 %v1501
        %v1630 = vunpack.c.l.b16 %v1502
        %v1631 = vunpack.c.l.b16 %v1503
        %v1632 = vunpack.c.l.b16 %v1504
        %v1633 = vunpack.c.l.b16 %v1505
        %v1634 = vunpack.c.l.b16 %v1506
        %v1635 = vunpack.c.l.b16 %v1507
        %v1636 = vunpack.c.l.b16 %v1508
        %v1637 = vunpack.c.l.b16 %v1509
        %v1638 = vunpack.c.l.b16 %v1510
        %v1639 = vunpack.c.l.b16 %v1511
        %v1640 = vunpack.c.l.b16 %v1512
        %v1641 = vunpack.c.l.b16 %v1513
        %v1642 = vunpack.c.l.b16 %v1514
        %v1643 = vunpack.c.l.b16 %v1515
        %v1644 = vunpack.c.l.b16 %v1516
        %v1645 = vunpack.c.l.b16 %v1517
        %v1646 = vunpack.c.l.b16 %v1518
        %v1647 = vunpack.c.l.b16 %v1519
        %v1648 = vunpack.c.l.b16 %v1520
        %v1649 = vunpack.c.l.b16 %v1521
        %v1650 = vunpack.c.l.b16 %v1522
        %v1651 = vunpack.c.l.b16 %v1523
        %v1652 = vunpack.c.l.b16 %v1524
        %v1653 = vunpack.c.l.b16 %v1525
        %v1654 = vunpack.c.l.b16 %v1526
        %v1655 = vunpack.c.l.b16 %v1527
        %v1656 = vunpack.c.l.b16 %v1528
        %v1657 = vunpack.c.l.b16 %v1529
        %v1658 = vunpack.c.l.b16 %v1530
        %v1659 = vunpack.c.l.b16 %v1531
        %v1660 = vunpack.c.l.b16 %v1532
        %v1661 = vunpack.c.l.b16 %v1533
        %v1662 = vunpack.c.l.b16 %v1534
        %v1663 = vunpack.c.l.b16 %v1535
        %v1664 = vunpack.c.l.b16 %v1536
        %v1665 = vunpack.c.l.b16 %v1537
        %v1666 = vunpack.c.l.b16 %v1538
        %v1667 = vunpack.c.l.b16 %v1539
        %v1668 = vunpack.c.l.b16 %v1540
        %v1669 = vunpack.c.l.b16 %v1541
        %v1670 = vunpack.c.l.b16 %v1542
        %v1671 = vunpack.c.l.b16 %v1543
        %v1672 = vunpack.c.l.b16 %v1544
        %v1673 = vunpack.c.l.b16 %v1545
        %v1674 = vunpack.c.l.b16 %v1546
        %v1675 = vunpack.c.l.b16 %v1547
        %v1676 = vunpack.c.l.b16 %v1548
        %v1677 = vunpack.c.l.b16 %v1549
        %v1678 = vunpack.c.l.b16 %v1550
        %v1679 = vunpack.c.l.b16 %v1551
        %v1680 = vunpack.c.l.b16 %v1552
        %v1681 = vpack.c.b16 %v1618, %v1617
        %v1682 = vpack.c.b16 %v1620, %v1619
        %v1683 = vpack.c.b16 %v1622, %v1621
        %v1684 = vpack.c.b16 %v1624, %v1623
        %v1685 = vpack.c.b16 %v1626, %v1625
        %v1686 = vpack.c.b16 %v1628, %v1627
        %v1687 = vpack.c.b16 %v1630, %v1629
        %v1688 = vpack.c.b16 %v1632, %v1631
        %v1689 = vpack.c.b16 %v1634, %v1633
        %v1690 = vpack.c.b16 %v1636, %v1635
        %v1691 = vpack.c.b16 %v1638, %v1637
        %v1692 = vpack.c.b16 %v1640, %v1639
        %v1693 = vpack.c.b16 %v1642, %v1641
        %v1694 = vpack.c.b16 %v1644, %v1643
        %v1695 = vpack.c.b16 %v1646, %v1645
        %v1696 = vpack.c.b16 %v1648, %v1647
        %v1697 = vpack.c.b16 %v1650, %v1649
        %v1698 = vpack.c.b16 %v1652, %v1651
        %v1699 = vpack.c.b16 %v1654, %v1653
        %v1700 = vpack.c.b16 %v1656, %v1655
        %v1701 = vpack.c.b16 %v1658, %v1657
        %v1702 = vpack.c.b16 %v1660, %v1659
        %v1703 = vpack.c.b16 %v1662, %v1661
        %v1704 = vpack.c.b16 %v1664, %v1663
        %v1705 = vpack.c.b16 %v1666, %v1665
        %v1706 = vpack.c.b16 %v1668, %v1667
        %v1707 = vpack.c.b16 %v1670, %v1669
        %v1708 = vpack.c.b16 %v1672, %v1671
        %v1709 = vpack.c.b16 %v1674, %v1673
        %v1710 = vpack.c.b16 %v1676, %v1675
        %v1711 = vpack.c.b16 %v1678, %v1677
        %v1712 = vpack.c.b16 %v1680, %v1679
        %1745 = vmatprep.subr.bf16.mxu0 0
        %1746 = vmatpush1.bf16.msra.mxu0 %v1681
        %1747 = vmatprep.subr.bf16.mxu0 0
        %1748 = vmatpush1.bf16.msra.mxu0 %v1682
        %1749 = vmatprep.subr.bf16.mxu0 0
        %1750 = vmatpush1.bf16.msra.mxu0 %v1683
        %1751 = vmatprep.subr.bf16.mxu0 0
        %1752 = vmatpush1.bf16.msra.mxu0 %v1684
        %1753 = vmatprep.subr.bf16.mxu0 0
        %1754 = vmatpush1.bf16.msra.mxu0 %v1685
        %1755 = vmatprep.subr.bf16.mxu0 0
        %1756 = vmatpush1.bf16.msra.mxu0 %v1686
        %1757 = vmatprep.subr.bf16.mxu0 0
        %1758 = vmatpush1.bf16.msra.mxu0 %v1687
        %1759 = vmatprep.subr.bf16.mxu0 0
        %1760 = vmatpush1.bf16.msra.mxu0 %v1688
        %1761 = vmatprep.subr.bf16.mxu0 0
        %1762 = vmatpush1.bf16.msra.mxu0 %v1689
        %1763 = vmatprep.subr.bf16.mxu0 0
        %1764 = vmatpush1.bf16.msra.mxu0 %v1690
        %1765 = vmatprep.subr.bf16.mxu0 0
        %1766 = vmatpush1.bf16.msra.mxu0 %v1691
        %1767 = vmatprep.subr.bf16.mxu0 0
        %1768 = vmatpush1.bf16.msra.mxu0 %v1692
        %1769 = vmatprep.subr.bf16.mxu0 0
        %1770 = vmatpush1.bf16.msra.mxu0 %v1693
        %1771 = vmatprep.subr.bf16.mxu0 0
        %1772 = vmatpush1.bf16.msra.mxu0 %v1694
        %1773 = vmatprep.subr.bf16.mxu0 0
        %1774 = vmatpush1.bf16.msra.mxu0 %v1695
        %1775 = vmatprep.subr.bf16.mxu0 0
        %1776 = vmatpush1.bf16.msra.mxu0 %v1696
        %1777 = vmatprep.mubr.bf16.mxu0 %v1480
        %1778 = vmatmul.mubr.bf16.gmra.mrb[0].mxu0 %v1479
        %v1779 = vpop.f32.mrb[0].mxu0
        %v1780 = vadd.f32 0.0, %v1779
        %v1781 = vpop.f32.mrb[0].mxu0
        %v1782 = vpop.f32.mrb[0].mxu0
        %v1783 = vadd.f32 0.0, %v1782
        %v1784 = vpop.f32.mrb[0].mxu0
        %1785 = vdwg.mxu0
        %1786 = vmatprep.subr.bf16.mxu0 0
        %1787 = vmatpush1.bf16.msra.mxu0 %v1697
        %1788 = vmatprep.subr.bf16.mxu0 0
        %1789 = vmatpush1.bf16.msra.mxu0 %v1698
        %1790 = vmatprep.subr.bf16.mxu0 0
        %1791 = vmatpush1.bf16.msra.mxu0 %v1699
        %1792 = vmatprep.subr.bf16.mxu0 0
        %1793 = vmatpush1.bf16.msra.mxu0 %v1700
        %1794 = vmatprep.subr.bf16.mxu0 0
        %1795 = vmatpush1.bf16.msra.mxu0 %v1701
        %1796 = vmatprep.subr.bf16.mxu0 0
        %1797 = vmatpush1.bf16.msra.mxu0 %v1702
        %1798 = vmatprep.subr.bf16.mxu0 0
        %1799 = vmatpush1.bf16.msra.mxu0 %v1703
        %1800 = vmatprep.subr.bf16.mxu0 0
        %1801 = vmatpush1.bf16.msra.mxu0 %v1704
        %1802 = vmatprep.subr.bf16.mxu0 0
        %1803 = vmatpush1.bf16.msra.mxu0 %v1705
        %1804 = vmatprep.subr.bf16.mxu0 0
        %1805 = vmatpush1.bf16.msra.mxu0 %v1706
        %1806 = vmatprep.subr.bf16.mxu0 0
        %1807 = vmatpush1.bf16.msra.mxu0 %v1707
        %1808 = vmatprep.subr.bf16.mxu0 0
        %1809 = vmatpush1.bf16.msra.mxu0 %v1708
        %1810 = vmatprep.subr.bf16.mxu0 0
        %1811 = vmatpush1.bf16.msra.mxu0 %v1709
        %1812 = vmatprep.subr.bf16.mxu0 0
        %1813 = vmatpush1.bf16.msra.mxu0 %v1710
        %1814 = vmatprep.subr.bf16.mxu0 0
        %1815 = vmatpush1.bf16.msra.mxu0 %v1711
        %1816 = vmatprep.subr.bf16.mxu0 0
        %1817 = vmatpush1.bf16.msra.mxu0 %v1712
        %1818 = vmatprep.mubr.bf16.mxu0 %v1482
        %1819 = vmatmul.mubr.bf16.gmra.mrb[0].mxu0 %v1481
        %v1820 = vpop.f32.mrb[0].mxu0
        %v1821 = vadd.f32 %v1780, %v1820
        %v1822 = vpop.f32.mrb[0].mxu0
        %v1823 = vpop.f32.mrb[0].mxu0
        %v1824 = vadd.f32 %v1783, %v1823
        %v1825 = vpop.f32.mrb[0].mxu0
        %1826 = vdwg.mxu0
        %v1827 = vlaneseq
        %v1828 = vshrl.u32 %v1827, 7
        %v1829 = vsub.s32 0, %v1828
        %v1830 = vrot.slane %v1488, %v1829
        %v1831 = vadd.f32 %v1830, %v1821
        %v1832 = vadd.f32 %v1830, %v1824
        %v1833 = vld [vmem:[#allocation7 + $0x228] sm:$0xf]
        %v1834 = vld [vmem:[#allocation7 + $0x22c] sm:$0xf]
        %v1835 = vld [vmem:[#allocation7 + $0x230] sm:$0xf]
        %v1836 = vld [vmem:[#allocation7 + $0x234] sm:$0xf]
        %v1837 = vld [vmem:[#allocation7 + $0x238] sm:$0xf]
        %v1838 = vld [vmem:[#allocation7 + $0x23c] sm:$0xf]
        %v1839 = vld [vmem:[#allocation7 + $0x240] sm:$0xf]
        %v1840 = vld [vmem:[#allocation7 + $0x244] sm:$0xf]
        %v1841 = vld [vmem:[#allocation7 + $0x248] sm:$0xf]
        %v1842 = vld [vmem:[#allocation7 + $0x24c] sm:$0xf]
        %v1843 = vld [vmem:[#allocation7 + $0x250] sm:$0xf]
        %v1844 = vld [vmem:[#allocation7 + $0x254] sm:$0xf]
        %v1845 = vld [vmem:[#allocation7 + $0x258] sm:$0xf]
        %v1846 = vld [vmem:[#allocation7 + $0x25c] sm:$0xf]
        %v1847 = vld [vmem:[#allocation7 + $0x260] sm:$0xf]
        %v1848 = vld [vmem:[#allocation7 + $0x264] sm:$0xf]
        %v1849 = vld [vmem:[#allocation7 + $0x268] sm:$0xf]
        %v1850 = vld [vmem:[#allocation7 + $0x26c] sm:$0xf]
        %v1851 = vld [vmem:[#allocation7 + $0x270] sm:$0xf]
        %v1852 = vld [vmem:[#allocation7 + $0x274] sm:$0xf]
        %v1853 = vld [vmem:[#allocation7 + $0x278] sm:$0xf]
        %v1854 = vld [vmem:[#allocation7 + $0x27c] sm:$0xf]
        %v1855 = vld [vmem:[#allocation7 + $0x280] sm:$0xf]
        %v1856 = vld [vmem:[#allocation7 + $0x284] sm:$0xf]
        %v1857 = vld [vmem:[#allocation7 + $0x288] sm:$0xf]
        %v1858 = vld [vmem:[#allocation7 + $0x28c] sm:$0xf]
        %v1859 = vld [vmem:[#allocation7 + $0x290] sm:$0xf]
        %v1860 = vld [vmem:[#allocation7 + $0x294] sm:$0xf]
        %v1861 = vld [vmem:[#allocation7 + $0x298] sm:$0xf]
        %v1862 = vld [vmem:[#allocation7 + $0x29c] sm:$0xf]
        %v1863 = vld [vmem:[#allocation7 + $0x2a0] sm:$0xf]
        %v1864 = vld [vmem:[#allocation7 + $0x2a4] sm:$0xf]
        %v1865 = vld [vmem:[#allocation7 + $0x2a8] sm:$0xf]
        %v1866 = vld [vmem:[#allocation7 + $0x2ac] sm:$0xf]
        %v1867 = vld [vmem:[#allocation7 + $0x2b0] sm:$0xf]
        %v1868 = vld [vmem:[#allocation7 + $0x2b4] sm:$0xf]
        %v1869 = vld [vmem:[#allocation7 + $0x2b8] sm:$0xf]
        %v1870 = vld [vmem:[#allocation7 + $0x2bc] sm:$0xf]
        %v1871 = vld [vmem:[#allocation7 + $0x2c0] sm:$0xf]
        %v1872 = vld [vmem:[#allocation7 + $0x2c4] sm:$0xf]
        %v1873 = vld [vmem:[#allocation7 + $0x2c8] sm:$0xf]
        %v1874 = vld [vmem:[#allocation7 + $0x2cc] sm:$0xf]
        %v1875 = vld [vmem:[#allocation7 + $0x2d0] sm:$0xf]
        %v1876 = vld [vmem:[#allocation7 + $0x2d4] sm:$0xf]
        %v1877 = vld [vmem:[#allocation7 + $0x2d8] sm:$0xf]
        %v1878 = vld [vmem:[#allocation7 + $0x2dc] sm:$0xf]
        %v1879 = vld [vmem:[#allocation7 + $0x2e0] sm:$0xf]
        %v1880 = vld [vmem:[#allocation7 + $0x2e4] sm:$0xf]
        %v1881 = vld [vmem:[#allocation7 + $0x2e8] sm:$0xf]
        %v1882 = vld [vmem:[#allocation7 + $0x2ec] sm:$0xf]
        %v1883 = vld [vmem:[#allocation7 + $0x2f0] sm:$0xf]
        %v1884 = vld [vmem:[#allocation7 + $0x2f4] sm:$0xf]
        %v1885 = vld [vmem:[#allocation7 + $0x2f8] sm:$0xf]
        %v1886 = vld [vmem:[#allocation7 + $0x2fc] sm:$0xf]
        %v1887 = vld [vmem:[#allocation7 + $0x300] sm:$0xf]
        %v1888 = vld [vmem:[#allocation7 + $0x304] sm:$0xf]
        %v1889 = vld [vmem:[#allocation7 + $0x308] sm:$0xf]
        %v1890 = vld [vmem:[#allocation7 + $0x30c] sm:$0xf]
        %v1891 = vld [vmem:[#allocation7 + $0x310] sm:$0xf]
        %v1892 = vld [vmem:[#allocation7 + $0x314] sm:$0xf]
        %v1893 = vld [vmem:[#allocation7 + $0x318] sm:$0xf]
        %v1894 = vld [vmem:[#allocation7 + $0x31c] sm:$0xf]
        %v1895 = vld [vmem:[#allocation7 + $0x320] sm:$0xf]
        %v1896 = vld [vmem:[#allocation7 + $0x324] sm:$0xf]
        %v1961 = vunpack.c.l.b16 %v1833
        %v1962 = vunpack.c.l.b16 %v1834
        %v1963 = vunpack.c.l.b16 %v1835
        %v1964 = vunpack.c.l.b16 %v1836
        %v1965 = vunpack.c.l.b16 %v1837
        %v1966 = vunpack.c.l.b16 %v1838
        %v1967 = vunpack.c.l.b16 %v1839
        %v1968 = vunpack.c.l.b16 %v1840
        %v1969 = vunpack.c.l.b16 %v1841
        %v1970 = vunpack.c.l.b16 %v1842
        %v1971 = vunpack.c.l.b16 %v1843
        %v1972 = vunpack.c.l.b16 %v1844
        %v1973 = vunpack.c.l.b16 %v1845
        %v1974 = vunpack.c.l.b16 %v1846
        %v1975 = vunpack.c.l.b16 %v1847
        %v1976 = vunpack.c.l.b16 %v1848
        %v1977 = vunpack.c.l.b16 %v1849
        %v1978 = vunpack.c.l.b16 %v1850
        %v1979 = vunpack.c.l.b16 %v1851
        %v1980 = vunpack.c.l.b16 %v1852
        %v1981 = vunpack.c.l.b16 %v1853
        %v1982 = vunpack.c.l.b16 %v1854
        %v1983 = vunpack.c.l.b16 %v1855
        %v1984 = vunpack.c.l.b16 %v1856
        %v1985 = vunpack.c.l.b16 %v1857
        %v1986 = vunpack.c.l.b16 %v1858
        %v1987 = vunpack.c.l.b16 %v1859
        %v1988 = vunpack.c.l.b16 %v1860
        %v1989 = vunpack.c.l.b16 %v1861
        %v1990 = vunpack.c.l.b16 %v1862
        %v1991 = vunpack.c.l.b16 %v1863
        %v1992 = vunpack.c.l.b16 %v1864
        %v1993 = vunpack.c.l.b16 %v1865
        %v1994 = vunpack.c.l.b16 %v1866
        %v1995 = vunpack.c.l.b16 %v1867
        %v1996 = vunpack.c.l.b16 %v1868
        %v1997 = vunpack.c.l.b16 %v1869
        %v1998 = vunpack.c.l.b16 %v1870
        %v1999 = vunpack.c.l.b16 %v1871
        %v2000 = vunpack.c.l.b16 %v1872
        %v2001 = vunpack.c.l.b16 %v1873
        %v2002 = vunpack.c.l.b16 %v1874
        %v2003 = vunpack.c.l.b16 %v1875
        %v2004 = vunpack.c.l.b16 %v1876
        %v2005 = vunpack.c.l.b16 %v1877
        %v2006 = vunpack.c.l.b16 %v1878
        %v2007 = vunpack.c.l.b16 %v1879
        %v2008 = vunpack.c.l.b16 %v1880
        %v2009 = vunpack.c.l.b16 %v1881
        %v2010 = vunpack.c.l.b16 %v1882
        %v2011 = vunpack.c.l.b16 %v1883
        %v2012 = vunpack.c.l.b16 %v1884
        %v2013 = vunpack.c.l.b16 %v1885
        %v2014 = vunpack.c.l.b16 %v1886
        %v2015 = vunpack.c.l.b16 %v1887
        %v2016 = vunpack.c.l.b16 %v1888
        %v2017 = vunpack.c.l.b16 %v1889
        %v2018 = vunpack.c.l.b16 %v1890
        %v2019 = vunpack.c.l.b16 %v1891
        %v2020 = vunpack.c.l.b16 %v1892
        %v2021 = vunpack.c.l.b16 %v1893
        %v2022 = vunpack.c.l.b16 %v1894
        %v2023 = vunpack.c.l.b16 %v1895
        %v2024 = vunpack.c.l.b16 %v1896
        %v2025 = vpack.c.b16 %v1962, %v1961
        %v2026 = vpack.c.b16 %v1964, %v1963
        %v2027 = vpack.c.b16 %v1966, %v1965
        %v2028 = vpack.c.b16 %v1968, %v1967
        %v2029 = vpack.c.b16 %v1970, %v1969
        %v2030 = vpack.c.b16 %v1972, %v1971
        %v2031 = vpack.c.b16 %v1974, %v1973
        %v2032 = vpack.c.b16 %v1976, %v1975
        %v2033 = vpack.c.b16 %v1978, %v1977
        %v2034 = vpack.c.b16 %v1980, %v1979
        %v2035 = vpack.c.b16 %v1982, %v1981
        %v2036 = vpack.c.b16 %v1984, %v1983
        %v2037 = vpack.c.b16 %v1986, %v1985
        %v2038 = vpack.c.b16 %v1988, %v1987
        %v2039 = vpack.c.b16 %v1990, %v1989
        %v2040 = vpack.c.b16 %v1992, %v1991
        %v2041 = vpack.c.b16 %v1994, %v1993
        %v2042 = vpack.c.b16 %v1996, %v1995
        %v2043 = vpack.c.b16 %v1998, %v1997
        %v2044 = vpack.c.b16 %v2000, %v1999
        %v2045 = vpack.c.b16 %v2002, %v2001
        %v2046 = vpack.c.b16 %v2004, %v2003
        %v2047 = vpack.c.b16 %v2006, %v2005
        %v2048 = vpack.c.b16 %v2008, %v2007
        %v2049 = vpack.c.b16 %v2010, %v2009
        %v2050 = vpack.c.b16 %v2012, %v2011
        %v2051 = vpack.c.b16 %v2014, %v2013
        %v2052 = vpack.c.b16 %v2016, %v2015
        %v2053 = vpack.c.b16 %v2018, %v2017
        %v2054 = vpack.c.b16 %v2020, %v2019
        %v2055 = vpack.c.b16 %v2022, %v2021
        %v2056 = vpack.c.b16 %v2024, %v2023
        %2089 = vmatprep.subr.bf16.mxu0 0
        %2090 = vmatpush1.bf16.msra.mxu0 %v2025
        %2091 = vmatprep.subr.bf16.mxu0 0
        %2092 = vmatpush1.bf16.msra.mxu0 %v2026
        %2093 = vmatprep.subr.bf16.mxu0 0
        %2094 = vmatpush1.bf16.msra.mxu0 %v2027
        %2095 = vmatprep.subr.bf16.mxu0 0
        %2096 = vmatpush1.bf16.msra.mxu0 %v2028
        %2097 = vmatprep.subr.bf16.mxu0 0
        %2098 = vmatpush1.bf16.msra.mxu0 %v2029
        %2099 = vmatprep.subr.bf16.mxu0 0
        %2100 = vmatpush1.bf16.msra.mxu0 %v2030
        %2101 = vmatprep.subr.bf16.mxu0 0
        %2102 = vmatpush1.bf16.msra.mxu0 %v2031
        %2103 = vmatprep.subr.bf16.mxu0 0
        %2104 = vmatpush1.bf16.msra.mxu0 %v2032
        %2105 = vmatprep.subr.bf16.mxu0 0
        %2106 = vmatpush1.bf16.msra.mxu0 %v2033
        %2107 = vmatprep.subr.bf16.mxu0 0
        %2108 = vmatpush1.bf16.msra.mxu0 %v2034
        %2109 = vmatprep.subr.bf16.mxu0 0
        %2110 = vmatpush1.bf16.msra.mxu0 %v2035
        %2111 = vmatprep.subr.bf16.mxu0 0
        %2112 = vmatpush1.bf16.msra.mxu0 %v2036
        %2113 = vmatprep.subr.bf16.mxu0 0
        %2114 = vmatpush1.bf16.msra.mxu0 %v2037
        %2115 = vmatprep.subr.bf16.mxu0 0
        %2116 = vmatpush1.bf16.msra.mxu0 %v2038
        %2117 = vmatprep.subr.bf16.mxu0 0
        %2118 = vmatpush1.bf16.msra.mxu0 %v2039
        %2119 = vmatprep.subr.bf16.mxu0 0
        %2120 = vmatpush1.bf16.msra.mxu0 %v2040
        %2121 = vmatprep.mubr.bf16.mxu0 %v1484
        %2122 = vmatmul.mubr.bf16.gmra.mrb[0].mxu0 %v1483
        %v2123 = vpop.f32.mrb[0].mxu0
        %v2124 = vadd.f32 0.0, %v2123
        %v2125 = vpop.f32.mrb[0].mxu0
        %v2126 = vpop.f32.mrb[0].mxu0
        %v2127 = vadd.f32 0.0, %v2126
        %v2128 = vpop.f32.mrb[0].mxu0
        %2129 = vdwg.mxu0
        %2130 = vmatprep.subr.bf16.mxu0 0
        %2131 = vmatpush1.bf16.msra.mxu0 %v2041
        %2132 = vmatprep.subr.bf16.mxu0 0
        %2133 = vmatpush1.bf16.msra.mxu0 %v2042
        %2134 = vmatprep.subr.bf16.mxu0 0
        %2135 = vmatpush1.bf16.msra.mxu0 %v2043
        %2136 = vmatprep.subr.bf16.mxu0 0
        %2137 = vmatpush1.bf16.msra.mxu0 %v2044
        %2138 = vmatprep.subr.bf16.mxu0 0
        %2139 = vmatpush1.bf16.msra.mxu0 %v2045
        %2140 = vmatprep.subr.bf16.mxu0 0
        %2141 = vmatpush1.bf16.msra.mxu0 %v2046
        %2142 = vmatprep.subr.bf16.mxu0 0
        %2143 = vmatpush1.bf16.msra.mxu0 %v2047
        %2144 = vmatprep.subr.bf16.mxu0 0
        %2145 = vmatpush1.bf16.msra.mxu0 %v2048
        %2146 = vmatprep.subr.bf16.mxu0 0
        %2147 = vmatpush1.bf16.msra.mxu0 %v2049
        %2148 = vmatprep.subr.bf16.mxu0 0
        %2149 = vmatpush1.bf16.msra.mxu0 %v2050
        %2150 = vmatprep.subr.bf16.mxu0 0
        %2151 = vmatpush1.bf16.msra.mxu0 %v2051
        %2152 = vmatprep.subr.bf16.mxu0 0
        %2153 = vmatpush1.bf16.msra.mxu0 %v2052
        %2154 = vmatprep.subr.bf16.mxu0 0
        %2155 = vmatpush1.bf16.msra.mxu0 %v2053
        %2156 = vmatprep.subr.bf16.mxu0 0
        %2157 = vmatpush1.bf16.msra.mxu0 %v2054
        %2158 = vmatprep.subr.bf16.mxu0 0
        %2159 = vmatpush1.bf16.msra.mxu0 %v2055
        %2160 = vmatprep.subr.bf16.mxu0 0
        %2161 = vmatpush1.bf16.msra.mxu0 %v2056
        %2162 = vmatprep.mubr.bf16.mxu0 %v1486
        %2163 = vmatmul.mubr.bf16.gmra.mrb[0].mxu0 %v1485
        %v2164 = vpop.f32.mrb[0].mxu0
        %v2165 = vadd.f32 %v2124, %v2164
        %v2166 = vpop.f32.mrb[0].mxu0
        %v2167 = vpop.f32.mrb[0].mxu0
        %v2168 = vadd.f32 %v2127, %v2167
        %v2169 = vpop.f32.mrb[0].mxu0
        %2170 = vdwg.mxu0
        %v2171 = vadd.f32 %v1831, %v2165
        %v2172 = vadd.f32 %v1832, %v2168
        %v2173 = vmax.f32 %v2171, 0.0
        %v2174 = vmax.f32 %v2172, 0.0
        %v2175 = vld [vmem:[#allocation7 + $0x128] sm:$0xf]
        %v2176 = vld [vmem:[#allocation7 + $0x12c] sm:$0xf]
        %v2177 = vld [vmem:[#allocation7 + $0x130] sm:$0xf]
        %v2178 = vld [vmem:[#allocation7 + $0x134] sm:$0xf]
        %v2179 = vld [vmem:[#allocation7 + $0x138] sm:$0xf]
        %v2180 = vld [vmem:[#allocation7 + $0x13c] sm:$0xf]
        %v2181 = vld [vmem:[#allocation7 + $0x140] sm:$0xf]
        %v2182 = vld [vmem:[#allocation7 + $0x144] sm:$0xf]
        %v2183 = vld [vmem:[#allocation7 + $0x148] sm:$0xf]
        %v2184 = vld [vmem:[#allocation7 + $0x14c] sm:$0xf]
        %v2185 = vld [vmem:[#allocation7 + $0x150] sm:$0xf]
        %v2186 = vld [vmem:[#allocation7 + $0x154] sm:$0xf]
        %v2187 = vld [vmem:[#allocation7 + $0x158] sm:$0xf]
        %v2188 = vld [vmem:[#allocation7 + $0x15c] sm:$0xf]
        %v2189 = vld [vmem:[#allocation7 + $0x160] sm:$0xf]
        %v2190 = vld [vmem:[#allocation7 + $0x164] sm:$0xf]
        %v2191 = vld [vmem:[#allocation7 + $0x168] sm:$0xf]
        %v2192 = vld [vmem:[#allocation7 + $0x16c] sm:$0xf]
        %v2193 = vld [vmem:[#allocation7 + $0x170] sm:$0xf]
        %v2194 = vld [vmem:[#allocation7 + $0x174] sm:$0xf]
        %v2195 = vld [vmem:[#allocation7 + $0x178] sm:$0xf]
        %v2196 = vld [vmem:[#allocation7 + $0x17c] sm:$0xf]
        %v2197 = vld [vmem:[#allocation7 + $0x180] sm:$0xf]
        %v2198 = vld [vmem:[#allocation7 + $0x184] sm:$0xf]
        %v2199 = vld [vmem:[#allocation7 + $0x188] sm:$0xf]
        %v2200 = vld [vmem:[#allocation7 + $0x18c] sm:$0xf]
        %v2201 = vld [vmem:[#allocation7 + $0x190] sm:$0xf]
        %v2202 = vld [vmem:[#allocation7 + $0x194] sm:$0xf]
        %v2203 = vld [vmem:[#allocation7 + $0x198] sm:$0xf]
        %v2204 = vld [vmem:[#allocation7 + $0x19c] sm:$0xf]
        %v2205 = vld [vmem:[#allocation7 + $0x1a0] sm:$0xf]
        %v2206 = vld [vmem:[#allocation7 + $0x1a4] sm:$0xf]
        %v2207 = vld [vmem:[#allocation7 + $0x1a8] sm:$0xf]
        %v2208 = vld [vmem:[#allocation7 + $0x1ac] sm:$0xf]
        %v2209 = vld [vmem:[#allocation7 + $0x1b0] sm:$0xf]
        %v2210 = vld [vmem:[#allocation7 + $0x1b4] sm:$0xf]
        %v2211 = vld [vmem:[#allocation7 + $0x1b8] sm:$0xf]
        %v2212 = vld [vmem:[#allocation7 + $0x1bc] sm:$0xf]
        %v2213 = vld [vmem:[#allocation7 + $0x1c0] sm:$0xf]
        %v2214 = vld [vmem:[#allocation7 + $0x1c4] sm:$0xf]
        %v2215 = vld [vmem:[#allocation7 + $0x1c8] sm:$0xf]
        %v2216 = vld [vmem:[#allocation7 + $0x1cc] sm:$0xf]
        %v2217 = vld [vmem:[#allocation7 + $0x1d0] sm:$0xf]
        %v2218 = vld [vmem:[#allocation7 + $0x1d4] sm:$0xf]
        %v2219 = vld [vmem:[#allocation7 + $0x1d8] sm:$0xf]
        %v2220 = vld [vmem:[#allocation7 + $0x1dc] sm:$0xf]
        %v2221 = vld [vmem:[#allocation7 + $0x1e0] sm:$0xf]
        %v2222 = vld [vmem:[#allocation7 + $0x1e4] sm:$0xf]
        %v2223 = vld [vmem:[#allocation7 + $0x1e8] sm:$0xf]
        %v2224 = vld [vmem:[#allocation7 + $0x1ec] sm:$0xf]
        %v2225 = vld [vmem:[#allocation7 + $0x1f0] sm:$0xf]
        %v2226 = vld [vmem:[#allocation7 + $0x1f4] sm:$0xf]
        %v2227 = vld [vmem:[#allocation7 + $0x1f8] sm:$0xf]
        %v2228 = vld [vmem:[#allocation7 + $0x1fc] sm:$0xf]
        %v2229 = vld [vmem:[#allocation7 + $0x200] sm:$0xf]
        %v2230 = vld [vmem:[#allocation7 + $0x204] sm:$0xf]
        %v2231 = vld [vmem:[#allocation7 + $0x208] sm:$0xf]
        %v2232 = vld [vmem:[#allocation7 + $0x20c] sm:$0xf]
        %v2233 = vld [vmem:[#allocation7 + $0x210] sm:$0xf]
        %v2234 = vld [vmem:[#allocation7 + $0x214] sm:$0xf]
        %v2235 = vld [vmem:[#allocation7 + $0x218] sm:$0xf]
        %v2236 = vld [vmem:[#allocation7 + $0x21c] sm:$0xf]
        %v2237 = vld [vmem:[#allocation7 + $0x220] sm:$0xf]
        %v2238 = vld [vmem:[#allocation7 + $0x224] sm:$0xf]
        %v2303 = vunpack.c.l.b16 %v2175
        %v2304 = vunpack.c.l.b16 %v2176
        %v2305 = vunpack.c.l.b16 %v2177
        %v2306 = vunpack.c.l.b16 %v2178
        %v2307 = vunpack.c.l.b16 %v2179
        %v2308 = vunpack.c.l.b16 %v2180
        %v2309 = vunpack.c.l.b16 %v2181
        %v2310 = vunpack.c.l.b16 %v2182
        %v2311 = vunpack.c.l.b16 %v2183
        %v2312 = vunpack.c.l.b16 %v2184
        %v2313 = vunpack.c.l.b16 %v2185
        %v2314 = vunpack.c.l.b16 %v2186
        %v2315 = vunpack.c.l.b16 %v2187
        %v2316 = vunpack.c.l.b16 %v2188
        %v2317 = vunpack.c.l.b16 %v2189
        %v2318 = vunpack.c.l.b16 %v2190
        %v2319 = vunpack.c.l.b16 %v2191
        %v2320 = vunpack.c.l.b16 %v2192
        %v2321 = vunpack.c.l.b16 %v2193
        %v2322 = vunpack.c.l.b16 %v2194
        %v2323 = vunpack.c.l.b16 %v2195
        %v2324 = vunpack.c.l.b16 %v2196
        %v2325 = vunpack.c.l.b16 %v2197
        %v2326 = vunpack.c.l.b16 %v2198
        %v2327 = vunpack.c.l.b16 %v2199
        %v2328 = vunpack.c.l.b16 %v2200
        %v2329 = vunpack.c.l.b16 %v2201
        %v2330 = vunpack.c.l.b16 %v2202
        %v2331 = vunpack.c.l.b16 %v2203
        %v2332 = vunpack.c.l.b16 %v2204
        %v2333 = vunpack.c.l.b16 %v2205
        %v2334 = vunpack.c.l.b16 %v2206
        %v2335 = vunpack.c.l.b16 %v2207
        %v2336 = vunpack.c.l.b16 %v2208
        %v2337 = vunpack.c.l.b16 %v2209
        %v2338 = vunpack.c.l.b16 %v2210
        %v2339 = vunpack.c.l.b16 %v2211
        %v2340 = vunpack.c.l.b16 %v2212
        %v2341 = vunpack.c.l.b16 %v2213
        %v2342 = vunpack.c.l.b16 %v2214
        %v2343 = vunpack.c.l.b16 %v2215
        %v2344 = vunpack.c.l.b16 %v2216
        %v2345 = vunpack.c.l.b16 %v2217
        %v2346 = vunpack.c.l.b16 %v2218
        %v2347 = vunpack.c.l.b16 %v2219
        %v2348 = vunpack.c.l.b16 %v2220
        %v2349 = vunpack.c.l.b16 %v2221
        %v2350 = vunpack.c.l.b16 %v2222
        %v2351 = vunpack.c.l.b16 %v2223
        %v2352 = vunpack.c.l.b16 %v2224
        %v2353 = vunpack.c.l.b16 %v2225
        %v2354 = vunpack.c.l.b16 %v2226
        %v2355 = vunpack.c.l.b16 %v2227
        %v2356 = vunpack.c.l.b16 %v2228
        %v2357 = vunpack.c.l.b16 %v2229
        %v2358 = vunpack.c.l.b16 %v2230
        %v2359 = vunpack.c.l.b16 %v2231
        %v2360 = vunpack.c.l.b16 %v2232
        %v2361 = vunpack.c.l.b16 %v2233
        %v2362 = vunpack.c.l.b16 %v2234
        %v2363 = vunpack.c.l.b16 %v2235
        %v2364 = vunpack.c.l.b16 %v2236
        %v2365 = vunpack.c.l.b16 %v2237
        %v2366 = vunpack.c.l.b16 %v2238
        %v2367 = vpack.c.b16 %v2304, %v2303
        %v2368 = vpack.c.b16 %v2306, %v2305
        %v2369 = vpack.c.b16 %v2308, %v2307
        %v2370 = vpack.c.b16 %v2310, %v2309
        %v2371 = vpack.c.b16 %v2312, %v2311
        %v2372 = vpack.c.b16 %v2314, %v2313
        %v2373 = vpack.c.b16 %v2316, %v2315
        %v2374 = vpack.c.b16 %v2318, %v2317
        %v2375 = vpack.c.b16 %v2320, %v2319
        %v2376 = vpack.c.b16 %v2322, %v2321
        %v2377 = vpack.c.b16 %v2324, %v2323
        %v2378 = vpack.c.b16 %v2326, %v2325
        %v2379 = vpack.c.b16 %v2328, %v2327
        %v2380 = vpack.c.b16 %v2330, %v2329
        %v2381 = vpack.c.b16 %v2332, %v2331
        %v2382 = vpack.c.b16 %v2334, %v2333
        %v2383 = vpack.c.b16 %v2336, %v2335
        %v2384 = vpack.c.b16 %v2338, %v2337
        %v2385 = vpack.c.b16 %v2340, %v2339
        %v2386 = vpack.c.b16 %v2342, %v2341
        %v2387 = vpack.c.b16 %v2344, %v2343
        %v2388 = vpack.c.b16 %v2346, %v2345
        %v2389 = vpack.c.b16 %v2348, %v2347
        %v2390 = vpack.c.b16 %v2350, %v2349
        %v2391 = vpack.c.b16 %v2352, %v2351
        %v2392 = vpack.c.b16 %v2354, %v2353
        %v2393 = vpack.c.b16 %v2356, %v2355
        %v2394 = vpack.c.b16 %v2358, %v2357
        %v2395 = vpack.c.b16 %v2360, %v2359
        %v2396 = vpack.c.b16 %v2362, %v2361
        %v2397 = vpack.c.b16 %v2364, %v2363
        %v2398 = vpack.c.b16 %v2366, %v2365
        %2431 = vmatprep.subr.bf16.mxu0 0
        %2432 = vmatpush1.bf16.msra.mxu0 %v2367
        %2433 = vmatprep.subr.bf16.mxu0 0
        %2434 = vmatpush1.bf16.msra.mxu0 %v2368
        %2435 = vmatprep.subr.bf16.mxu0 0
        %2436 = vmatpush1.bf16.msra.mxu0 %v2369
        %2437 = vmatprep.subr.bf16.mxu0 0
        %2438 = vmatpush1.bf16.msra.mxu0 %v2370
        %2439 = vmatprep.subr.bf16.mxu0 0
        %2440 = vmatpush1.bf16.msra.mxu0 %v2371
        %2441 = vmatprep.subr.bf16.mxu0 0
        %2442 = vmatpush1.bf16.msra.mxu0 %v2372
        %2443 = vmatprep.subr.bf16.mxu0 0
        %2444 = vmatpush1.bf16.msra.mxu0 %v2373
        %2445 = vmatprep.subr.bf16.mxu0 0
        %2446 = vmatpush1.bf16.msra.mxu0 %v2374
        %2447 = vmatprep.subr.bf16.mxu0 0
        %2448 = vmatpush1.bf16.msra.mxu0 %v2375
        %2449 = vmatprep.subr.bf16.mxu0 0
        %2450 = vmatpush1.bf16.msra.mxu0 %v2376
        %2451 = vmatprep.subr.bf16.mxu0 0
        %2452 = vmatpush1.bf16.msra.mxu0 %v2377
        %2453 = vmatprep.subr.bf16.mxu0 0
        %2454 = vmatpush1.bf16.msra.mxu0 %v2378
        %2455 = vmatprep.subr.bf16.mxu0 0
        %2456 = vmatpush1.bf16.msra.mxu0 %v2379
        %2457 = vmatprep.subr.bf16.mxu0 0
        %2458 = vmatpush1.bf16.msra.mxu0 %v2380
        %2459 = vmatprep.subr.bf16.mxu0 0
        %2460 = vmatpush1.bf16.msra.mxu0 %v2381
        %2461 = vmatprep.subr.bf16.mxu0 0
        %2462 = vmatpush1.bf16.msra.mxu0 %v2382
        %2463 = vmatprep.mubr.bf16.mxu0 %v1480
        %2464 = vmatmul.mubr.bf16.gmra.mrb[0].mxu0 %v1479
        %v2465 = vpop.f32.mrb[0].mxu0
        %v2466 = vadd.f32 0.0, %v2465
        %v2467 = vpop.f32.mrb[0].mxu0
        %v2468 = vpop.f32.mrb[0].mxu0
        %v2469 = vadd.f32 0.0, %v2468
        %v2470 = vpop.f32.mrb[0].mxu0
        %2471 = vdwg.mxu0
        %2472 = vmatprep.subr.bf16.mxu0 0
        %2473 = vmatpush1.bf16.msra.mxu0 %v2383
        %2474 = vmatprep.subr.bf16.mxu0 0
        %2475 = vmatpush1.bf16.msra.mxu0 %v2384
        %2476 = vmatprep.subr.bf16.mxu0 0
        %2477 = vmatpush1.bf16.msra.mxu0 %v2385
        %2478 = vmatprep.subr.bf16.mxu0 0
        %2479 = vmatpush1.bf16.msra.mxu0 %v2386
        %2480 = vmatprep.subr.bf16.mxu0 0
        %2481 = vmatpush1.bf16.msra.mxu0 %v2387
        %2482 = vmatprep.subr.bf16.mxu0 0
        %2483 = vmatpush1.bf16.msra.mxu0 %v2388
        %2484 = vmatprep.subr.bf16.mxu0 0
        %2485 = vmatpush1.bf16.msra.mxu0 %v2389
        %2486 = vmatprep.subr.bf16.mxu0 0
        %2487 = vmatpush1.bf16.msra.mxu0 %v2390
        %2488 = vmatprep.subr.bf16.mxu0 0
        %2489 = vmatpush1.bf16.msra.mxu0 %v2391
        %2490 = vmatprep.subr.bf16.mxu0 0
        %2491 = vmatpush1.bf16.msra.mxu0 %v2392
        %2492 = vmatprep.subr.bf16.mxu0 0
        %2493 = vmatpush1.bf16.msra.mxu0 %v2393
        %2494 = vmatprep.subr.bf16.mxu0 0
        %2495 = vmatpush1.bf16.msra.mxu0 %v2394
        %2496 = vmatprep.subr.bf16.mxu0 0
        %2497 = vmatpush1.bf16.msra.mxu0 %v2395
        %2498 = vmatprep.subr.bf16.mxu0 0
        %2499 = vmatpush1.bf16.msra.mxu0 %v2396
        %2500 = vmatprep.subr.bf16.mxu0 0
        %2501 = vmatpush1.bf16.msra.mxu0 %v2397
        %2502 = vmatprep.subr.bf16.mxu0 0
        %2503 = vmatpush1.bf16.msra.mxu0 %v2398
        %2504 = vmatprep.mubr.bf16.mxu0 %v1482
        %2505 = vmatmul.mubr.bf16.gmra.mrb[0].mxu0 %v1481
        %v2506 = vpop.f32.mrb[0].mxu0
        %v2507 = vadd.f32 %v2466, %v2506
        %v2508 = vpop.f32.mrb[0].mxu0
        %v2509 = vpop.f32.mrb[0].mxu0
        %v2510 = vadd.f32 %v2469, %v2509
        %v2511 = vpop.f32.mrb[0].mxu0
        %2512 = vdwg.mxu0
        %v2513 = vadd.f32 %v1830, %v2507
        %v2514 = vadd.f32 %v1830, %v2510
        %v2515 = vld [vmem:[#allocation7 + $0x328] sm:$0xf]
        %v2516 = vld [vmem:[#allocation7 + $0x32c] sm:$0xf]
        %v2517 = vld [vmem:[#allocation7 + $0x330] sm:$0xf]
        %v2518 = vld [vmem:[#allocation7 + $0x334] sm:$0xf]
        %v2519 = vld [vmem:[#allocation7 + $0x338] sm:$0xf]
        %v2520 = vld [vmem:[#allocation7 + $0x33c] sm:$0xf]
        %v2521 = vld [vmem:[#allocation7 + $0x340] sm:$0xf]
        %v2522 = vld [vmem:[#allocation7 + $0x344] sm:$0xf]
        %v2523 = vld [vmem:[#allocation7 + $0x348] sm:$0xf]
        %v2524 = vld [vmem:[#allocation7 + $0x34c] sm:$0xf]
        %v2525 = vld [vmem:[#allocation7 + $0x350] sm:$0xf]
        %v2526 = vld [vmem:[#allocation7 + $0x354] sm:$0xf]
        %v2527 = vld [vmem:[#allocation7 + $0x358] sm:$0xf]
        %v2528 = vld [vmem:[#allocation7 + $0x35c] sm:$0xf]
        %v2529 = vld [vmem:[#allocation7 + $0x360] sm:$0xf]
        %v2530 = vld [vmem:[#allocation7 + $0x364] sm:$0xf]
        %v2531 = vld [vmem:[#allocation7 + $0x368] sm:$0xf]
        %v2532 = vld [vmem:[#allocation7 + $0x36c] sm:$0xf]
        %v2533 = vld [vmem:[#allocation7 + $0x370] sm:$0xf]
        %v2534 = vld [vmem:[#allocation7 + $0x374] sm:$0xf]
        %v2535 = vld [vmem:[#allocation7 + $0x378] sm:$0xf]
        %v2536 = vld [vmem:[#allocation7 + $0x37c] sm:$0xf]
        %v2537 = vld [vmem:[#allocation7 + $0x380] sm:$0xf]
        %v2538 = vld [vmem:[#allocation7 + $0x384] sm:$0xf]
        %v2539 = vld [vmem:[#allocation7 + $0x388] sm:$0xf]
        %v2540 = vld [vmem:[#allocation7 + $0x38c] sm:$0xf]
        %v2541 = vld [vmem:[#allocation7 + $0x390] sm:$0xf]
        %v2542 = vld [vmem:[#allocation7 + $0x394] sm:$0xf]
        %v2543 = vld [vmem:[#allocation7 + $0x398] sm:$0xf]
        %v2544 = vld [vmem:[#allocation7 + $0x39c] sm:$0xf]
        %v2545 = vld [vmem:[#allocation7 + $0x3a0] sm:$0xf]
        %v2546 = vld [vmem:[#allocation7 + $0x3a4] sm:$0xf]
        %v2547 = vld [vmem:[#allocation7 + $0x3a8] sm:$0xf]
        %v2548 = vld [vmem:[#allocation7 + $0x3ac] sm:$0xf]
        %v2549 = vld [vmem:[#allocation7 + $0x3b0] sm:$0xf]
        %v2550 = vld [vmem:[#allocation7 + $0x3b4] sm:$0xf]
        %v2551 = vld [vmem:[#allocation7 + $0x3b8] sm:$0xf]
        %v2552 = vld [vmem:[#allocation7 + $0x3bc] sm:$0xf]
        %v2553 = vld [vmem:[#allocation7 + $0x3c0] sm:$0xf]
        %v2554 = vld [vmem:[#allocation7 + $0x3c4] sm:$0xf]
        %v2555 = vld [vmem:[#allocation7 + $0x3c8] sm:$0xf]
        %v2556 = vld [vmem:[#allocation7 + $0x3cc] sm:$0xf]
        %v2557 = vld [vmem:[#allocation7 + $0x3d0] sm:$0xf]
        %v2558 = vld [vmem:[#allocation7 + $0x3d4] sm:$0xf]
        %v2559 = vld [vmem:[#allocation7 + $0x3d8] sm:$0xf]
        %v2560 = vld [vmem:[#allocation7 + $0x3dc] sm:$0xf]
        %v2561 = vld [vmem:[#allocation7 + $0x3e0] sm:$0xf]
        %v2562 = vld [vmem:[#allocation7 + $0x3e4] sm:$0xf]
        %v2563 = vld [vmem:[#allocation7 + $0x3e8] sm:$0xf]
        %v2564 = vld [vmem:[#allocation7 + $0x3ec] sm:$0xf]
        %v2565 = vld [vmem:[#allocation7 + $0x3f0] sm:$0xf]
        %v2566 = vld [vmem:[#allocation7 + $0x3f4] sm:$0xf]
        %v2567 = vld [vmem:[#allocation7 + $0x3f8] sm:$0xf]
        %v2568 = vld [vmem:[#allocation7 + $0x3fc] sm:$0xf]
        %v2569 = vld [vmem:[#allocation7 + $0x400] sm:$0xf]
        %v2570 = vld [vmem:[#allocation7 + $0x404] sm:$0xf]
        %v2571 = vld [vmem:[#allocation7 + $0x408] sm:$0xf]
        %v2572 = vld [vmem:[#allocation7 + $0x40c] sm:$0xf]
        %v2573 = vld [vmem:[#allocation7 + $0x410] sm:$0xf]
        %v2574 = vld [vmem:[#allocation7 + $0x414] sm:$0xf]
        %v2575 = vld [vmem:[#allocation7 + $0x418] sm:$0xf]
        %v2576 = vld [vmem:[#allocation7 + $0x41c] sm:$0xf]
        %v2577 = vld [vmem:[#allocation7 + $0x420] sm:$0xf]
        %v2578 = vld [vmem:[#allocation7 + $0x424] sm:$0xf]
        %v2643 = vunpack.c.l.b16 %v2515
        %v2644 = vunpack.c.l.b16 %v2516
        %v2645 = vunpack.c.l.b16 %v2517
        %v2646 = vunpack.c.l.b16 %v2518
        %v2647 = vunpack.c.l.b16 %v2519
        %v2648 = vunpack.c.l.b16 %v2520
        %v2649 = vunpack.c.l.b16 %v2521
        %v2650 = vunpack.c.l.b16 %v2522
        %v2651 = vunpack.c.l.b16 %v2523
        %v2652 = vunpack.c.l.b16 %v2524
        %v2653 = vunpack.c.l.b16 %v2525
        %v2654 = vunpack.c.l.b16 %v2526
        %v2655 = vunpack.c.l.b16 %v2527
        %v2656 = vunpack.c.l.b16 %v2528
        %v2657 = vunpack.c.l.b16 %v2529
        %v2658 = vunpack.c.l.b16 %v2530
        %v2659 = vunpack.c.l.b16 %v2531
        %v2660 = vunpack.c.l.b16 %v2532
        %v2661 = vunpack.c.l.b16 %v2533
        %v2662 = vunpack.c.l.b16 %v2534
        %v2663 = vunpack.c.l.b16 %v2535
        %v2664 = vunpack.c.l.b16 %v2536
        %v2665 = vunpack.c.l.b16 %v2537
        %v2666 = vunpack.c.l.b16 %v2538
        %v2667 = vunpack.c.l.b16 %v2539
        %v2668 = vunpack.c.l.b16 %v2540
        %v2669 = vunpack.c.l.b16 %v2541
        %v2670 = vunpack.c.l.b16 %v2542
        %v2671 = vunpack.c.l.b16 %v2543
        %v2672 = vunpack.c.l.b16 %v2544
        %v2673 = vunpack.c.l.b16 %v2545
        %v2674 = vunpack.c.l.b16 %v2546
        %v2675 = vunpack.c.l.b16 %v2547
        %v2676 = vunpack.c.l.b16 %v2548
        %v2677 = vunpack.c.l.b16 %v2549
        %v2678 = vunpack.c.l.b16 %v2550
        %v2679 = vunpack.c.l.b16 %v2551
        %v2680 = vunpack.c.l.b16 %v2552
        %v2681 = vunpack.c.l.b16 %v2553
        %v2682 = vunpack.c.l.b16 %v2554
        %v2683 = vunpack.c.l.b16 %v2555
        %v2684 = vunpack.c.l.b16 %v2556
        %v2685 = vunpack.c.l.b16 %v2557
        %v2686 = vunpack.c.l.b16 %v2558
        %v2687 = vunpack.c.l.b16 %v2559
        %v2688 = vunpack.c.l.b16 %v2560
        %v2689 = vunpack.c.l.b16 %v2561
        %v2690 = vunpack.c.l.b16 %v2562
        %v2691 = vunpack.c.l.b16 %v2563
        %v2692 = vunpack.c.l.b16 %v2564
        %v2693 = vunpack.c.l.b16 %v2565
        %v2694 = vunpack.c.l.b16 %v2566
        %v2695 = vunpack.c.l.b16 %v2567
        %v2696 = vunpack.c.l.b16 %v2568
        %v2697 = vunpack.c.l.b16 %v2569
        %v2698 = vunpack.c.l.b16 %v2570
        %v2699 = vunpack.c.l.b16 %v2571
        %v2700 = vunpack.c.l.b16 %v2572
        %v2701 = vunpack.c.l.b16 %v2573
        %v2702 = vunpack.c.l.b16 %v2574
        %v2703 = vunpack.c.l.b16 %v2575
        %v2704 = vunpack.c.l.b16 %v2576
        %v2705 = vunpack.c.l.b16 %v2577
        %v2706 = vunpack.c.l.b16 %v2578
        %v2707 = vpack.c.b16 %v2644, %v2643
        %v2708 = vpack.c.b16 %v2646, %v2645
        %v2709 = vpack.c.b16 %v2648, %v2647
        %v2710 = vpack.c.b16 %v2650, %v2649
        %v2711 = vpack.c.b16 %v2652, %v2651
        %v2712 = vpack.c.b16 %v2654, %v2653
        %v2713 = vpack.c.b16 %v2656, %v2655
        %v2714 = vpack.c.b16 %v2658, %v2657
        %v2715 = vpack.c.b16 %v2660, %v2659
        %v2716 = vpack.c.b16 %v2662, %v2661
        %v2717 = vpack.c.b16 %v2664, %v2663
        %v2718 = vpack.c.b16 %v2666, %v2665
        %v2719 = vpack.c.b16 %v2668, %v2667
        %v2720 = vpack.c.b16 %v2670, %v2669
        %v2721 = vpack.c.b16 %v2672, %v2671
        %v2722 = vpack.c.b16 %v2674, %v2673
        %v2723 = vpack.c.b16 %v2676, %v2675
        %v2724 = vpack.c.b16 %v2678, %v2677
        %v2725 = vpack.c.b16 %v2680, %v2679
        %v2726 = vpack.c.b16 %v2682, %v2681
        %v2727 = vpack.c.b16 %v2684, %v2683
        %v2728 = vpack.c.b16 %v2686, %v2685
        %v2729 = vpack.c.b16 %v2688, %v2687
        %v2730 = vpack.c.b16 %v2690, %v2689
        %v2731 = vpack.c.b16 %v2692, %v2691
        %v2732 = vpack.c.b16 %v2694, %v2693
        %v2733 = vpack.c.b16 %v2696, %v2695
        %v2734 = vpack.c.b16 %v2698, %v2697
        %v2735 = vpack.c.b16 %v2700, %v2699
        %v2736 = vpack.c.b16 %v2702, %v2701
        %v2737 = vpack.c.b16 %v2704, %v2703
        %v2738 = vpack.c.b16 %v2706, %v2705
        %2771 = vmatprep.subr.bf16.mxu0 0
        %2772 = vmatpush1.bf16.msra.mxu0 %v2707
        %2773 = vmatprep.subr.bf16.mxu0 0
        %2774 = vmatpush1.bf16.msra.mxu0 %v2708
        %2775 = vmatprep.subr.bf16.mxu0 0
        %2776 = vmatpush1.bf16.msra.mxu0 %v2709
        %2777 = vmatprep.subr.bf16.mxu0 0
        %2778 = vmatpush1.bf16.msra.mxu0 %v2710
        %2779 = vmatprep.subr.bf16.mxu0 0
        %2780 = vmatpush1.bf16.msra.mxu0 %v2711
        %2781 = vmatprep.subr.bf16.mxu0 0
        %2782 = vmatpush1.bf16.msra.mxu0 %v2712
        %2783 = vmatprep.subr.bf16.mxu0 0
        %2784 = vmatpush1.bf16.msra.mxu0 %v2713
        %2785 = vmatprep.subr.bf16.mxu0 0
        %2786 = vmatpush1.bf16.msra.mxu0 %v2714
        %2787 = vmatprep.subr.bf16.mxu0 0
        %2788 = vmatpush1.bf16.msra.mxu0 %v2715
        %2789 = vmatprep.subr.bf16.mxu0 0
        %2790 = vmatpush1.bf16.msra.mxu0 %v2716
        %2791 = vmatprep.subr.bf16.mxu0 0
        %2792 = vmatpush1.bf16.msra.mxu0 %v2717
        %2793 = vmatprep.subr.bf16.mxu0 0
        %2794 = vmatpush1.bf16.msra.mxu0 %v2718
        %2795 = vmatprep.subr.bf16.mxu0 0
        %2796 = vmatpush1.bf16.msra.mxu0 %v2719
        %2797 = vmatprep.subr.bf16.mxu0 0
        %2798 = vmatpush1.bf16.msra.mxu0 %v2720
        %2799 = vmatprep.subr.bf16.mxu0 0
        %2800 = vmatpush1.bf16.msra.mxu0 %v2721
        %2801 = vmatprep.subr.bf16.mxu0 0
        %2802 = vmatpush1.bf16.msra.mxu0 %v2722
        %2803 = vmatprep.mubr.bf16.mxu0 %v1484
        %2804 = vmatmul.mubr.bf16.gmra.mrb[0].mxu0 %v1483
        %v2805 = vpop.f32.mrb[0].mxu0
        %v2806 = vadd.f32 0.0, %v2805
        %v2807 = vpop.f32.mrb[0].mxu0
        %v2808 = vpop.f32.mrb[0].mxu0
        %v2809 = vadd.f32 0.0, %v2808
        %v2810 = vpop.f32.mrb[0].mxu0
        %2811 = vdwg.mxu0
        %2812 = vmatprep.subr.bf16.mxu0 0
        %2813 = vmatpush1.bf16.msra.mxu0 %v2723
        %2814 = vmatprep.subr.bf16.mxu0 0
        %2815 = vmatpush1.bf16.msra.mxu0 %v2724
        %2816 = vmatprep.subr.bf16.mxu0 0
        %2817 = vmatpush1.bf16.msra.mxu0 %v2725
        %2818 = vmatprep.subr.bf16.mxu0 0
        %2819 = vmatpush1.bf16.msra.mxu0 %v2726
        %2820 = vmatprep.subr.bf16.mxu0 0
        %2821 = vmatpush1.bf16.msra.mxu0 %v2727
        %2822 = vmatprep.subr.bf16.mxu0 0
        %2823 = vmatpush1.bf16.msra.mxu0 %v2728
        %2824 = vmatprep.subr.bf16.mxu0 0
        %2825 = vmatpush1.bf16.msra.mxu0 %v2729
        %2826 = vmatprep.subr.bf16.mxu0 0
        %2827 = vmatpush1.bf16.msra.mxu0 %v2730
        %2828 = vmatprep.subr.bf16.mxu0 0
        %2829 = vmatpush1.bf16.msra.mxu0 %v2731
        %2830 = vmatprep.subr.bf16.mxu0 0
        %2831 = vmatpush1.bf16.msra.mxu0 %v2732
        %2832 = vmatprep.subr.bf16.mxu0 0
        %2833 = vmatpush1.bf16.msra.mxu0 %v2733
        %2834 = vmatprep.subr.bf16.mxu0 0
        %2835 = vmatpush1.bf16.msra.mxu0 %v2734
        %2836 = vmatprep.subr.bf16.mxu0 0
        %2837 = vmatpush1.bf16.msra.mxu0 %v2735
        %2838 = vmatprep.subr.bf16.mxu0 0
        %2839 = vmatpush1.bf16.msra.mxu0 %v2736
        %2840 = vmatprep.subr.bf16.mxu0 0
        %2841 = vmatpush1.bf16.msra.mxu0 %v2737
        %2842 = vmatprep.subr.bf16.mxu0 0
        %2843 = vmatpush1.bf16.msra.mxu0 %v2738
        %2844 = vmatprep.mubr.bf16.mxu0 %v1486
        %2845 = vmatmul.mubr.bf16.gmra.mrb[0].mxu0 %v1485
        %v2846 = vpop.f32.mrb[0].mxu0
        %v2847 = vadd.f32 %v2806, %v2846
        %v2848 = vpop.f32.mrb[0].mxu0
        %v2849 = vpop.f32.mrb[0].mxu0
        %v2850 = vadd.f32 %v2809, %v2849
        %v2851 = vpop.f32.mrb[0].mxu0
        %2852 = vdwg.mxu0
        %v2853 = vadd.f32 %v2513, %v2847
        %v2854 = vadd.f32 %v2514, %v2850
        %v2855 = vmax.f32 %v2853, 0.0
        %v2856 = vmax.f32 %v2854, 0.0
        %v2857 = vmax.f32 %v2173, %v2174
        %v2858 = vmax.f32 %v2855, %v2856
        %v2859 = vmax.f32 %v2857, %v2858
        %v2860 = vld [vmem:[#allocation7 + $0x4ac] sm:$0x1]
        %v2861 = vunpack.c.l.bf16 %v2860
        %v2862 = vpack.c.bf16 %v2859, %v2859
        %v2863 = vld [vmem:[#allocation7 + $0x42c] sm:$0xf]
        %v2864 = vld [vmem:[#allocation7 + $0x430] sm:$0xf]
        %v2865 = vld [vmem:[#allocation7 + $0x434] sm:$0xf]
        %v2866 = vld [vmem:[#allocation7 + $0x438] sm:$0xf]
        %v2867 = vld [vmem:[#allocation7 + $0x43c] sm:$0xf]
        %v2868 = vld [vmem:[#allocation7 + $0x440] sm:$0xf]
        %v2869 = vld [vmem:[#allocation7 + $0x444] sm:$0xf]
        %v2870 = vld [vmem:[#allocation7 + $0x448] sm:$0xf]
        %v2871 = vld [vmem:[#allocation7 + $0x44c] sm:$0xf]
        %v2872 = vld [vmem:[#allocation7 + $0x450] sm:$0xf]
        %v2873 = vld [vmem:[#allocation7 + $0x454] sm:$0xf]
        %v2874 = vld [vmem:[#allocation7 + $0x458] sm:$0xf]
        %v2875 = vld [vmem:[#allocation7 + $0x45c] sm:$0xf]
        %v2876 = vld [vmem:[#allocation7 + $0x460] sm:$0xf]
        %v2877 = vld [vmem:[#allocation7 + $0x464] sm:$0xf]
        %v2878 = vld [vmem:[#allocation7 + $0x468] sm:$0xf]
        %v2895 = vunpack.c.l.b16 %v2863
        %v2896 = vunpack.c.l.b16 %v2864
        %v2897 = vunpack.c.l.b16 %v2865
        %v2898 = vunpack.c.l.b16 %v2866
        %v2899 = vunpack.c.l.b16 %v2867
        %v2900 = vunpack.c.l.b16 %v2868
        %v2901 = vunpack.c.l.b16 %v2869
        %v2902 = vunpack.c.l.b16 %v2870
        %v2903 = vunpack.c.l.b16 %v2871
        %v2904 = vunpack.c.l.b16 %v2872
        %v2905 = vunpack.c.l.b16 %v2873
        %v2906 = vunpack.c.l.b16 %v2874
        %v2907 = vunpack.c.l.b16 %v2875
        %v2908 = vunpack.c.l.b16 %v2876
        %v2909 = vunpack.c.l.b16 %v2877
        %v2910 = vunpack.c.l.b16 %v2878
        %v2911 = vpack.c.b16 %v2896, %v2895
        %v2912 = vpack.c.b16 %v2898, %v2897
        %v2913 = vpack.c.b16 %v2900, %v2899
        %v2914 = vpack.c.b16 %v2902, %v2901
        %v2915 = vpack.c.b16 %v2904, %v2903
        %v2916 = vpack.c.b16 %v2906, %v2905
        %v2917 = vpack.c.b16 %v2908, %v2907
        %v2918 = vpack.c.b16 %v2910, %v2909
        %2927 = vmatprep.subr.bf16.mxu0 0
        %2928 = vmatpush1.bf16.msra.mxu0 %v2911
        %2929 = vmatprep.subr.bf16.mxu0 0
        %2930 = vmatpush1.bf16.msra.mxu0 %v2912
        %2931 = vmatprep.subr.bf16.mxu0 0
        %2932 = vmatpush1.bf16.msra.mxu0 %v2913
        %2933 = vmatprep.subr.bf16.mxu0 0
        %2934 = vmatpush1.bf16.msra.mxu0 %v2914
        %2935 = vmatprep.subr.bf16.mxu0 0
        %2936 = vmatpush1.bf16.msra.mxu0 %v2915
        %2937 = vmatprep.subr.bf16.mxu0 0
        %2938 = vmatpush1.bf16.msra.mxu0 %v2916
        %2939 = vmatprep.subr.bf16.mxu0 0
        %2940 = vmatpush1.bf16.msra.mxu0 %v2917
        %2941 = vmatprep.subr.bf16.mxu0 0
        %2942 = vmatpush1.bf16.msra.mxu0 %v2918
        %2943 = vmatprep.subr.bf16.mxu0 0
        %2944 = vmatpush1.bf16.msra.mxu0 0
        %2945 = vmatprep.subr.bf16.mxu0 0
        %2946 = vmatpush1.bf16.msra.mxu0 0
        %2947 = vmatprep.subr.bf16.mxu0 0
        %2948 = vmatpush1.bf16.msra.mxu0 0
        %2949 = vmatprep.subr.bf16.mxu0 0
        %2950 = vmatpush1.bf16.msra.mxu0 0
        %2951 = vmatprep.subr.bf16.mxu0 0
        %2952 = vmatpush1.bf16.msra.mxu0 0
        %2953 = vmatprep.subr.bf16.mxu0 0
        %2954 = vmatpush1.bf16.msra.mxu0 0
        %2955 = vmatprep.subr.bf16.mxu0 0
        %2956 = vmatpush1.bf16.msra.mxu0 0
        %2957 = vmatprep.subr.bf16.mxu0 0
        %2958 = vmatpush1.bf16.msra.mxu0 0
        %2959 = vmatprep.mubr.bf16.mxu0 0
        %2960 = vmatmul.mubr.bf16.gmra.mrb[0].mxu0 %v2862
        %v2961 = vpop.f32.mrb[0].mxu0
        %v2962 = vadd.f32 0.0, %v2961
        %v2963 = vpop.f32.mrb[0].mxu0
        %v2964 = vpop.f32.mrb[0].mxu0
        %v2965 = vpop.f32.mrb[0].mxu0
        %2966 = vdwg.mxu0
        %v2967 = vadd.f32 %v2861, %v2962
        %v2968 = vld [vmem:[#allocation7 + $0x46c] sm:$0xf]
        %v2969 = vld [vmem:[#allocation7 + $0x470] sm:$0xf]
        %v2970 = vld [vmem:[#allocation7 + $0x474] sm:$0xf]
        %v2971 = vld [vmem:[#allocation7 + $0x478] sm:$0xf]
        %v2972 = vld [vmem:[#allocation7 + $0x47c] sm:$0xf]
        %v2973 = vld [vmem:[#allocation7 + $0x480] sm:$0xf]
        %v2974 = vld [vmem:[#allocation7 + $0x484] sm:$0xf]
        %v2975 = vld [vmem:[#allocation7 + $0x488] sm:$0xf]
        %v2976 = vld [vmem:[#allocation7 + $0x48c] sm:$0xf]
        %v2977 = vld [vmem:[#allocation7 + $0x490] sm:$0xf]
        %v2978 = vld [vmem:[#allocation7 + $0x494] sm:$0xf]
        %v2979 = vld [vmem:[#allocation7 + $0x498] sm:$0xf]
        %v2980 = vld [vmem:[#allocation7 + $0x49c] sm:$0xf]
        %v2981 = vld [vmem:[#allocation7 + $0x4a0] sm:$0xf]
        %v2982 = vld [vmem:[#allocation7 + $0x4a4] sm:$0xf]
        %v2983 = vld [vmem:[#allocation7 + $0x4a8] sm:$0xf]
        %v2985 = vshrl.u32 %v2862, 16
        %v3004 = vunpack.c.l.b16 %v2968
        %v3005 = vunpack.c.l.b16 %v2969
        %v3006 = vunpack.c.l.b16 %v2970
        %v3007 = vunpack.c.l.b16 %v2971
        %v3008 = vunpack.c.l.b16 %v2972
        %v3009 = vunpack.c.l.b16 %v2973
        %v3010 = vunpack.c.l.b16 %v2974
        %v3011 = vunpack.c.l.b16 %v2975
        %v3012 = vunpack.c.l.b16 %v2976
        %v3013 = vunpack.c.l.b16 %v2977
        %v3014 = vunpack.c.l.b16 %v2978
        %v3015 = vunpack.c.l.b16 %v2979
        %v3016 = vunpack.c.l.b16 %v2980
        %v3017 = vunpack.c.l.b16 %v2981
        %v3018 = vunpack.c.l.b16 %v2982
        %v3019 = vunpack.c.l.b16 %v2983
        %v3020 = vpack.c.b16 %v3005, %v3004
        %v3021 = vpack.c.b16 %v3007, %v3006
        %v3022 = vpack.c.b16 %v3009, %v3008
        %v3023 = vpack.c.b16 %v3011, %v3010
        %v3024 = vpack.c.b16 %v3013, %v3012
        %v3025 = vpack.c.b16 %v3015, %v3014
        %v3026 = vpack.c.b16 %v3017, %v3016
        %v3027 = vpack.c.b16 %v3019, %v3018
        %3036 = vmatprep.subr.bf16.mxu0 0
        %3037 = vmatpush1.bf16.msra.mxu0 %v3020
        %3038 = vmatprep.subr.bf16.mxu0 0
        %3039 = vmatpush1.bf16.msra.mxu0 %v3021
        %3040 = vmatprep.subr.bf16.mxu0 0
        %3041 = vmatpush1.bf16.msra.mxu0 %v3022
        %3042 = vmatprep.subr.bf16.mxu0 0
        %3043 = vmatpush1.bf16.msra.mxu0 %v3023
        %3044 = vmatprep.subr.bf16.mxu0 0
        %3045 = vmatpush1.bf16.msra.mxu0 %v3024
        %3046 = vmatprep.subr.bf16.mxu0 0
        %3047 = vmatpush1.bf16.msra.mxu0 %v3025
        %3048 = vmatprep.subr.bf16.mxu0 0
        %3049 = vmatpush1.bf16.msra.mxu0 %v3026
        %3050 = vmatprep.subr.bf16.mxu0 0
        %3051 = vmatpush1.bf16.msra.mxu0 %v3027
        %3052 = vmatprep.subr.bf16.mxu0 0
        %3053 = vmatpush1.bf16.msra.mxu0 0
        %3054 = vmatprep.subr.bf16.mxu0 0
        %3055 = vmatpush1.bf16.msra.mxu0 0
        %3056 = vmatprep.subr.bf16.mxu0 0
        %3057 = vmatpush1.bf16.msra.mxu0 0
        %3058 = vmatprep.subr.bf16.mxu0 0
        %3059 = vmatpush1.bf16.msra.mxu0 0
        %3060 = vmatprep.subr.bf16.mxu0 0
        %3061 = vmatpush1.bf16.msra.mxu0 0
        %3062 = vmatprep.subr.bf16.mxu0 0
        %3063 = vmatpush1.bf16.msra.mxu0 0
        %3064 = vmatprep.subr.bf16.mxu0 0
        %3065 = vmatpush1.bf16.msra.mxu0 0
        %3066 = vmatprep.subr.bf16.mxu0 0
        %3067 = vmatpush1.bf16.msra.mxu0 0
        %3068 = vmatprep.mubr.bf16.mxu0 0
        %3069 = vmatmul.mubr.bf16.gmra.mrb[0].mxu0 %v2985
        %v3070 = vpop.f32.mrb[0].mxu0
        %v3071 = vadd.f32 0.0, %v3070
        %v3072 = vpop.f32.mrb[0].mxu0
        %v3073 = vpop.f32.mrb[0].mxu0
        %v3074 = vpop.f32.mrb[0].mxu0
        %3075 = vdwg.mxu0
        %v3076 = vadd.f32 %v2967, %v3071
        %v3077 = vmax.f32 %v3076, 0.0
        %v3078 = vpack.c.bf16 %v3077, %v3077
        %v3079 = vld [vmem:[#allocation7 + $0x4b0] sm:$0xf]
        %v3080 = vld [vmem:[#allocation7 + $0x4b4] sm:$0xf]
        %v3081 = vld [vmem:[#allocation7 + $0x4b8] sm:$0xf]
        %v3082 = vld [vmem:[#allocation7 + $0x4bc] sm:$0xf]
        %v3083 = vld [vmem:[#allocation7 + $0x4c0] sm:$0xf]
        %v3084 = vld [vmem:[#allocation7 + $0x4c4] sm:$0xf]
        %v3085 = vld [vmem:[#allocation7 + $0x4c8] sm:$0xf]
        %v3086 = vld [vmem:[#allocation7 + $0x4cc] sm:$0xf]
        %v3087 = vld [vmem:[#allocation7 + $0x4d0] sm:$0xf]
        %v3088 = vld [vmem:[#allocation7 + $0x4d4] sm:$0xf]
        %v3089 = vld [vmem:[#allocation7 + $0x4d8] sm:$0xf]
        %v3090 = vld [vmem:[#allocation7 + $0x4dc] sm:$0xf]
        %v3091 = vld [vmem:[#allocation7 + $0x4e0] sm:$0xf]
        %v3092 = vld [vmem:[#allocation7 + $0x4e4] sm:$0xf]
        %v3093 = vld [vmem:[#allocation7 + $0x4e8] sm:$0xf]
        %v3094 = vld [vmem:[#allocation7 + $0x4ec] sm:$0xf]
        %v3095 = vld [vmem:[#allocation7 + $0x4f0] sm:$0x1]
        %v3096 = vunpack.c.l.bf16 %v3095
        %v3113 = vunpack.c.l.b16 %v3079
        %v3114 = vunpack.c.l.b16 %v3080
        %v3115 = vunpack.c.l.b16 %v3081
        %v3116 = vunpack.c.l.b16 %v3082
        %v3117 = vunpack.c.l.b16 %v3083
        %v3118 = vunpack.c.l.b16 %v3084
        %v3119 = vunpack.c.l.b16 %v3085
        %v3120 = vunpack.c.l.b16 %v3086
        %v3121 = vunpack.c.l.b16 %v3087
        %v3122 = vunpack.c.l.b16 %v3088
        %v3123 = vunpack.c.l.b16 %v3089
        %v3124 = vunpack.c.l.b16 %v3090
        %v3125 = vunpack.c.l.b16 %v3091
        %v3126 = vunpack.c.l.b16 %v3092
        %v3127 = vunpack.c.l.b16 %v3093
        %v3128 = vunpack.c.l.b16 %v3094
        %v3129 = vpack.c.b16 %v3114, %v3113
        %v3130 = vpack.c.b16 %v3116, %v3115
        %v3131 = vpack.c.b16 %v3118, %v3117
        %v3132 = vpack.c.b16 %v3120, %v3119
        %v3133 = vpack.c.b16 %v3122, %v3121
        %v3134 = vpack.c.b16 %v3124, %v3123
        %v3135 = vpack.c.b16 %v3126, %v3125
        %v3136 = vpack.c.b16 %v3128, %v3127
        %3145 = vmatprep.subr.bf16.mxu0 0
        %3146 = vmatpush1.bf16.msra.mxu0 %v3129
        %3147 = vmatprep.subr.bf16.mxu0 0
        %3148 = vmatpush1.bf16.msra.mxu0 %v3130
        %3149 = vmatprep.subr.bf16.mxu0 0
        %3150 = vmatpush1.bf16.msra.mxu0 %v3131
        %3151 = vmatprep.subr.bf16.mxu0 0
        %3152 = vmatpush1.bf16.msra.mxu0 %v3132
        %3153 = vmatprep.subr.bf16.mxu0 0
        %3154 = vmatpush1.bf16.msra.mxu0 %v3133
        %3155 = vmatprep.subr.bf16.mxu0 0
        %3156 = vmatpush1.bf16.msra.mxu0 %v3134
        %3157 = vmatprep.subr.bf16.mxu0 0
        %3158 = vmatpush1.bf16.msra.mxu0 %v3135
        %3159 = vmatprep.subr.bf16.mxu0 0
        %3160 = vmatpush1.bf16.msra.mxu0 %v3136
        %3161 = vmatprep.subr.bf16.mxu0 0
        %3162 = vmatpush1.bf16.msra.mxu0 0
        %3163 = vmatprep.subr.bf16.mxu0 0
        %3164 = vmatpush1.bf16.msra.mxu0 0
        %3165 = vmatprep.subr.bf16.mxu0 0
        %3166 = vmatpush1.bf16.msra.mxu0 0
        %3167 = vmatprep.subr.bf16.mxu0 0
        %3168 = vmatpush1.bf16.msra.mxu0 0
        %3169 = vmatprep.subr.bf16.mxu0 0
        %3170 = vmatpush1.bf16.msra.mxu0 0
        %3171 = vmatprep.subr.bf16.mxu0 0
        %3172 = vmatpush1.bf16.msra.mxu0 0
        %3173 = vmatprep.subr.bf16.mxu0 0
        %3174 = vmatpush1.bf16.msra.mxu0 0
        %3175 = vmatprep.subr.bf16.mxu0 0
        %3176 = vmatpush1.bf16.msra.mxu0 0
        %3177 = vmatprep.mubr.bf16.mxu0 0
        %3178 = vmatmul.mubr.bf16.gmra.mrb[0].mxu0 %v3078
        %v3179 = vpop.f32.mrb[0].mxu0
        %v3180 = vadd.f32 %v3096, %v3179
        %v3181 = vpop.f32.mrb[0].mxu0
        %v3182 = vpop.f32.mrb[0].mxu0
        %v3183 = vpop.f32.mrb[0].mxu0
        %3184 = vdwg.mxu0
        %v3185 = vpack.c.bf16 %v3180, %v3180
        %v3186 = vld [vmem:[#allocation7 + $0x4f4] sm:$0xf]
        %v3187 = vld [vmem:[#allocation7 + $0x4f8] sm:$0xf]
        %v3188 = vld [vmem:[#allocation7 + $0x4fc] sm:$0xf]
        %v3189 = vld [vmem:[#allocation7 + $0x500] sm:$0xf]
        %v3190 = vld [vmem:[#allocation7 + $0x504] sm:$0xf]
        %v3191 = vld [vmem:[#allocation7 + $0x508] sm:$0xf]
        %v3192 = vld [vmem:[#allocation7 + $0x50c] sm:$0xf]
        %v3193 = vld [vmem:[#allocation7 + $0x510] sm:$0xf]
        %v3194 = vld [vmem:[#allocation7 + $0x514] sm:$0xf]
        %v3195 = vld [vmem:[#allocation7 + $0x518] sm:$0xf]
        %v3196 = vld [vmem:[#allocation7 + $0x51c] sm:$0xf]
        %v3197 = vld [vmem:[#allocation7 + $0x520] sm:$0xf]
        %v3198 = vld [vmem:[#allocation7 + $0x524] sm:$0xf]
        %v3199 = vld [vmem:[#allocation7 + $0x528] sm:$0xf]
        %v3200 = vld [vmem:[#allocation7 + $0x52c] sm:$0xf]
        %v3201 = vld [vmem:[#allocation7 + $0x530] sm:$0xf]
        %v3202 = vld [vmem:[#allocation7 + $0x534] sm:$0x1]
        %v3203 = vunpack.c.l.bf16 %v3202
        %v3220 = vunpack.c.l.b16 %v3186
        %v3221 = vunpack.c.l.b16 %v3187
        %v3222 = vunpack.c.l.b16 %v3188
        %v3223 = vunpack.c.l.b16 %v3189
        %v3224 = vunpack.c.l.b16 %v3190
        %v3225 = vunpack.c.l.b16 %v3191
        %v3226 = vunpack.c.l.b16 %v3192
        %v3227 = vunpack.c.l.b16 %v3193
        %v3228 = vunpack.c.l.b16 %v3194
        %v3229 = vunpack.c.l.b16 %v3195
        %v3230 = vunpack.c.l.b16 %v3196
        %v3231 = vunpack.c.l.b16 %v3197
        %v3232 = vunpack.c.l.b16 %v3198
        %v3233 = vunpack.c.l.b16 %v3199
        %v3234 = vunpack.c.l.b16 %v3200
        %v3235 = vunpack.c.l.b16 %v3201
        %v3236 = vpack.c.b16 %v3221, %v3220
        %v3237 = vpack.c.b16 %v3223, %v3222
        %v3238 = vpack.c.b16 %v3225, %v3224
        %v3239 = vpack.c.b16 %v3227, %v3226
        %v3240 = vpack.c.b16 %v3229, %v3228
        %v3241 = vpack.c.b16 %v3231, %v3230
        %v3242 = vpack.c.b16 %v3233, %v3232
        %v3243 = vpack.c.b16 %v3235, %v3234
        %3252 = vmatprep.subr.bf16.mxu0 0
        %3253 = vmatpush1.bf16.msra.mxu0 %v3236
        %3254 = vmatprep.subr.bf16.mxu0 0
        %3255 = vmatpush1.bf16.msra.mxu0 %v3237
        %3256 = vmatprep.subr.bf16.mxu0 0
        %3257 = vmatpush1.bf16.msra.mxu0 %v3238
        %3258 = vmatprep.subr.bf16.mxu0 0
        %3259 = vmatpush1.bf16.msra.mxu0 %v3239
        %3260 = vmatprep.subr.bf16.mxu0 0
        %3261 = vmatpush1.bf16.msra.mxu0 %v3240
        %3262 = vmatprep.subr.bf16.mxu0 0
        %3263 = vmatpush1.bf16.msra.mxu0 %v3241
        %3264 = vmatprep.subr.bf16.mxu0 0
        %3265 = vmatpush1.bf16.msra.mxu0 %v3242
        %3266 = vmatprep.subr.bf16.mxu0 0
        %3267 = vmatpush1.bf16.msra.mxu0 %v3243
        %3268 = vmatprep.subr.bf16.mxu0 0
        %3269 = vmatpush1.bf16.msra.mxu0 0
        %3270 = vmatprep.subr.bf16.mxu0 0
        %3271 = vmatpush1.bf16.msra.mxu0 0
        %3272 = vmatprep.subr.bf16.mxu0 0
        %3273 = vmatpush1.bf16.msra.mxu0 0
        %3274 = vmatprep.subr.bf16.mxu0 0
        %3275 = vmatpush1.bf16.msra.mxu0 0
        %3276 = vmatprep.subr.bf16.mxu0 0
        %3277 = vmatpush1.bf16.msra.mxu0 0
        %3278 = vmatprep.subr.bf16.mxu0 0
        %3279 = vmatpush1.bf16.msra.mxu0 0
        %3280 = vmatprep.subr.bf16.mxu0 0
        %3281 = vmatpush1.bf16.msra.mxu0 0
        %3282 = vmatprep.subr.bf16.mxu0 0
        %3283 = vmatpush1.bf16.msra.mxu0 0
        %3284 = vmatprep.mubr.bf16.mxu0 0
        %3285 = vmatmul.mubr.bf16.gmra.mrb[0].mxu0 %v3185
        %v3286 = vpop.f32.mrb[0].mxu0
        %v3287 = vadd.f32 %v3203, %v3286
        %v3288 = vpop.f32.mrb[0].mxu0
        %v3289 = vpop.f32.mrb[0].mxu0
        %v3290 = vpop.f32.mrb[0].mxu0
        %3291 = vdwg.mxu0
        %v3292 = vmax.f32 %v3287, 0.0
        %v3293 = vpack.c.bf16 %v3292, %v3292
        %v3294 = vld [vmem:[#allocation7 + $0x538] sm:$0xf]
        %v3295 = vld [vmem:[#allocation7 + $0x53c] sm:$0xf]
        %v3296 = vld [vmem:[#allocation7 + $0x540] sm:$0xf]
        %v3297 = vld [vmem:[#allocation7 + $0x544] sm:$0xf]
        %v3298 = vld [vmem:[#allocation7 + $0x548] sm:$0xf]
        %v3299 = vld [vmem:[#allocation7 + $0x54c] sm:$0xf]
        %v3300 = vld [vmem:[#allocation7 + $0x550] sm:$0xf]
        %v3301 = vld [vmem:[#allocation7 + $0x554] sm:$0xf]
        %v3302 = vld [vmem:[#allocation7 + $0x558] sm:$0xf]
        %v3303 = vld [vmem:[#allocation7 + $0x55c] sm:$0xf]
        %v3304 = vld [vmem:[#allocation7 + $0x560] sm:$0xf]
        %v3305 = vld [vmem:[#allocation7 + $0x564] sm:$0xf]
        %v3306 = vld [vmem:[#allocation7 + $0x568] sm:$0xf]
        %v3307 = vld [vmem:[#allocation7 + $0x56c] sm:$0xf]
        %v3308 = vld [vmem:[#allocation7 + $0x570] sm:$0xf]
        %v3309 = vld [vmem:[#allocation7 + $0x574] sm:$0xf]
        %v3310 = vld [vmem:[#allocation7 + $0x5b8] sm:$0x1]
        %v3311 = vunpack.c.l.bf16 %v3310
        %v3328 = vunpack.c.l.b16 %v3294
        %v3329 = vunpack.c.l.b16 %v3295
        %v3330 = vunpack.c.l.b16 %v3296
        %v3331 = vunpack.c.l.b16 %v3297
        %v3332 = vunpack.c.l.b16 %v3298
        %v3333 = vunpack.c.l.b16 %v3299
        %v3334 = vunpack.c.l.b16 %v3300
        %v3335 = vunpack.c.l.b16 %v3301
        %v3336 = vunpack.c.l.b16 %v3302
        %v3337 = vunpack.c.l.b16 %v3303
        %v3338 = vunpack.c.l.b16 %v3304
        %v3339 = vunpack.c.l.b16 %v3305
        %v3340 = vunpack.c.l.b16 %v3306
        %v3341 = vunpack.c.l.b16 %v3307
        %v3342 = vunpack.c.l.b16 %v3308
        %v3343 = vunpack.c.l.b16 %v3309
        %v3344 = vpack.c.b16 %v3329, %v3328
        %v3345 = vpack.c.b16 %v3331, %v3330
        %v3346 = vpack.c.b16 %v3333, %v3332
        %v3347 = vpack.c.b16 %v3335, %v3334
        %v3348 = vpack.c.b16 %v3337, %v3336
        %v3349 = vpack.c.b16 %v3339, %v3338
        %v3350 = vpack.c.b16 %v3341, %v3340
        %v3351 = vpack.c.b16 %v3343, %v3342
        %3360 = vmatprep.subr.bf16.mxu0 0
        %3361 = vmatpush1.bf16.msra.mxu0 %v3344
        %3362 = vmatprep.subr.bf16.mxu0 0
        %3363 = vmatpush1.bf16.msra.mxu0 %v3345
        %3364 = vmatprep.subr.bf16.mxu0 0
        %3365 = vmatpush1.bf16.msra.mxu0 %v3346
        %3366 = vmatprep.subr.bf16.mxu0 0
        %3367 = vmatpush1.bf16.msra.mxu0 %v3347
        %3368 = vmatprep.subr.bf16.mxu0 0
        %3369 = vmatpush1.bf16.msra.mxu0 %v3348
        %3370 = vmatprep.subr.bf16.mxu0 0
        %3371 = vmatpush1.bf16.msra.mxu0 %v3349
        %3372 = vmatprep.subr.bf16.mxu0 0
        %3373 = vmatpush1.bf16.msra.mxu0 %v3350
        %3374 = vmatprep.subr.bf16.mxu0 0
        %3375 = vmatpush1.bf16.msra.mxu0 %v3351
        %3376 = vmatprep.subr.bf16.mxu0 0
        %3377 = vmatpush1.bf16.msra.mxu0 0
        %3378 = vmatprep.subr.bf16.mxu0 0
        %3379 = vmatpush1.bf16.msra.mxu0 0
        %3380 = vmatprep.subr.bf16.mxu0 0
        %3381 = vmatpush1.bf16.msra.mxu0 0
        %3382 = vmatprep.subr.bf16.mxu0 0
        %3383 = vmatpush1.bf16.msra.mxu0 0
        %3384 = vmatprep.subr.bf16.mxu0 0
        %3385 = vmatpush1.bf16.msra.mxu0 0
        %3386 = vmatprep.subr.bf16.mxu0 0
        %3387 = vmatpush1.bf16.msra.mxu0 0
        %3388 = vmatprep.subr.bf16.mxu0 0
        %3389 = vmatpush1.bf16.msra.mxu0 0
        %3390 = vmatprep.subr.bf16.mxu0 0
        %3391 = vmatpush1.bf16.msra.mxu0 0
        %3392 = vmatprep.mubr.bf16.mxu0 0
        %3393 = vmatmul.mubr.bf16.gmra.mrb[0].mxu0 %v3293
        %v3394 = vpop.f32.mrb[0].mxu0
        %v3395 = vadd.f32 %v3311, %v3394
        %v3396 = vpop.f32.mrb[0].mxu0
        %v3397 = vpop.f32.mrb[0].mxu0
        %v3398 = vpop.f32.mrb[0].mxu0
        %3399 = vdwg.mxu0
        %v3400 = vld [vmem:[#allocation7 + $0x578] sm:$0xf]
        %v3401 = vld [vmem:[#allocation7 + $0x57c] sm:$0xf]
        %v3402 = vld [vmem:[#allocation7 + $0x580] sm:$0xf]
        %v3403 = vld [vmem:[#allocation7 + $0x584] sm:$0xf]
        %v3404 = vld [vmem:[#allocation7 + $0x588] sm:$0xf]
        %v3405 = vld [vmem:[#allocation7 + $0x58c] sm:$0xf]
        %v3406 = vld [vmem:[#allocation7 + $0x590] sm:$0xf]
        %v3407 = vld [vmem:[#allocation7 + $0x594] sm:$0xf]
        %v3408 = vld [vmem:[#allocation7 + $0x598] sm:$0xf]
        %v3409 = vld [vmem:[#allocation7 + $0x59c] sm:$0xf]
        %v3410 = vld [vmem:[#allocation7 + $0x5a0] sm:$0xf]
        %v3411 = vld [vmem:[#allocation7 + $0x5a4] sm:$0xf]
        %v3412 = vld [vmem:[#allocation7 + $0x5a8] sm:$0xf]
        %v3413 = vld [vmem:[#allocation7 + $0x5ac] sm:$0xf]
        %v3414 = vld [vmem:[#allocation7 + $0x5b0] sm:$0xf]
        %v3415 = vld [vmem:[#allocation7 + $0x5b4] sm:$0xf]
        %v3432 = vunpack.c.l.b16 %v3400
        %v3433 = vunpack.c.l.b16 %v3401
        %v3434 = vunpack.c.l.b16 %v3402
        %v3435 = vunpack.c.l.b16 %v3403
        %v3436 = vunpack.c.l.b16 %v3404
        %v3437 = vunpack.c.l.b16 %v3405
        %v3438 = vunpack.c.l.b16 %v3406
        %v3439 = vunpack.c.l.b16 %v3407
        %v3440 = vunpack.c.l.b16 %v3408
        %v3441 = vunpack.c.l.b16 %v3409
        %v3442 = vunpack.c.l.b16 %v3410
        %v3443 = vunpack.c.l.b16 %v3411
        %v3444 = vunpack.c.l.b16 %v3412
        %v3445 = vunpack.c.l.b16 %v3413
        %v3446 = vunpack.c.l.b16 %v3414
        %v3447 = vunpack.c.l.b16 %v3415
        %v3448 = vpack.c.b16 %v3433, %v3432
        %v3449 = vpack.c.b16 %v3435, %v3434
        %v3450 = vpack.c.b16 %v3437, %v3436
        %v3451 = vpack.c.b16 %v3439, %v3438
        %v3452 = vpack.c.b16 %v3441, %v3440
        %v3453 = vpack.c.b16 %v3443, %v3442
        %v3454 = vpack.c.b16 %v3445, %v3444
        %v3455 = vpack.c.b16 %v3447, %v3446
        %v3465 = vrot.slane %v3311, 1
        %3467 = vmatprep.subr.bf16.mxu0 0
        %3468 = vmatpush1.bf16.msra.mxu0 %v3448
        %3469 = vmatprep.subr.bf16.mxu0 0
        %3470 = vmatpush1.bf16.msra.mxu0 %v3449
        %3471 = vmatprep.subr.bf16.mxu0 0
        %3472 = vmatpush1.bf16.msra.mxu0 %v3450
        %3473 = vmatprep.subr.bf16.mxu0 0
        %3474 = vmatpush1.bf16.msra.mxu0 %v3451
        %3475 = vmatprep.subr.bf16.mxu0 0
        %3476 = vmatpush1.bf16.msra.mxu0 %v3452
        %3477 = vmatprep.subr.bf16.mxu0 0
        %3478 = vmatpush1.bf16.msra.mxu0 %v3453
        %3479 = vmatprep.subr.bf16.mxu0 0
        %3480 = vmatpush1.bf16.msra.mxu0 %v3454
        %3481 = vmatprep.subr.bf16.mxu0 0
        %3482 = vmatpush1.bf16.msra.mxu0 %v3455
        %3483 = vmatprep.subr.bf16.mxu0 0
        %3484 = vmatpush1.bf16.msra.mxu0 0
        %3485 = vmatprep.subr.bf16.mxu0 0
        %3486 = vmatpush1.bf16.msra.mxu0 0
        %3487 = vmatprep.subr.bf16.mxu0 0
        %3488 = vmatpush1.bf16.msra.mxu0 0
        %3489 = vmatprep.subr.bf16.mxu0 0
        %3490 = vmatpush1.bf16.msra.mxu0 0
        %3491 = vmatprep.subr.bf16.mxu0 0
        %3492 = vmatpush1.bf16.msra.mxu0 0
        %3493 = vmatprep.subr.bf16.mxu0 0
        %3494 = vmatpush1.bf16.msra.mxu0 0
        %3495 = vmatprep.subr.bf16.mxu0 0
        %3496 = vmatpush1.bf16.msra.mxu0 0
        %3497 = vmatprep.subr.bf16.mxu0 0
        %3498 = vmatpush1.bf16.msra.mxu0 0
        %3499 = vmatprep.mubr.bf16.mxu0 0
        %3500 = vmatmul.mubr.bf16.gmra.mrb[0].mxu0 %v3293
        %v3501 = vpop.f32.mrb[0].mxu0
        %v3502 = vadd.f32 %v3465, %v3501
        %v3503 = vpop.f32.mrb[0].mxu0
        %v3504 = vpop.f32.mrb[0].mxu0
        %v3505 = vpop.f32.mrb[0].mxu0
        %3506 = vdwg.mxu0
        %v3508 = vrot.slane %v3502, 7
        %vm3510 = vcmask 1040384
        %v3511 = vsel %vm3510, %v3395, %v3508
        %v3512 = vpack.c.bf16 %v3511, %v3511
        %v3513 = vld [vmem:[#allocation5] sm:$0xff]
        %v3514 = vld [vmem:[#allocation5 + $0x8] sm:$0xf]
        %v3515 = vld [vmem:[#allocation5 + $0x18] sm:$0xff]
        %v3516 = vld [vmem:[#allocation5 + $0x20] sm:$0xf]
        %v3517 = vld [vmem:[#allocation5 + $0x30] sm:$0xff]
        %v3518 = vld [vmem:[#allocation5 + $0x38] sm:$0xf]
        %v3519 = vld [vmem:[#allocation5 + $0x48] sm:$0xff]
        %v3520 = vld [vmem:[#allocation5 + $0x50] sm:$0xf]
        %v3521 = vld [vmem:[#allocation5 + $0x60] sm:$0xff]
        %v3522 = vld [vmem:[#allocation5 + $0x68] sm:$0xf]
        %v3523 = vld [vmem:[#allocation5 + $0x78] sm:$0xff]
        %v3524 = vld [vmem:[#allocation5 + $0x80] sm:$0xf]
        %v3525 = vld [vmem:[#allocation5 + $0x90] sm:$0xff]
        %v3526 = vld [vmem:[#allocation5 + $0x98] sm:$0xf]
        %v3527 = vld [vmem:[#allocation5 + $0xa8] sm:$0xff]
        %v3528 = vld [vmem:[#allocation5 + $0xb0] sm:$0xf]
        %v3529 = vld [vmem:[#allocation5 + $0xc0] sm:$0xff]
        %v3530 = vld [vmem:[#allocation5 + $0xc8] sm:$0xf]
        %v3531 = vld [vmem:[#allocation5 + $0xd8] sm:$0xff]
        %v3532 = vld [vmem:[#allocation5 + $0xe0] sm:$0xf]
        %v3533 = vld [vmem:[#allocation5 + $0xf0] sm:$0xff]
        %v3534 = vld [vmem:[#allocation5 + $0xf8] sm:$0xf]
        %v3535 = vld [vmem:[#allocation5 + $0x108] sm:$0xff]
        %v3536 = vld [vmem:[#allocation5 + $0x110] sm:$0xf]
        %v3537 = vld [vmem:[#allocation5 + $0x120] sm:$0xff]
        %v3538 = vld [vmem:[#allocation5 + $0x128] sm:$0xf]
        %v3539 = vld [vmem:[#allocation5 + $0x138] sm:$0xff]
        %v3540 = vld [vmem:[#allocation5 + $0x140] sm:$0xf]
        %v3541 = vld [vmem:[#allocation5 + $0x150] sm:$0xff]
        %v3542 = vld [vmem:[#allocation5 + $0x158] sm:$0xf]
        %v3543 = vld [vmem:[#allocation5 + $0x168] sm:$0xff]
        %v3544 = vld [vmem:[#allocation5 + $0x170] sm:$0xf]
        %v3577 = vunpack.c.l.b16 %v3513
        %v3578 = vunpack.c.h.b16 %v3513
        %v3579 = vunpack.c.l.b16 %v3514
        %v3580 = vunpack.c.l.b16 %v3515
        %v3581 = vunpack.c.h.b16 %v3515
        %v3582 = vunpack.c.l.b16 %v3516
        %v3583 = vunpack.c.l.b16 %v3517
        %v3584 = vunpack.c.h.b16 %v3517
        %v3585 = vunpack.c.l.b16 %v3518
        %v3586 = vunpack.c.l.b16 %v3519
        %v3587 = vunpack.c.h.b16 %v3519
        %v3588 = vunpack.c.l.b16 %v3520
        %v3589 = vunpack.c.l.b16 %v3521
        %v3590 = vunpack.c.h.b16 %v3521
        %v3591 = vunpack.c.l.b16 %v3522
        %v3592 = vunpack.c.l.b16 %v3523
        %v3593 = vunpack.c.h.b16 %v3523
        %v3594 = vunpack.c.l.b16 %v3524
        %v3595 = vunpack.c.l.b16 %v3525
        %v3596 = vunpack.c.h.b16 %v3525
        %v3597 = vunpack.c.l.b16 %v3526
        %v3598 = vunpack.c.l.b16 %v3527
        %v3599 = vunpack.c.h.b16 %v3527
        %v3600 = vunpack.c.l.b16 %v3528
        %v3601 = vunpack.c.l.b16 %v3529
        %v3602 = vunpack.c.h.b16 %v3529
        %v3603 = vunpack.c.l.b16 %v3530
        %v3604 = vunpack.c.l.b16 %v3531
        %v3605 = vunpack.c.h.b16 %v3531
        %v3606 = vunpack.c.l.b16 %v3532
        %v3607 = vunpack.c.l.b16 %v3533
        %v3608 = vunpack.c.h.b16 %v3533
        %v3609 = vunpack.c.l.b16 %v3534
        %v3610 = vunpack.c.l.b16 %v3535
        %v3611 = vunpack.c.h.b16 %v3535
        %v3612 = vunpack.c.l.b16 %v3536
        %v3613 = vunpack.c.l.b16 %v3537
        %v3614 = vunpack.c.h.b16 %v3537
        %v3615 = vunpack.c.l.b16 %v3538
        %v3616 = vunpack.c.l.b16 %v3539
        %v3617 = vunpack.c.h.b16 %v3539
        %v3618 = vunpack.c.l.b16 %v3540
        %v3619 = vunpack.c.l.b16 %v3541
        %v3620 = vunpack.c.h.b16 %v3541
        %v3621 = vunpack.c.l.b16 %v3542
        %v3622 = vunpack.c.l.b16 %v3543
        %v3623 = vunpack.c.h.b16 %v3543
        %v3624 = vunpack.c.l.b16 %v3544
        %v3625 = vpack.c.b16 %v3580, %v3577
        %v3626 = vpack.c.b16 %v3581, %v3578
        %v3627 = vpack.c.b16 %v3582, %v3579
        %v3628 = vpack.c.b16 %v3586, %v3583
        %v3629 = vpack.c.b16 %v3587, %v3584
        %v3630 = vpack.c.b16 %v3588, %v3585
        %v3631 = vpack.c.b16 %v3592, %v3589
        %v3632 = vpack.c.b16 %v3593, %v3590
        %v3633 = vpack.c.b16 %v3594, %v3591
        %v3634 = vpack.c.b16 %v3598, %v3595
        %v3635 = vpack.c.b16 %v3599, %v3596
        %v3636 = vpack.c.b16 %v3600, %v3597
        %v3637 = vpack.c.b16 %v3604, %v3601
        %v3638 = vpack.c.b16 %v3605, %v3602
        %v3639 = vpack.c.b16 %v3606, %v3603
        %v3640 = vpack.c.b16 %v3610, %v3607
        %v3641 = vpack.c.b16 %v3611, %v3608
        %v3642 = vpack.c.b16 %v3612, %v3609
        %v3643 = vpack.c.b16 %v3616, %v3613
        %v3644 = vpack.c.b16 %v3617, %v3614
        %v3645 = vpack.c.b16 %v3618, %v3615
        %v3646 = vpack.c.b16 %v3622, %v3619
        %v3647 = vpack.c.b16 %v3623, %v3620
        %v3648 = vpack.c.b16 %v3624, %v3621
        %3673 = vmatprep.subr.bf16.mxu0 %v3626
        %3674 = vmatpush1.bf16.msra.mxu0 %v3625
        %3675 = vmatprep.subr.bf16.mxu0 %v3629
        %3676 = vmatpush1.bf16.msra.mxu0 %v3628
        %3677 = vmatprep.subr.bf16.mxu0 %v3632
        %3678 = vmatpush1.bf16.msra.mxu0 %v3631
        %3679 = vmatprep.subr.bf16.mxu0 %v3635
        %3680 = vmatpush1.bf16.msra.mxu0 %v3634
        %3681 = vmatprep.subr.bf16.mxu0 %v3638
        %3682 = vmatpush1.bf16.msra.mxu0 %v3637
        %3683 = vmatprep.subr.bf16.mxu0 %v3641
        %3684 = vmatpush1.bf16.msra.mxu0 %v3640
        %3685 = vmatprep.subr.bf16.mxu0 %v3644
        %3686 = vmatpush1.bf16.msra.mxu0 %v3643
        %3687 = vmatprep.subr.bf16.mxu0 %v3647
        %3688 = vmatpush1.bf16.msra.mxu0 %v3646
        %3689 = vmatprep.subr.bf16.mxu0 0
        %3690 = vmatpush1.bf16.msra.mxu0 0
        %3691 = vmatprep.subr.bf16.mxu0 0
        %3692 = vmatpush1.bf16.msra.mxu0 0
        %3693 = vmatprep.subr.bf16.mxu0 0
        %3694 = vmatpush1.bf16.msra.mxu0 0
        %3695 = vmatprep.subr.bf16.mxu0 0
        %3696 = vmatpush1.bf16.msra.mxu0 0
        %3697 = vmatprep.subr.bf16.mxu0 0
        %3698 = vmatpush1.bf16.msra.mxu0 0
        %3699 = vmatprep.subr.bf16.mxu0 0
        %3700 = vmatpush1.bf16.msra.mxu0 0
        %3701 = vmatprep.subr.bf16.mxu0 0
        %3702 = vmatpush1.bf16.msra.mxu0 0
        %3703 = vmatprep.subr.bf16.mxu0 0
        %3704 = vmatpush1.bf16.msra.mxu0 0
        %3705 = vmatprep.mubr.bf16.mxu0 0
        %3706 = vmatmul.mubr.bf16.gmra.mrb[0].mxu0 %v3512
        %v3707 = vpop.f32.mrb[0].mxu0
        %v3708 = vadd.f32 0.0, %v3707
        %v3709 = vpop.f32.mrb[0].mxu0
        %v3710 = vadd.f32 0.0, %v3709
        %v3711 = vpop.f32.mrb[0].mxu0
        %v3712 = vpop.f32.mrb[0].mxu0
        %3713 = vdwg.mxu0
        %3714 = vmatprep.subr.bf16.mxu0 0
        %3715 = vmatpush1.bf16.msra.mxu0 %v3627
        %3716 = vmatprep.subr.bf16.mxu0 0
        %3717 = vmatpush1.bf16.msra.mxu0 %v3630
        %3718 = vmatprep.subr.bf16.mxu0 0
        %3719 = vmatpush1.bf16.msra.mxu0 %v3633
        %3720 = vmatprep.subr.bf16.mxu0 0
        %3721 = vmatpush1.bf16.msra.mxu0 %v3636
        %3722 = vmatprep.subr.bf16.mxu0 0
        %3723 = vmatpush1.bf16.msra.mxu0 %v3639
        %3724 = vmatprep.subr.bf16.mxu0 0
        %3725 = vmatpush1.bf16.msra.mxu0 %v3642
        %3726 = vmatprep.subr.bf16.mxu0 0
        %3727 = vmatpush1.bf16.msra.mxu0 %v3645
        %3728 = vmatprep.subr.bf16.mxu0 0
        %3729 = vmatpush1.bf16.msra.mxu0 %v3648
        %3730 = vmatprep.subr.bf16.mxu0 0
        %3731 = vmatpush1.bf16.msra.mxu0 0
        %3732 = vmatprep.subr.bf16.mxu0 0
        %3733 = vmatpush1.bf16.msra.mxu0 0
        %3734 = vmatprep.subr.bf16.mxu0 0
        %3735 = vmatpush1.bf16.msra.mxu0 0
        %3736 = vmatprep.subr.bf16.mxu0 0
        %3737 = vmatpush1.bf16.msra.mxu0 0
        %3738 = vmatprep.subr.bf16.mxu0 0
        %3739 = vmatpush1.bf16.msra.mxu0 0
        %3740 = vmatprep.subr.bf16.mxu0 0
        %3741 = vmatpush1.bf16.msra.mxu0 0
        %3742 = vmatprep.subr.bf16.mxu0 0
        %3743 = vmatpush1.bf16.msra.mxu0 0
        %3744 = vmatprep.subr.bf16.mxu0 0
        %3745 = vmatpush1.bf16.msra.mxu0 0
        %3746 = vmatprep.mubr.bf16.mxu0 0
        %3747 = vmatmul.mubr.bf16.gmra.mrb[0].mxu0 %v3512
        %v3748 = vpop.f32.mrb[0].mxu0
        %v3749 = vadd.f32 0.0, %v3748
        %v3750 = vpop.f32.mrb[0].mxu0
        %v3751 = vpop.f32.mrb[0].mxu0
        %v3752 = vpop.f32.mrb[0].mxu0
        %3753 = vdwg.mxu0
        %v3754 = vpack.c.bf16 %v3708, %v3708
        %v3755 = vpack.c.bf16 %v3710, %v3710
        %v3756 = vpack.c.bf16 %v3749, %v3749
        %v3757 = vld [vmem:[#allocation7 + $0x5c8] sm:$0x1]
        %v3758 = vunpack.c.l.bf16 %v3757
        %v3759 = vld [vmem:[#allocation7 + $0x5bc] sm:$0x7]
        %vm3760 = vcmask 15360
        %v3762 = vsel %vm3760, %v3759, 0
        %v3765 = vsel %vm3510, %v3754, 0
        %3767 = vmatprep.subr.bf16.mxu0 0
        %3768 = vmatpush1.bf16.msra.mxu0 %v3765
        %3769 = vmatprep.subr.bf16.mxu0 0
        %3770 = vmatpush1.bf16.msra.mxu0 0
        %3771 = vmatprep.subr.bf16.mxu0 0
        %3772 = vmatpush1.bf16.msra.mxu0 0
        %3773 = vmatprep.subr.bf16.mxu0 0
        %3774 = vmatpush1.bf16.msra.mxu0 0
        %3775 = vmatprep.subr.bf16.mxu0 0
        %3776 = vmatpush1.bf16.msra.mxu0 0
        %3777 = vmatprep.subr.bf16.mxu0 0
        %3778 = vmatpush1.bf16.msra.mxu0 0
        %3779 = vmatprep.subr.bf16.mxu0 0
        %3780 = vmatpush1.bf16.msra.mxu0 0
        %3781 = vmatprep.subr.bf16.mxu0 0
        %3782 = vmatpush1.bf16.msra.mxu0 0
        %3783 = vmatprep.subr.bf16.mxu0 0
        %3784 = vmatpush1.bf16.msra.mxu0 0
        %3785 = vmatprep.subr.bf16.mxu0 0
        %3786 = vmatpush1.bf16.msra.mxu0 0
        %3787 = vmatprep.subr.bf16.mxu0 0
        %3788 = vmatpush1.bf16.msra.mxu0 0
        %3789 = vmatprep.subr.bf16.mxu0 0
        %3790 = vmatpush1.bf16.msra.mxu0 0
        %3791 = vmatprep.subr.bf16.mxu0 0
        %3792 = vmatpush1.bf16.msra.mxu0 0
        %3793 = vmatprep.subr.bf16.mxu0 0
        %3794 = vmatpush1.bf16.msra.mxu0 0
        %3795 = vmatprep.subr.bf16.mxu0 0
        %3796 = vmatpush1.bf16.msra.mxu0 0
        %3797 = vmatprep.subr.bf16.mxu0 0
        %3798 = vmatpush1.bf16.msra.mxu0 0
        %3799 = vmatprep.mubr.bf16.mxu0 0
        %3800 = vmatmul.mubr.bf16.gmra.mrb[0].mxu0 %v3762
        %v3801 = vpop.f32.mrb[0].mxu0
        %v3802 = vadd.f32 0.0, %v3801
        %v3803 = vpop.f32.mrb[0].mxu0
        %v3804 = vpop.f32.mrb[0].mxu0
        %v3805 = vpop.f32.mrb[0].mxu0
        %3806 = vdwg.mxu0
        %v3807 = vlaneseq
        %v3808 = vshrl.u32 %v3807, 7
        %v3809 = vsub.s32 0, %v3808
        %v3810 = vrot.slane %v3758, %v3809
        %v3811 = vadd.f32 %v3810, %v3802
        %v3812 = vld [vmem:[#allocation7 + $0x5c0] sm:$0x7]
        %v3814 = vsel %vm3760, %v3812, 0
        %v3817 = vsel %vm3510, %v3755, 0
        %3819 = vmatprep.subr.bf16.mxu0 0
        %3820 = vmatpush1.bf16.msra.mxu0 %v3817
        %3821 = vmatprep.subr.bf16.mxu0 0
        %3822 = vmatpush1.bf16.msra.mxu0 0
        %3823 = vmatprep.subr.bf16.mxu0 0
        %3824 = vmatpush1.bf16.msra.mxu0 0
        %3825 = vmatprep.subr.bf16.mxu0 0
        %3826 = vmatpush1.bf16.msra.mxu0 0
        %3827 = vmatprep.subr.bf16.mxu0 0
        %3828 = vmatpush1.bf16.msra.mxu0 0
        %3829 = vmatprep.subr.bf16.mxu0 0
        %3830 = vmatpush1.bf16.msra.mxu0 0
        %3831 = vmatprep.subr.bf16.mxu0 0
        %3832 = vmatpush1.bf16.msra.mxu0 0
        %3833 = vmatprep.subr.bf16.mxu0 0
        %3834 = vmatpush1.bf16.msra.mxu0 0
        %3835 = vmatprep.subr.bf16.mxu0 0
        %3836 = vmatpush1.bf16.msra.mxu0 0
        %3837 = vmatprep.subr.bf16.mxu0 0
        %3838 = vmatpush1.bf16.msra.mxu0 0
        %3839 = vmatprep.subr.bf16.mxu0 0
        %3840 = vmatpush1.bf16.msra.mxu0 0
        %3841 = vmatprep.subr.bf16.mxu0 0
        %3842 = vmatpush1.bf16.msra.mxu0 0
        %3843 = vmatprep.subr.bf16.mxu0 0
        %3844 = vmatpush1.bf16.msra.mxu0 0
        %3845 = vmatprep.subr.bf16.mxu0 0
        %3846 = vmatpush1.bf16.msra.mxu0 0
        %3847 = vmatprep.subr.bf16.mxu0 0
        %3848 = vmatpush1.bf16.msra.mxu0 0
        %3849 = vmatprep.subr.bf16.mxu0 0
        %3850 = vmatpush1.bf16.msra.mxu0 0
        %3851 = vmatprep.mubr.bf16.mxu0 0
        %3852 = vmatmul.mubr.bf16.gmra.mrb[0].mxu0 %v3814
        %v3853 = vpop.f32.mrb[0].mxu0
        %v3854 = vadd.f32 0.0, %v3853
        %v3855 = vpop.f32.mrb[0].mxu0
        %v3856 = vpop.f32.mrb[0].mxu0
        %v3857 = vpop.f32.mrb[0].mxu0
        %3858 = vdwg.mxu0
        %v3859 = vadd.f32 %v3811, %v3854
        %v3860 = vld [vmem:[#allocation7 + $0x5c4] sm:$0x7]
        %v3862 = vsel %vm3760, %v3860, 0
        %v3865 = vsel %vm3510, %v3756, 0
        %3867 = vmatprep.subr.bf16.mxu0 0
        %3868 = vmatpush1.bf16.msra.mxu0 %v3865
        %3869 = vmatprep.subr.bf16.mxu0 0
        %3870 = vmatpush1.bf16.msra.mxu0 0
        %3871 = vmatprep.subr.bf16.mxu0 0
        %3872 = vmatpush1.bf16.msra.mxu0 0
        %3873 = vmatprep.subr.bf16.mxu0 0
        %3874 = vmatpush1.bf16.msra.mxu0 0
        %3875 = vmatprep.subr.bf16.mxu0 0
        %3876 = vmatpush1.bf16.msra.mxu0 0
        %3877 = vmatprep.subr.bf16.mxu0 0
        %3878 = vmatpush1.bf16.msra.mxu0 0
        %3879 = vmatprep.subr.bf16.mxu0 0
        %3880 = vmatpush1.bf16.msra.mxu0 0
        %3881 = vmatprep.subr.bf16.mxu0 0
        %3882 = vmatpush1.bf16.msra.mxu0 0
        %3883 = vmatprep.subr.bf16.mxu0 0
        %3884 = vmatpush1.bf16.msra.mxu0 0
        %3885 = vmatprep.subr.bf16.mxu0 0
        %3886 = vmatpush1.bf16.msra.mxu0 0
        %3887 = vmatprep.subr.bf16.mxu0 0
        %3888 = vmatpush1.bf16.msra.mxu0 0
        %3889 = vmatprep.subr.bf16.mxu0 0
        %3890 = vmatpush1.bf16.msra.mxu0 0
        %3891 = vmatprep.subr.bf16.mxu0 0
        %3892 = vmatpush1.bf16.msra.mxu0 0
        %3893 = vmatprep.subr.bf16.mxu0 0
        %3894 = vmatpush1.bf16.msra.mxu0 0
        %3895 = vmatprep.subr.bf16.mxu0 0
        %3896 = vmatpush1.bf16.msra.mxu0 0
        %3897 = vmatprep.subr.bf16.mxu0 0
        %3898 = vmatpush1.bf16.msra.mxu0 0
        %3899 = vmatprep.mubr.bf16.mxu0 0
        %3900 = vmatmul.mubr.bf16.gmra.mrb[0].mxu0 %v3862
        %v3901 = vpop.f32.mrb[0].mxu0
        %v3902 = vadd.f32 0.0, %v3901
        %v3903 = vpop.f32.mrb[0].mxu0
        %v3904 = vpop.f32.mrb[0].mxu0
        %v3905 = vpop.f32.mrb[0].mxu0
        %3906 = vdwg.mxu0
        %v3907 = vadd.f32 %v3859, %v3902
        %v3908 = vmax.f32 %v3907, 0.0
        %v3909 = vpack.c.bf16 %v3908, %v3908
        %v3910 = vld [vmem:[#allocation5 + $0x180] sm:$0xff]
        %v3911 = vld [vmem:[#allocation5 + $0x188] sm:$0xff]
        %v3912 = vld [vmem:[#allocation5 + $0x190] sm:$0xf]
        %v3913 = vld [vmem:[#allocation5 + $0x198] sm:$0xff]
        %v3914 = vld [vmem:[#allocation5 + $0x1a0] sm:$0xff]
        %v3915 = vld [vmem:[#allocation5 + $0x1a8] sm:$0xf]
        %v3916 = vld [vmem:[#allocation5 + $0x1b0] sm:$0xff]
        %v3917 = vld [vmem:[#allocation5 + $0x1b8] sm:$0xff]
        %v3918 = vld [vmem:[#allocation5 + $0x1c0] sm:$0xf]
        %v3919 = vld [vmem:[#allocation5 + $0x1c8] sm:$0xff]
        %v3920 = vld [vmem:[#allocation5 + $0x1d0] sm:$0xff]
        %v3921 = vld [vmem:[#allocation5 + $0x1d8] sm:$0xf]
        %v3922 = vld [vmem:[#allocation5 + $0x1e0] sm:$0xff]
        %v3923 = vld [vmem:[#allocation5 + $0x1e8] sm:$0xff]
        %v3924 = vld [vmem:[#allocation5 + $0x1f0] sm:$0xf]
        %v3925 = vld [vmem:[#allocation5 + $0x1f8] sm:$0xff]
        %v3926 = vld [vmem:[#allocation5 + $0x200] sm:$0xff]
        %v3927 = vld [vmem:[#allocation5 + $0x208] sm:$0xf]
        %v3928 = vld [vmem:[#allocation5 + $0x210] sm:$0xff]
        %v3929 = vld [vmem:[#allocation5 + $0x218] sm:$0xff]
        %v3930 = vld [vmem:[#allocation5 + $0x220] sm:$0xf]
        %v3931 = vld [vmem:[#allocation5 + $0x228] sm:$0xff]
        %v3932 = vld [vmem:[#allocation5 + $0x230] sm:$0xff]
        %v3933 = vld [vmem:[#allocation5 + $0x238] sm:$0xf]
        %v3934 = vld [vmem:[#allocation5 + $0x240] sm:$0xff]
        %v3935 = vld [vmem:[#allocation5 + $0x248] sm:$0xff]
        %v3936 = vld [vmem:[#allocation5 + $0x250] sm:$0xf]
        %v3937 = vld [vmem:[#allocation5 + $0x258] sm:$0xff]
        %v3938 = vld [vmem:[#allocation5 + $0x260] sm:$0xff]
        %v3939 = vld [vmem:[#allocation5 + $0x268] sm:$0xf]
        %v3940 = vld [vmem:[#allocation5 + $0x270] sm:$0xff]
        %v3941 = vld [vmem:[#allocation5 + $0x278] sm:$0xff]
        %v3942 = vld [vmem:[#allocation5 + $0x280] sm:$0xf]
        %v3943 = vld [vmem:[#allocation5 + $0x288] sm:$0xff]
        %v3944 = vld [vmem:[#allocation5 + $0x290] sm:$0xff]
        %v3945 = vld [vmem:[#allocation5 + $0x298] sm:$0xf]
        %v3946 = vld [vmem:[#allocation5 + $0x2a0] sm:$0xff]
        %v3947 = vld [vmem:[#allocation5 + $0x2a8] sm:$0xff]
        %v3948 = vld [vmem:[#allocation5 + $0x2b0] sm:$0xf]
        %v3949 = vld [vmem:[#allocation5 + $0x2b8] sm:$0xff]
        %v3950 = vld [vmem:[#allocation5 + $0x2c0] sm:$0xff]
        %v3951 = vld [vmem:[#allocation5 + $0x2c8] sm:$0xf]
        %v3952 = vld [vmem:[#allocation5 + $0x2d0] sm:$0xff]
        %v3953 = vld [vmem:[#allocation5 + $0x2d8] sm:$0xff]
        %v3954 = vld [vmem:[#allocation5 + $0x2e0] sm:$0xf]
        %v3955 = vld [vmem:[#allocation5 + $0x2e8] sm:$0xff]
        %v3956 = vld [vmem:[#allocation5 + $0x2f0] sm:$0xff]
        %v3957 = vld [vmem:[#allocation5 + $0x2f8] sm:$0xf]
        %v4006 = vunpack.c.l.b16 %v3910
        %v4007 = vunpack.c.h.b16 %v3910
        %v4008 = vunpack.c.l.b16 %v3911
        %v4009 = vunpack.c.h.b16 %v3911
        %v4010 = vunpack.c.l.b16 %v3912
        %v4011 = vunpack.c.l.b16 %v3913
        %v4012 = vunpack.c.h.b16 %v3913
        %v4013 = vunpack.c.l.b16 %v3914
        %v4014 = vunpack.c.h.b16 %v3914
        %v4015 = vunpack.c.l.b16 %v3915
        %v4016 = vunpack.c.l.b16 %v3916
        %v4017 = vunpack.c.h.b16 %v3916
        %v4018 = vunpack.c.l.b16 %v3917
        %v4019 = vunpack.c.h.b16 %v3917
        %v4020 = vunpack.c.l.b16 %v3918
        %v4021 = vunpack.c.l.b16 %v3919
        %v4022 = vunpack.c.h.b16 %v3919
        %v4023 = vunpack.c.l.b16 %v3920
        %v4024 = vunpack.c.h.b16 %v3920
        %v4025 = vunpack.c.l.b16 %v3921
        %v4026 = vunpack.c.l.b16 %v3922
        %v4027 = vunpack.c.h.b16 %v3922
        %v4028 = vunpack.c.l.b16 %v3923
        %v4029 = vunpack.c.h.b16 %v3923
        %v4030 = vunpack.c.l.b16 %v3924
        %v4031 = vunpack.c.l.b16 %v3925
        %v4032 = vunpack.c.h.b16 %v3925
        %v4033 = vunpack.c.l.b16 %v3926
        %v4034 = vunpack.c.h.b16 %v3926
        %v4035 = vunpack.c.l.b16 %v3927
        %v4036 = vunpack.c.l.b16 %v3928
        %v4037 = vunpack.c.h.b16 %v3928
        %v4038 = vunpack.c.l.b16 %v3929
        %v4039 = vunpack.c.h.b16 %v3929
        %v4040 = vunpack.c.l.b16 %v3930
        %v4041 = vunpack.c.l.b16 %v3931
        %v4042 = vunpack.c.h.b16 %v3931
        %v4043 = vunpack.c.l.b16 %v3932
        %v4044 = vunpack.c.h.b16 %v3932
        %v4045 = vunpack.c.l.b16 %v3933
        %v4046 = vunpack.c.l.b16 %v3934
        %v4047 = vunpack.c.h.b16 %v3934
        %v4048 = vunpack.c.l.b16 %v3935
        %v4049 = vunpack.c.h.b16 %v3935
        %v4050 = vunpack.c.l.b16 %v3936
        %v4051 = vunpack.c.l.b16 %v3937
        %v4052 = vunpack.c.h.b16 %v3937
        %v4053 = vunpack.c.l.b16 %v3938
        %v4054 = vunpack.c.h.b16 %v3938
        %v4055 = vunpack.c.l.b16 %v3939
        %v4056 = vunpack.c.l.b16 %v3940
        %v4057 = vunpack.c.h.b16 %v3940
        %v4058 = vunpack.c.l.b16 %v3941
        %v4059 = vunpack.c.h.b16 %v3941
        %v4060 = vunpack.c.l.b16 %v3942
        %v4061 = vunpack.c.l.b16 %v3943
        %v4062 = vunpack.c.h.b16 %v3943
        %v4063 = vunpack.c.l.b16 %v3944
        %v4064 = vunpack.c.h.b16 %v3944
        %v4065 = vunpack.c.l.b16 %v3945
        %v4066 = vunpack.c.l.b16 %v3946
        %v4067 = vunpack.c.h.b16 %v3946
        %v4068 = vunpack.c.l.b16 %v3947
        %v4069 = vunpack.c.h.b16 %v3947
        %v4070 = vunpack.c.l.b16 %v3948
        %v4071 = vunpack.c.l.b16 %v3949
        %v4072 = vunpack.c.h.b16 %v3949
        %v4073 = vunpack.c.l.b16 %v3950
        %v4074 = vunpack.c.h.b16 %v3950
        %v4075 = vunpack.c.l.b16 %v3951
        %v4076 = vunpack.c.l.b16 %v3952
        %v4077 = vunpack.c.h.b16 %v3952
        %v4078 = vunpack.c.l.b16 %v3953
        %v4079 = vunpack.c.h.b16 %v3953
        %v4080 = vunpack.c.l.b16 %v3954
        %v4081 = vunpack.c.l.b16 %v3955
        %v4082 = vunpack.c.h.b16 %v3955
        %v4083 = vunpack.c.l.b16 %v3956
        %v4084 = vunpack.c.h.b16 %v3956
        %v4085 = vunpack.c.l.b16 %v3957
        %v4086 = vpack.c.b16 %v4011, %v4006
        %v4087 = vpack.c.b16 %v4012, %v4007
        %v4088 = vpack.c.b16 %v4013, %v4008
        %v4089 = vpack.c.b16 %v4014, %v4009
        %v4090 = vpack.c.b16 %v4015, %v4010
        %v4091 = vpack.c.b16 %v4021, %v4016
        %v4092 = vpack.c.b16 %v4022, %v4017
        %v4093 = vpack.c.b16 %v4023, %v4018
        %v4094 = vpack.c.b16 %v4024, %v4019
        %v4095 = vpack.c.b16 %v4025, %v4020
        %v4096 = vpack.c.b16 %v4031, %v4026
        %v4097 = vpack.c.b16 %v4032, %v4027
        %v4098 = vpack.c.b16 %v4033, %v4028
        %v4099 = vpack.c.b16 %v4034, %v4029
        %v4100 = vpack.c.b16 %v4035, %v4030
        %v4101 = vpack.c.b16 %v4041, %v4036
        %v4102 = vpack.c.b16 %v4042, %v4037
        %v4103 = vpack.c.b16 %v4043, %v4038
        %v4104 = vpack.c.b16 %v4044, %v4039
        %v4105 = vpack.c.b16 %v4045, %v4040
        %v4106 = vpack.c.b16 %v4051, %v4046
        %v4107 = vpack.c.b16 %v4052, %v4047
        %v4108 = vpack.c.b16 %v4053, %v4048
        %v4109 = vpack.c.b16 %v4054, %v4049
        %v4110 = vpack.c.b16 %v4055, %v4050
        %v4111 = vpack.c.b16 %v4061, %v4056
        %v4112 = vpack.c.b16 %v4062, %v4057
        %v4113 = vpack.c.b16 %v4063, %v4058
        %v4114 = vpack.c.b16 %v4064, %v4059
        %v4115 = vpack.c.b16 %v4065, %v4060
        %v4116 = vpack.c.b16 %v4071, %v4066
        %v4117 = vpack.c.b16 %v4072, %v4067
        %v4118 = vpack.c.b16 %v4073, %v4068
        %v4119 = vpack.c.b16 %v4074, %v4069
        %v4120 = vpack.c.b16 %v4075, %v4070
        %v4121 = vpack.c.b16 %v4081, %v4076
        %v4122 = vpack.c.b16 %v4082, %v4077
        %v4123 = vpack.c.b16 %v4083, %v4078
        %v4124 = vpack.c.b16 %v4084, %v4079
        %v4125 = vpack.c.b16 %v4085, %v4080
        %4166 = vmatprep.subr.bf16.mxu0 %v4087
        %4167 = vmatpush1.bf16.msra.mxu0 %v4086
        %4168 = vmatprep.subr.bf16.mxu0 %v4092
        %4169 = vmatpush1.bf16.msra.mxu0 %v4091
        %4170 = vmatprep.subr.bf16.mxu0 %v4097
        %4171 = vmatpush1.bf16.msra.mxu0 %v4096
        %4172 = vmatprep.subr.bf16.mxu0 %v4102
        %4173 = vmatpush1.bf16.msra.mxu0 %v4101
        %4174 = vmatprep.subr.bf16.mxu0 %v4107
        %4175 = vmatpush1.bf16.msra.mxu0 %v4106
        %4176 = vmatprep.subr.bf16.mxu0 %v4112
        %4177 = vmatpush1.bf16.msra.mxu0 %v4111
        %4178 = vmatprep.subr.bf16.mxu0 %v4117
        %4179 = vmatpush1.bf16.msra.mxu0 %v4116
        %4180 = vmatprep.subr.bf16.mxu0 %v4122
        %4181 = vmatpush1.bf16.msra.mxu0 %v4121
        %4182 = vmatprep.subr.bf16.mxu0 0
        %4183 = vmatpush1.bf16.msra.mxu0 0
        %4184 = vmatprep.subr.bf16.mxu0 0
        %4185 = vmatpush1.bf16.msra.mxu0 0
        %4186 = vmatprep.subr.bf16.mxu0 0
        %4187 = vmatpush1.bf16.msra.mxu0 0
        %4188 = vmatprep.subr.bf16.mxu0 0
        %4189 = vmatpush1.bf16.msra.mxu0 0
        %4190 = vmatprep.subr.bf16.mxu0 0
        %4191 = vmatpush1.bf16.msra.mxu0 0
        %4192 = vmatprep.subr.bf16.mxu0 0
        %4193 = vmatpush1.bf16.msra.mxu0 0
        %4194 = vmatprep.subr.bf16.mxu0 0
        %4195 = vmatpush1.bf16.msra.mxu0 0
        %4196 = vmatprep.subr.bf16.mxu0 0
        %4197 = vmatpush1.bf16.msra.mxu0 0
        %4198 = vmatprep.mubr.bf16.mxu0 0
        %4199 = vmatmul.mubr.bf16.gmra.mrb[0].mxu0 %v3909
        %v4200 = vpop.f32.mrb[0].mxu0
        %v4201 = vadd.f32 0.0, %v4200
        %v4202 = vpop.f32.mrb[0].mxu0
        %v4203 = vadd.f32 0.0, %v4202
        %v4204 = vpop.f32.mrb[0].mxu0
        %v4205 = vpop.f32.mrb[0].mxu0
        %4206 = vdwg.mxu0
        %4207 = vmatprep.subr.bf16.mxu0 %v4089
        %4208 = vmatpush1.bf16.msra.mxu0 %v4088
        %4209 = vmatprep.subr.bf16.mxu0 %v4094
        %4210 = vmatpush1.bf16.msra.mxu0 %v4093
        %4211 = vmatprep.subr.bf16.mxu0 %v4099
        %4212 = vmatpush1.bf16.msra.mxu0 %v4098
        %4213 = vmatprep.subr.bf16.mxu0 %v4104
        %4214 = vmatpush1.bf16.msra.mxu0 %v4103
        %4215 = vmatprep.subr.bf16.mxu0 %v4109
        %4216 = vmatpush1.bf16.msra.mxu0 %v4108
        %4217 = vmatprep.subr.bf16.mxu0 %v4114
        %4218 = vmatpush1.bf16.msra.mxu0 %v4113
        %4219 = vmatprep.subr.bf16.mxu0 %v4119
        %4220 = vmatpush1.bf16.msra.mxu0 %v4118
        %4221 = vmatprep.subr.bf16.mxu0 %v4124
        %4222 = vmatpush1.bf16.msra.mxu0 %v4123
        %4223 = vmatprep.subr.bf16.mxu0 0
        %4224 = vmatpush1.bf16.msra.mxu0 0
        %4225 = vmatprep.subr.bf16.mxu0 0
        %4226 = vmatpush1.bf16.msra.mxu0 0
        %4227 = vmatprep.subr.bf16.mxu0 0
        %4228 = vmatpush1.bf16.msra.mxu0 0
        %4229 = vmatprep.subr.bf16.mxu0 0
        %4230 = vmatpush1.bf16.msra.mxu0 0
        %4231 = vmatprep.subr.bf16.mxu0 0
        %4232 = vmatpush1.bf16.msra.mxu0 0
        %4233 = vmatprep.subr.bf16.mxu0 0
        %4234 = vmatpush1.bf16.msra.mxu0 0
        %4235 = vmatprep.subr.bf16.mxu0 0
        %4236 = vmatpush1.bf16.msra.mxu0 0
        %4237 = vmatprep.subr.bf16.mxu0 0
        %4238 = vmatpush1.bf16.msra.mxu0 0
        %4239 = vmatprep.mubr.bf16.mxu0 0
        %4240 = vmatmul.mubr.bf16.gmra.mrb[0].mxu0 %v3909
        %v4241 = vpop.f32.mrb[0].mxu0
        %v4242 = vadd.f32 0.0, %v4241
        %v4243 = vpop.f32.mrb[0].mxu0
        %v4244 = vadd.f32 0.0, %v4243
        %v4245 = vpop.f32.mrb[0].mxu0
        %v4246 = vpop.f32.mrb[0].mxu0
        %4247 = vdwg.mxu0
        %4248 = vmatprep.subr.bf16.mxu0 0
        %4249 = vmatpush1.bf16.msra.mxu0 %v4090
        %4250 = vmatprep.subr.bf16.mxu0 0
        %4251 = vmatpush1.bf16.msra.mxu0 %v4095
        %4252 = vmatprep.subr.bf16.mxu0 0
        %4253 = vmatpush1.bf16.msra.mxu0 %v4100
        %4254 = vmatprep.subr.bf16.mxu0 0
        %4255 = vmatpush1.bf16.msra.mxu0 %v4105
        %4256 = vmatprep.subr.bf16.mxu0 0
        %4257 = vmatpush1.bf16.msra.mxu0 %v4110
        %4258 = vmatprep.subr.bf16.mxu0 0
        %4259 = vmatpush1.bf16.msra.mxu0 %v4115
        %4260 = vmatprep.subr.bf16.mxu0 0
        %4261 = vmatpush1.bf16.msra.mxu0 %v4120
        %4262 = vmatprep.subr.bf16.mxu0 0
        %4263 = vmatpush1.bf16.msra.mxu0 %v4125
        %4264 = vmatprep.subr.bf16.mxu0 0
        %4265 = vmatpush1.bf16.msra.mxu0 0
        %4266 = vmatprep.subr.bf16.mxu0 0
        %4267 = vmatpush1.bf16.msra.mxu0 0
        %4268 = vmatprep.subr.bf16.mxu0 0
        %4269 = vmatpush1.bf16.msra.mxu0 0
        %4270 = vmatprep.subr.bf16.mxu0 0
        %4271 = vmatpush1.bf16.msra.mxu0 0
        %4272 = vmatprep.subr.bf16.mxu0 0
        %4273 = vmatpush1.bf16.msra.mxu0 0
        %4274 = vmatprep.subr.bf16.mxu0 0
        %4275 = vmatpush1.bf16.msra.mxu0 0
        %4276 = vmatprep.subr.bf16.mxu0 0
        %4277 = vmatpush1.bf16.msra.mxu0 0
        %4278 = vmatprep.subr.bf16.mxu0 0
        %4279 = vmatpush1.bf16.msra.mxu0 0
        %4280 = vmatprep.mubr.bf16.mxu0 0
        %4281 = vmatmul.mubr.bf16.gmra.mrb[0].mxu0 %v3909
        %v4282 = vpop.f32.mrb[0].mxu0
        %v4283 = vadd.f32 0.0, %v4282
        %v4284 = vpop.f32.mrb[0].mxu0
        %v4285 = vpop.f32.mrb[0].mxu0
        %v4286 = vpop.f32.mrb[0].mxu0
        %4287 = vdwg.mxu0
        %v4288 = vpack.c.bf16 %v4201, %v4201
        %v4289 = vpack.c.bf16 %v4203, %v4203
        %v4290 = vpack.c.bf16 %v4242, %v4242
        %v4291 = vpack.c.bf16 %v4244, %v4244
        %v4292 = vpack.c.bf16 %v4283, %v4283
        %v4293 = vld [vmem:[#allocation7 + $0x5f4] sm:$0x1]
        %v4294 = vunpack.c.l.bf16 %v4293
        %v4295 = vld [vmem:[#allocation7 + $0x5cc] sm:$0xf]
        %v4296 = vld [vmem:[#allocation7 + $0x5d0] sm:$0xf]
        %v4299 = vunpack.c.l.b16 %v4295
        %v4300 = vunpack.c.l.b16 %v4296
        %v4301 = vpack.c.b16 %v4300, %v4299
        %vm4302 = vcmask 39936
        %v4304 = vsel %vm4302, %v4301, 0
        %vm4306 = vcmask 1041408
        %v4307 = vsel %vm4306, 4294967295, 65535
        %v4308 = vsel %vm1357, %v4307, 0
        %v4310 = vand.u32 %v4288, %v4308
        %4312 = vmatprep.subr.bf16.mxu0 0
        %4313 = vmatpush1.bf16.msra.mxu0 %v4310
        %4314 = vmatprep.subr.bf16.mxu0 0
        %4315 = vmatpush1.bf16.msra.mxu0 0
        %4316 = vmatprep.subr.bf16.mxu0 0
        %4317 = vmatpush1.bf16.msra.mxu0 0
        %4318 = vmatprep.subr.bf16.mxu0 0
        %4319 = vmatpush1.bf16.msra.mxu0 0
        %4320 = vmatprep.subr.bf16.mxu0 0
        %4321 = vmatpush1.bf16.msra.mxu0 0
        %4322 = vmatprep.subr.bf16.mxu0 0
        %4323 = vmatpush1.bf16.msra.mxu0 0
        %4324 = vmatprep.subr.bf16.mxu0 0
        %4325 = vmatpush1.bf16.msra.mxu0 0
        %4326 = vmatprep.subr.bf16.mxu0 0
        %4327 = vmatpush1.bf16.msra.mxu0 0
        %4328 = vmatprep.subr.bf16.mxu0 0
        %4329 = vmatpush1.bf16.msra.mxu0 0
        %4330 = vmatprep.subr.bf16.mxu0 0
        %4331 = vmatpush1.bf16.msra.mxu0 0
        %4332 = vmatprep.subr.bf16.mxu0 0
        %4333 = vmatpush1.bf16.msra.mxu0 0
        %4334 = vmatprep.subr.bf16.mxu0 0
        %4335 = vmatpush1.bf16.msra.mxu0 0
        %4336 = vmatprep.subr.bf16.mxu0 0
        %4337 = vmatpush1.bf16.msra.mxu0 0
        %4338 = vmatprep.subr.bf16.mxu0 0
        %4339 = vmatpush1.bf16.msra.mxu0 0
        %4340 = vmatprep.subr.bf16.mxu0 0
        %4341 = vmatpush1.bf16.msra.mxu0 0
        %4342 = vmatprep.subr.bf16.mxu0 0
        %4343 = vmatpush1.bf16.msra.mxu0 0
        %4344 = vmatprep.mubr.bf16.mxu0 0
        %4345 = vmatmul.mubr.bf16.gmra.mrb[0].mxu0 %v4304
        %v4346 = vpop.f32.mrb[0].mxu0
        %v4347 = vadd.f32 0.0, %v4346
        %v4348 = vpop.f32.mrb[0].mxu0
        %v4349 = vpop.f32.mrb[0].mxu0
        %v4350 = vadd.f32 0.0, %v4349
        %v4351 = vpop.f32.mrb[0].mxu0
        %4352 = vdwg.mxu0
        %v4353 = vlaneseq
        %v4354 = vshrl.u32 %v4353, 7
        %v4355 = vsub.s32 0, %v4354
        %v4356 = vrot.slane %v4294, %v4355
        %v4357 = vadd.f32 %v4356, %v4347
        %v4358 = vadd.f32 %v4356, %v4350
        %v4359 = vld [vmem:[#allocation7 + $0x5d4] sm:$0xf]
        %v4360 = vld [vmem:[#allocation7 + $0x5d8] sm:$0xf]
        %v4363 = vunpack.c.l.b16 %v4359
        %v4364 = vunpack.c.l.b16 %v4360
        %v4365 = vpack.c.b16 %v4364, %v4363
        %v4367 = vsel %vm4302, %v4365, 0
        %v4370 = vand.u32 %v4289, %v4308
        %4372 = vmatprep.subr.bf16.mxu0 0
        %4373 = vmatpush1.bf16.msra.mxu0 %v4370
        %4374 = vmatprep.subr.bf16.mxu0 0
        %4375 = vmatpush1.bf16.msra.mxu0 0
        %4376 = vmatprep.subr.bf16.mxu0 0
        %4377 = vmatpush1.bf16.msra.mxu0 0
        %4378 = vmatprep.subr.bf16.mxu0 0
        %4379 = vmatpush1.bf16.msra.mxu0 0
        %4380 = vmatprep.subr.bf16.mxu0 0
        %4381 = vmatpush1.bf16.msra.mxu0 0
        %4382 = vmatprep.subr.bf16.mxu0 0
        %4383 = vmatpush1.bf16.msra.mxu0 0
        %4384 = vmatprep.subr.bf16.mxu0 0
        %4385 = vmatpush1.bf16.msra.mxu0 0
        %4386 = vmatprep.subr.bf16.mxu0 0
        %4387 = vmatpush1.bf16.msra.mxu0 0
        %4388 = vmatprep.subr.bf16.mxu0 0
        %4389 = vmatpush1.bf16.msra.mxu0 0
        %4390 = vmatprep.subr.bf16.mxu0 0
        %4391 = vmatpush1.bf16.msra.mxu0 0
        %4392 = vmatprep.subr.bf16.mxu0 0
        %4393 = vmatpush1.bf16.msra.mxu0 0
        %4394 = vmatprep.subr.bf16.mxu0 0
        %4395 = vmatpush1.bf16.msra.mxu0 0
        %4396 = vmatprep.subr.bf16.mxu0 0
        %4397 = vmatpush1.bf16.msra.mxu0 0
        %4398 = vmatprep.subr.bf16.mxu0 0
        %4399 = vmatpush1.bf16.msra.mxu0 0
        %4400 = vmatprep.subr.bf16.mxu0 0
        %4401 = vmatpush1.bf16.msra.mxu0 0
        %4402 = vmatprep.subr.bf16.mxu0 0
        %4403 = vmatpush1.bf16.msra.mxu0 0
        %4404 = vmatprep.mubr.bf16.mxu0 0
        %4405 = vmatmul.mubr.bf16.gmra.mrb[0].mxu0 %v4367
        %v4406 = vpop.f32.mrb[0].mxu0
        %v4407 = vadd.f32 0.0, %v4406
        %v4408 = vpop.f32.mrb[0].mxu0
        %v4409 = vpop.f32.mrb[0].mxu0
        %v4410 = vadd.f32 0.0, %v4409
        %v4411 = vpop.f32.mrb[0].mxu0
        %4412 = vdwg.mxu0
        %v4413 = vadd.f32 %v4357, %v4407
        %v4414 = vadd.f32 %v4358, %v4410
        %v4415 = vld [vmem:[#allocation7 + $0x5dc] sm:$0xf]
        %v4416 = vld [vmem:[#allocation7 + $0x5e0] sm:$0xf]
        %v4419 = vunpack.c.l.b16 %v4415
        %v4420 = vunpack.c.l.b16 %v4416
        %v4421 = vpack.c.b16 %v4420, %v4419
        %v4423 = vsel %vm4302, %v4421, 0
        %v4426 = vand.u32 %v4290, %v4308
        %4428 = vmatprep.subr.bf16.mxu0 0
        %4429 = vmatpush1.bf16.msra.mxu0 %v4426
        %4430 = vmatprep.subr.bf16.mxu0 0
        %4431 = vmatpush1.bf16.msra.mxu0 0
        %4432 = vmatprep.subr.bf16.mxu0 0
        %4433 = vmatpush1.bf16.msra.mxu0 0
        %4434 = vmatprep.subr.bf16.mxu0 0
        %4435 = vmatpush1.bf16.msra.mxu0 0
        %4436 = vmatprep.subr.bf16.mxu0 0
        %4437 = vmatpush1.bf16.msra.mxu0 0
        %4438 = vmatprep.subr.bf16.mxu0 0
        %4439 = vmatpush1.bf16.msra.mxu0 0
        %4440 = vmatprep.subr.bf16.mxu0 0
        %4441 = vmatpush1.bf16.msra.mxu0 0
        %4442 = vmatprep.subr.bf16.mxu0 0
        %4443 = vmatpush1.bf16.msra.mxu0 0
        %4444 = vmatprep.subr.bf16.mxu0 0
        %4445 = vmatpush1.bf16.msra.mxu0 0
        %4446 = vmatprep.subr.bf16.mxu0 0
        %4447 = vmatpush1.bf16.msra.mxu0 0
        %4448 = vmatprep.subr.bf16.mxu0 0
        %4449 = vmatpush1.bf16.msra.mxu0 0
        %4450 = vmatprep.subr.bf16.mxu0 0
        %4451 = vmatpush1.bf16.msra.mxu0 0
        %4452 = vmatprep.subr.bf16.mxu0 0
        %4453 = vmatpush1.bf16.msra.mxu0 0
        %4454 = vmatprep.subr.bf16.mxu0 0
        %4455 = vmatpush1.bf16.msra.mxu0 0
        %4456 = vmatprep.subr.bf16.mxu0 0
        %4457 = vmatpush1.bf16.msra.mxu0 0
        %4458 = vmatprep.subr.bf16.mxu0 0
        %4459 = vmatpush1.bf16.msra.mxu0 0
        %4460 = vmatprep.mubr.bf16.mxu0 0
        %4461 = vmatmul.mubr.bf16.gmra.mrb[0].mxu0 %v4423
        %v4462 = vpop.f32.mrb[0].mxu0
        %v4463 = vadd.f32 0.0, %v4462
        %v4464 = vpop.f32.mrb[0].mxu0
        %v4465 = vpop.f32.mrb[0].mxu0
        %v4466 = vadd.f32 0.0, %v4465
        %v4467 = vpop.f32.mrb[0].mxu0
        %4468 = vdwg.mxu0
        %v4469 = vadd.f32 %v4413, %v4463
        %v4470 = vadd.f32 %v4414, %v4466
        %v4471 = vld [vmem:[#allocation7 + $0x5e4] sm:$0xf]
        %v4472 = vld [vmem:[#allocation7 + $0x5e8] sm:$0xf]
        %v4475 = vunpack.c.l.b16 %v4471
        %v4476 = vunpack.c.l.b16 %v4472
        %v4477 = vpack.c.b16 %v4476, %v4475
        %v4479 = vsel %vm4302, %v4477, 0
        %v4482 = vand.u32 %v4291, %v4308
        %4484 = vmatprep.subr.bf16.mxu0 0
        %4485 = vmatpush1.bf16.msra.mxu0 %v4482
        %4486 = vmatprep.subr.bf16.mxu0 0
        %4487 = vmatpush1.bf16.msra.mxu0 0
        %4488 = vmatprep.subr.bf16.mxu0 0
        %4489 = vmatpush1.bf16.msra.mxu0 0
        %4490 = vmatprep.subr.bf16.mxu0 0
        %4491 = vmatpush1.bf16.msra.mxu0 0
        %4492 = vmatprep.subr.bf16.mxu0 0
        %4493 = vmatpush1.bf16.msra.mxu0 0
        %4494 = vmatprep.subr.bf16.mxu0 0
        %4495 = vmatpush1.bf16.msra.mxu0 0
        %4496 = vmatprep.subr.bf16.mxu0 0
        %4497 = vmatpush1.bf16.msra.mxu0 0
        %4498 = vmatprep.subr.bf16.mxu0 0
        %4499 = vmatpush1.bf16.msra.mxu0 0
        %4500 = vmatprep.subr.bf16.mxu0 0
        %4501 = vmatpush1.bf16.msra.mxu0 0
        %4502 = vmatprep.subr.bf16.mxu0 0
        %4503 = vmatpush1.bf16.msra.mxu0 0
        %4504 = vmatprep.subr.bf16.mxu0 0
        %4505 = vmatpush1.bf16.msra.mxu0 0
        %4506 = vmatprep.subr.bf16.mxu0 0
        %4507 = vmatpush1.bf16.msra.mxu0 0
        %4508 = vmatprep.subr.bf16.mxu0 0
        %4509 = vmatpush1.bf16.msra.mxu0 0
        %4510 = vmatprep.subr.bf16.mxu0 0
        %4511 = vmatpush1.bf16.msra.mxu0 0
        %4512 = vmatprep.subr.bf16.mxu0 0
        %4513 = vmatpush1.bf16.msra.mxu0 0
        %4514 = vmatprep.subr.bf16.mxu0 0
        %4515 = vmatpush1.bf16.msra.mxu0 0
        %4516 = vmatprep.mubr.bf16.mxu0 0
        %4517 = vmatmul.mubr.bf16.gmra.mrb[0].mxu0 %v4479
        %v4518 = vpop.f32.mrb[0].mxu0
        %v4519 = vadd.f32 0.0, %v4518
        %v4520 = vpop.f32.mrb[0].mxu0
        %v4521 = vpop.f32.mrb[0].mxu0
        %v4522 = vadd.f32 0.0, %v4521
        %v4523 = vpop.f32.mrb[0].mxu0
        %4524 = vdwg.mxu0
        %v4525 = vadd.f32 %v4469, %v4519
        %v4526 = vadd.f32 %v4470, %v4522
        %v4527 = vld [vmem:[#allocation7 + $0x5ec] sm:$0xf]
        %v4528 = vld [vmem:[#allocation7 + $0x5f0] sm:$0xf]
        %v4531 = vunpack.c.l.b16 %v4527
        %v4532 = vunpack.c.l.b16 %v4528
        %v4533 = vpack.c.b16 %v4532, %v4531
        %v4535 = vsel %vm4302, %v4533, 0
        %v4538 = vand.u32 %v4292, %v4308
        %4540 = vmatprep.subr.bf16.mxu0 0
        %4541 = vmatpush1.bf16.msra.mxu0 %v4538
        %4542 = vmatprep.subr.bf16.mxu0 0
        %4543 = vmatpush1.bf16.msra.mxu0 0
        %4544 = vmatprep.subr.bf16.mxu0 0
        %4545 = vmatpush1.bf16.msra.mxu0 0
        %4546 = vmatprep.subr.bf16.mxu0 0
        %4547 = vmatpush1.bf16.msra.mxu0 0
        %4548 = vmatprep.subr.bf16.mxu0 0
        %4549 = vmatpush1.bf16.msra.mxu0 0
        %4550 = vmatprep.subr.bf16.mxu0 0
        %4551 = vmatpush1.bf16.msra.mxu0 0
        %4552 = vmatprep.subr.bf16.mxu0 0
        %4553 = vmatpush1.bf16.msra.mxu0 0
        %4554 = vmatprep.subr.bf16.mxu0 0
        %4555 = vmatpush1.bf16.msra.mxu0 0
        %4556 = vmatprep.subr.bf16.mxu0 0
        %4557 = vmatpush1.bf16.msra.mxu0 0
        %4558 = vmatprep.subr.bf16.mxu0 0
        %4559 = vmatpush1.bf16.msra.mxu0 0
        %4560 = vmatprep.subr.bf16.mxu0 0
        %4561 = vmatpush1.bf16.msra.mxu0 0
        %4562 = vmatprep.subr.bf16.mxu0 0
        %4563 = vmatpush1.bf16.msra.mxu0 0
        %4564 = vmatprep.subr.bf16.mxu0 0
        %4565 = vmatpush1.bf16.msra.mxu0 0
        %4566 = vmatprep.subr.bf16.mxu0 0
        %4567 = vmatpush1.bf16.msra.mxu0 0
        %4568 = vmatprep.subr.bf16.mxu0 0
        %4569 = vmatpush1.bf16.msra.mxu0 0
        %4570 = vmatprep.subr.bf16.mxu0 0
        %4571 = vmatpush1.bf16.msra.mxu0 0
        %4572 = vmatprep.mubr.bf16.mxu0 0
        %4573 = vmatmul.mubr.bf16.gmra.mrb[0].mxu0 %v4535
        %v4574 = vpop.f32.mrb[0].mxu0
        %v4575 = vadd.f32 0.0, %v4574
        %v4576 = vpop.f32.mrb[0].mxu0
        %v4577 = vpop.f32.mrb[0].mxu0
        %v4578 = vadd.f32 0.0, %v4577
        %v4579 = vpop.f32.mrb[0].mxu0
        %4580 = vdwg.mxu0
        %v4581 = vadd.f32 %v4525, %v4575
        %v4582 = vadd.f32 %v4526, %v4578
        %v4583 = vmax.f32 %v4581, 0.0
        %v4584 = vmax.f32 %v4582, 0.0
        %v4585 = vpack.c.bf16 %v4584, %v4583
        %v4586 = vld [vmem:[#allocation5 + $0x300] sm:$0xff]
        %v4587 = vld [vmem:[#allocation5 + $0x308] sm:$0xff]
        %v4588 = vld [vmem:[#allocation5 + $0x310] sm:$0xff]
        %v4589 = vld [vmem:[#allocation5 + $0x318] sm:$0xff]
        %v4590 = vld [vmem:[#allocation5 + $0x320] sm:$0xff]
        %v4591 = vld [vmem:[#allocation5 + $0x328] sm:$0xff]
        %v4592 = vld [vmem:[#allocation5 + $0x330] sm:$0xff]
        %v4593 = vld [vmem:[#allocation5 + $0x338] sm:$0xff]
        %v4594 = vld [vmem:[#allocation5 + $0x340] sm:$0xff]
        %v4595 = vld [vmem:[#allocation5 + $0x348] sm:$0xff]
        %v4596 = vld [vmem:[#allocation5 + $0x350] sm:$0xff]
        %v4597 = vld [vmem:[#allocation5 + $0x358] sm:$0xff]
        %v4598 = vld [vmem:[#allocation5 + $0x360] sm:$0xff]
        %v4599 = vld [vmem:[#allocation5 + $0x368] sm:$0xff]
        %v4600 = vld [vmem:[#allocation5 + $0x370] sm:$0xff]
        %v4601 = vld [vmem:[#allocation5 + $0x378] sm:$0xff]
        %v4602 = vld [vmem:[#allocation5 + $0x380] sm:$0xff]
        %v4603 = vld [vmem:[#allocation5 + $0x388] sm:$0xff]
        %v4604 = vld [vmem:[#allocation5 + $0x390] sm:$0xff]
        %v4605 = vld [vmem:[#allocation5 + $0x398] sm:$0xff]
        %v4606 = vld [vmem:[#allocation5 + $0x3a0] sm:$0xff]
        %v4607 = vld [vmem:[#allocation5 + $0x3a8] sm:$0xff]
        %v4608 = vld [vmem:[#allocation5 + $0x3b0] sm:$0xff]
        %v4609 = vld [vmem:[#allocation5 + $0x3b8] sm:$0xff]
        %v4610 = vld [vmem:[#allocation5 + $0x3c0] sm:$0xff]
        %v4611 = vld [vmem:[#allocation5 + $0x3c8] sm:$0xff]
        %v4612 = vld [vmem:[#allocation5 + $0x3d0] sm:$0xff]
        %v4613 = vld [vmem:[#allocation5 + $0x3d8] sm:$0xff]
        %v4614 = vld [vmem:[#allocation5 + $0x3e0] sm:$0xff]
        %v4615 = vld [vmem:[#allocation5 + $0x3e8] sm:$0xff]
        %v4616 = vld [vmem:[#allocation5 + $0x3f0] sm:$0xff]
        %v4617 = vld [vmem:[#allocation5 + $0x3f8] sm:$0xff]
        %v4618 = vld [vmem:[#allocation5 + $0x400] sm:$0xff]
        %v4619 = vld [vmem:[#allocation5 + $0x408] sm:$0xff]
        %v4620 = vld [vmem:[#allocation5 + $0x410] sm:$0xff]
        %v4621 = vld [vmem:[#allocation5 + $0x418] sm:$0xff]
        %v4622 = vld [vmem:[#allocation5 + $0x420] sm:$0xff]
        %v4623 = vld [vmem:[#allocation5 + $0x428] sm:$0xff]
        %v4624 = vld [vmem:[#allocation5 + $0x430] sm:$0xff]
        %v4625 = vld [vmem:[#allocation5 + $0x438] sm:$0xff]
        %v4626 = vld [vmem:[#allocation5 + $0x440] sm:$0xff]
        %v4627 = vld [vmem:[#allocation5 + $0x448] sm:$0xff]
        %v4628 = vld [vmem:[#allocation5 + $0x450] sm:$0xff]
        %v4629 = vld [vmem:[#allocation5 + $0x458] sm:$0xff]
        %v4630 = vld [vmem:[#allocation5 + $0x460] sm:$0xff]
        %v4631 = vld [vmem:[#allocation5 + $0x468] sm:$0xff]
        %v4632 = vld [vmem:[#allocation5 + $0x470] sm:$0xff]
        %v4633 = vld [vmem:[#allocation5 + $0x478] sm:$0xff]
        %v4682 = vunpack.c.l.b16 %v4586
        %v4683 = vunpack.c.h.b16 %v4586
        %v4684 = vunpack.c.l.b16 %v4587
        %v4685 = vunpack.c.h.b16 %v4587
        %v4686 = vunpack.c.l.b16 %v4588
        %v4687 = vunpack.c.h.b16 %v4588
        %v4688 = vunpack.c.l.b16 %v4589
        %v4689 = vunpack.c.h.b16 %v4589
        %v4690 = vunpack.c.l.b16 %v4590
        %v4691 = vunpack.c.h.b16 %v4590
        %v4692 = vunpack.c.l.b16 %v4591
        %v4693 = vunpack.c.h.b16 %v4591
        %v4694 = vunpack.c.l.b16 %v4592
        %v4695 = vunpack.c.h.b16 %v4592
        %v4696 = vunpack.c.l.b16 %v4593
        %v4697 = vunpack.c.h.b16 %v4593
        %v4698 = vunpack.c.l.b16 %v4594
        %v4699 = vunpack.c.h.b16 %v4594
        %v4700 = vunpack.c.l.b16 %v4595
        %v4701 = vunpack.c.h.b16 %v4595
        %v4702 = vunpack.c.l.b16 %v4596
        %v4703 = vunpack.c.h.b16 %v4596
        %v4704 = vunpack.c.l.b16 %v4597
        %v4705 = vunpack.c.h.b16 %v4597
        %v4706 = vunpack.c.l.b16 %v4598
        %v4707 = vunpack.c.h.b16 %v4598
        %v4708 = vunpack.c.l.b16 %v4599
        %v4709 = vunpack.c.h.b16 %v4599
        %v4710 = vunpack.c.l.b16 %v4600
        %v4711 = vunpack.c.h.b16 %v4600
        %v4712 = vunpack.c.l.b16 %v4601
        %v4713 = vunpack.c.h.b16 %v4601
        %v4714 = vunpack.c.l.b16 %v4602
        %v4715 = vunpack.c.h.b16 %v4602
        %v4716 = vunpack.c.l.b16 %v4603
        %v4717 = vunpack.c.h.b16 %v4603
        %v4718 = vunpack.c.l.b16 %v4604
        %v4719 = vunpack.c.h.b16 %v4604
        %v4720 = vunpack.c.l.b16 %v4605
        %v4721 = vunpack.c.h.b16 %v4605
        %v4722 = vunpack.c.l.b16 %v4606
        %v4723 = vunpack.c.h.b16 %v4606
        %v4724 = vunpack.c.l.b16 %v4607
        %v4725 = vunpack.c.h.b16 %v4607
        %v4726 = vunpack.c.l.b16 %v4608
        %v4727 = vunpack.c.h.b16 %v4608
        %v4728 = vunpack.c.l.b16 %v4609
        %v4729 = vunpack.c.h.b16 %v4609
        %v4730 = vunpack.c.l.b16 %v4610
        %v4731 = vunpack.c.h.b16 %v4610
        %v4732 = vunpack.c.l.b16 %v4611
        %v4733 = vunpack.c.h.b16 %v4611
        %v4734 = vunpack.c.l.b16 %v4612
        %v4735 = vunpack.c.h.b16 %v4612
        %v4736 = vunpack.c.l.b16 %v4613
        %v4737 = vunpack.c.h.b16 %v4613
        %v4738 = vunpack.c.l.b16 %v4614
        %v4739 = vunpack.c.h.b16 %v4614
        %v4740 = vunpack.c.l.b16 %v4615
        %v4741 = vunpack.c.h.b16 %v4615
        %v4742 = vunpack.c.l.b16 %v4616
        %v4743 = vunpack.c.h.b16 %v4616
        %v4744 = vunpack.c.l.b16 %v4617
        %v4745 = vunpack.c.h.b16 %v4617
        %v4746 = vunpack.c.l.b16 %v4618
        %v4747 = vunpack.c.h.b16 %v4618
        %v4748 = vunpack.c.l.b16 %v4619
        %v4749 = vunpack.c.h.b16 %v4619
        %v4750 = vunpack.c.l.b16 %v4620
        %v4751 = vunpack.c.h.b16 %v4620
        %v4752 = vunpack.c.l.b16 %v4621
        %v4753 = vunpack.c.h.b16 %v4621
        %v4754 = vunpack.c.l.b16 %v4622
        %v4755 = vunpack.c.h.b16 %v4622
        %v4756 = vunpack.c.l.b16 %v4623
        %v4757 = vunpack.c.h.b16 %v4623
        %v4758 = vunpack.c.l.b16 %v4624
        %v4759 = vunpack.c.h.b16 %v4624
        %v4760 = vunpack.c.l.b16 %v4625
        %v4761 = vunpack.c.h.b16 %v4625
        %v4762 = vunpack.c.l.b16 %v4626
        %v4763 = vunpack.c.h.b16 %v4626
        %v4764 = vunpack.c.l.b16 %v4627
        %v4765 = vunpack.c.h.b16 %v4627
        %v4766 = vunpack.c.l.b16 %v4628
        %v4767 = vunpack.c.h.b16 %v4628
        %v4768 = vunpack.c.l.b16 %v4629
        %v4769 = vunpack.c.h.b16 %v4629
        %v4770 = vunpack.c.l.b16 %v4630
        %v4771 = vunpack.c.h.b16 %v4630
        %v4772 = vunpack.c.l.b16 %v4631
        %v4773 = vunpack.c.h.b16 %v4631
        %v4774 = vunpack.c.l.b16 %v4632
        %v4775 = vunpack.c.h.b16 %v4632
        %v4776 = vunpack.c.l.b16 %v4633
        %v4777 = vunpack.c.h.b16 %v4633
        %v4778 = vpack.c.b16 %v4688, %v4682
        %v4779 = vpack.c.b16 %v4689, %v4683
        %v4780 = vpack.c.b16 %v4690, %v4684
        %v4781 = vpack.c.b16 %v4691, %v4685
        %v4782 = vpack.c.b16 %v4692, %v4686
        %v4783 = vpack.c.b16 %v4693, %v4687
        %v4784 = vpack.c.b16 %v4700, %v4694
        %v4785 = vpack.c.b16 %v4701, %v4695
        %v4786 = vpack.c.b16 %v4702, %v4696
        %v4787 = vpack.c.b16 %v4703, %v4697
        %v4788 = vpack.c.b16 %v4704, %v4698
        %v4789 = vpack.c.b16 %v4705, %v4699
        %v4790 = vpack.c.b16 %v4712, %v4706
        %v4791 = vpack.c.b16 %v4713, %v4707
        %v4792 = vpack.c.b16 %v4714, %v4708
        %v4793 = vpack.c.b16 %v4715, %v4709
        %v4794 = vpack.c.b16 %v4716, %v4710
        %v4795 = vpack.c.b16 %v4717, %v4711
        %v4796 = vpack.c.b16 %v4724, %v4718
        %v4797 = vpack.c.b16 %v4725, %v4719
        %v4798 = vpack.c.b16 %v4726, %v4720
        %v4799 = vpack.c.b16 %v4727, %v4721
        %v4800 = vpack.c.b16 %v4728, %v4722
        %v4801 = vpack.c.b16 %v4729, %v4723
        %v4802 = vpack.c.b16 %v4736, %v4730
        %v4803 = vpack.c.b16 %v4737, %v4731
        %v4804 = vpack.c.b16 %v4738, %v4732
        %v4805 = vpack.c.b16 %v4739, %v4733
        %v4806 = vpack.c.b16 %v4740, %v4734
        %v4807 = vpack.c.b16 %v4741, %v4735
        %v4808 = vpack.c.b16 %v4748, %v4742
        %v4809 = vpack.c.b16 %v4749, %v4743
        %v4810 = vpack.c.b16 %v4750, %v4744
        %v4811 = vpack.c.b16 %v4751, %v4745
        %v4812 = vpack.c.b16 %v4752, %v4746
        %v4813 = vpack.c.b16 %v4753, %v4747
        %v4814 = vpack.c.b16 %v4760, %v4754
        %v4815 = vpack.c.b16 %v4761, %v4755
        %v4816 = vpack.c.b16 %v4762, %v4756
        %v4817 = vpack.c.b16 %v4763, %v4757
        %v4818 = vpack.c.b16 %v4764, %v4758
        %v4819 = vpack.c.b16 %v4765, %v4759
        %v4820 = vpack.c.b16 %v4772, %v4766
        %v4821 = vpack.c.b16 %v4773, %v4767
        %v4822 = vpack.c.b16 %v4774, %v4768
        %v4823 = vpack.c.b16 %v4775, %v4769
        %v4824 = vpack.c.b16 %v4776, %v4770
        %v4825 = vpack.c.b16 %v4777, %v4771
        %4874 = vmatprep.subr.bf16.mxu0 %v4779
        %4875 = vmatpush1.bf16.msra.mxu0 %v4778
        %4876 = vmatprep.subr.bf16.mxu0 %v4785
        %4877 = vmatpush1.bf16.msra.mxu0 %v4784
        %4878 = vmatprep.subr.bf16.mxu0 %v4791
        %4879 = vmatpush1.bf16.msra.mxu0 %v4790
        %4880 = vmatprep.subr.bf16.mxu0 %v4797
        %4881 = vmatpush1.bf16.msra.mxu0 %v4796
        %4882 = vmatprep.subr.bf16.mxu0 %v4803
        %4883 = vmatpush1.bf16.msra.mxu0 %v4802
        %4884 = vmatprep.subr.bf16.mxu0 %v4809
        %4885 = vmatpush1.bf16.msra.mxu0 %v4808
        %4886 = vmatprep.subr.bf16.mxu0 %v4815
        %4887 = vmatpush1.bf16.msra.mxu0 %v4814
        %4888 = vmatprep.subr.bf16.mxu0 %v4821
        %4889 = vmatpush1.bf16.msra.mxu0 %v4820
        %4890 = vmatprep.subr.bf16.mxu0 0
        %4891 = vmatpush1.bf16.msra.mxu0 0
        %4892 = vmatprep.subr.bf16.mxu0 0
        %4893 = vmatpush1.bf16.msra.mxu0 0
        %4894 = vmatprep.subr.bf16.mxu0 0
        %4895 = vmatpush1.bf16.msra.mxu0 0
        %4896 = vmatprep.subr.bf16.mxu0 0
        %4897 = vmatpush1.bf16.msra.mxu0 0
        %4898 = vmatprep.subr.bf16.mxu0 0
        %4899 = vmatpush1.bf16.msra.mxu0 0
        %4900 = vmatprep.subr.bf16.mxu0 0
        %4901 = vmatpush1.bf16.msra.mxu0 0
        %4902 = vmatprep.subr.bf16.mxu0 0
        %4903 = vmatpush1.bf16.msra.mxu0 0
        %4904 = vmatprep.subr.bf16.mxu0 0
        %4905 = vmatpush1.bf16.msra.mxu0 0
        %4906 = vmatprep.mubr.bf16.mxu0 0
        %4907 = vmatmul.mubr.bf16.gmra.mrb[0].mxu0 %v4585
        %v4908 = vpop.f32.mrb[0].mxu0
        %v4909 = vadd.f32 0.0, %v4908
        %v4910 = vpop.f32.mrb[0].mxu0
        %v4911 = vadd.f32 0.0, %v4910
        %v4912 = vpop.f32.mrb[0].mxu0
        %v4913 = vadd.f32 0.0, %v4912
        %v4914 = vpop.f32.mrb[0].mxu0
        %v4915 = vadd.f32 0.0, %v4914
        %4916 = vdwg.mxu0
        %4917 = vmatprep.subr.bf16.mxu0 %v4781
        %4918 = vmatpush1.bf16.msra.mxu0 %v4780
        %4919 = vmatprep.subr.bf16.mxu0 %v4787
        %4920 = vmatpush1.bf16.msra.mxu0 %v4786
        %4921 = vmatprep.subr.bf16.mxu0 %v4793
        %4922 = vmatpush1.bf16.msra.mxu0 %v4792
        %4923 = vmatprep.subr.bf16.mxu0 %v4799
        %4924 = vmatpush1.bf16.msra.mxu0 %v4798
        %4925 = vmatprep.subr.bf16.mxu0 %v4805
        %4926 = vmatpush1.bf16.msra.mxu0 %v4804
        %4927 = vmatprep.subr.bf16.mxu0 %v4811
        %4928 = vmatpush1.bf16.msra.mxu0 %v4810
        %4929 = vmatprep.subr.bf16.mxu0 %v4817
        %4930 = vmatpush1.bf16.msra.mxu0 %v4816
        %4931 = vmatprep.subr.bf16.mxu0 %v4823
        %4932 = vmatpush1.bf16.msra.mxu0 %v4822
        %4933 = vmatprep.subr.bf16.mxu0 0
        %4934 = vmatpush1.bf16.msra.mxu0 0
        %4935 = vmatprep.subr.bf16.mxu0 0
        %4936 = vmatpush1.bf16.msra.mxu0 0
        %4937 = vmatprep.subr.bf16.mxu0 0
        %4938 = vmatpush1.bf16.msra.mxu0 0
        %4939 = vmatprep.subr.bf16.mxu0 0
        %4940 = vmatpush1.bf16.msra.mxu0 0
        %4941 = vmatprep.subr.bf16.mxu0 0
        %4942 = vmatpush1.bf16.msra.mxu0 0
        %4943 = vmatprep.subr.bf16.mxu0 0
        %4944 = vmatpush1.bf16.msra.mxu0 0
        %4945 = vmatprep.subr.bf16.mxu0 0
        %4946 = vmatpush1.bf16.msra.mxu0 0
        %4947 = vmatprep.subr.bf16.mxu0 0
        %4948 = vmatpush1.bf16.msra.mxu0 0
        %4949 = vmatprep.mubr.bf16.mxu0 0
        %4950 = vmatmul.mubr.bf16.gmra.mrb[0].mxu0 %v4585
        %v4951 = vpop.f32.mrb[0].mxu0
        %v4952 = vadd.f32 0.0, %v4951
        %v4953 = vpop.f32.mrb[0].mxu0
        %v4954 = vadd.f32 0.0, %v4953
        %v4955 = vpop.f32.mrb[0].mxu0
        %v4956 = vadd.f32 0.0, %v4955
        %v4957 = vpop.f32.mrb[0].mxu0
        %v4958 = vadd.f32 0.0, %v4957
        %4959 = vdwg.mxu0
        %4960 = vmatprep.subr.bf16.mxu0 %v4783
        %4961 = vmatpush1.bf16.msra.mxu0 %v4782
        %4962 = vmatprep.subr.bf16.mxu0 %v4789
        %4963 = vmatpush1.bf16.msra.mxu0 %v4788
        %4964 = vmatprep.subr.bf16.mxu0 %v4795
        %4965 = vmatpush1.bf16.msra.mxu0 %v4794
        %4966 = vmatprep.subr.bf16.mxu0 %v4801
        %4967 = vmatpush1.bf16.msra.mxu0 %v4800
        %4968 = vmatprep.subr.bf16.mxu0 %v4807
        %4969 = vmatpush1.bf16.msra.mxu0 %v4806
        %4970 = vmatprep.subr.bf16.mxu0 %v4813
        %4971 = vmatpush1.bf16.msra.mxu0 %v4812
        %4972 = vmatprep.subr.bf16.mxu0 %v4819
        %4973 = vmatpush1.bf16.msra.mxu0 %v4818
        %4974 = vmatprep.subr.bf16.mxu0 %v4825
        %4975 = vmatpush1.bf16.msra.mxu0 %v4824
        %4976 = vmatprep.subr.bf16.mxu0 0
        %4977 = vmatpush1.bf16.msra.mxu0 0
        %4978 = vmatprep.subr.bf16.mxu0 0
        %4979 = vmatpush1.bf16.msra.mxu0 0
        %4980 = vmatprep.subr.bf16.mxu0 0
        %4981 = vmatpush1.bf16.msra.mxu0 0
        %4982 = vmatprep.subr.bf16.mxu0 0
        %4983 = vmatpush1.bf16.msra.mxu0 0
        %4984 = vmatprep.subr.bf16.mxu0 0
        %4985 = vmatpush1.bf16.msra.mxu0 0
        %4986 = vmatprep.subr.bf16.mxu0 0
        %4987 = vmatpush1.bf16.msra.mxu0 0
        %4988 = vmatprep.subr.bf16.mxu0 0
        %4989 = vmatpush1.bf16.msra.mxu0 0
        %4990 = vmatprep.subr.bf16.mxu0 0
        %4991 = vmatpush1.bf16.msra.mxu0 0
        %4992 = vmatprep.mubr.bf16.mxu0 0
        %4993 = vmatmul.mubr.bf16.gmra.mrb[0].mxu0 %v4585
        %v4994 = vpop.f32.mrb[0].mxu0
        %v4995 = vadd.f32 0.0, %v4994
        %v4996 = vpop.f32.mrb[0].mxu0
        %v4997 = vadd.f32 0.0, %v4996
        %v4998 = vpop.f32.mrb[0].mxu0
        %v4999 = vadd.f32 0.0, %v4998
        %v5000 = vpop.f32.mrb[0].mxu0
        %v5001 = vadd.f32 0.0, %v5000
        %5002 = vdwg.mxu0
        %v5003 = vpack.c.bf16 %v4913, %v4909
        %v5004 = vpack.c.bf16 %v4915, %v4911
        %v5005 = vpack.c.bf16 %v4956, %v4952
        %v5006 = vpack.c.bf16 %v4958, %v4954
        %v5007 = vpack.c.bf16 %v4999, %v4995
        %v5008 = vpack.c.bf16 %v5001, %v4997
        %v5009 = vld [vmem:[#allocation7 + $0x658] sm:$0x1]
        %v5010 = vunpack.c.l.bf16 %v5009
        %v5011 = vld [vmem:[#allocation7 + $0x5f8] sm:$0xf]
        %v5012 = vld [vmem:[#allocation7 + $0x5fc] sm:$0xf]
        %v5013 = vld [vmem:[#allocation7 + $0x600] sm:$0xf]
        %v5014 = vld [vmem:[#allocation7 + $0x604] sm:$0xf]
        %v5019 = vunpack.c.l.b16 %v5011
        %v5020 = vunpack.c.l.b16 %v5012
        %v5021 = vunpack.c.l.b16 %v5013
        %v5022 = vunpack.c.l.b16 %v5014
        %v5023 = vpack.c.b16 %v5020, %v5019
        %v5024 = vpack.c.b16 %v5022, %v5021
        %vm5025 = vcmask 121856
        %v5027 = vsel %vm5025, %v5023, 0
        %v5030 = vsel %vm5025, %v5024, 0
        %vm5032 = vcmask 1046528
        %vm5033 = vcmask 1047552
        %v5034 = vsel %vm5032, 4294967295, 65535
        %v5035 = vsel %vm5033, %v5034, 0
        %v5037 = vand.u32 %v5003, %v5035
        %5039 = vmatprep.subr.bf16.mxu0 0
        %5040 = vmatpush1.bf16.msra.mxu0 %v5037
        %5041 = vmatprep.subr.bf16.mxu0 0
        %5042 = vmatpush1.bf16.msra.mxu0 0
        %5043 = vmatprep.subr.bf16.mxu0 0
        %5044 = vmatpush1.bf16.msra.mxu0 0
        %5045 = vmatprep.subr.bf16.mxu0 0
        %5046 = vmatpush1.bf16.msra.mxu0 0
        %5047 = vmatprep.subr.bf16.mxu0 0
        %5048 = vmatpush1.bf16.msra.mxu0 0
        %5049 = vmatprep.subr.bf16.mxu0 0
        %5050 = vmatpush1.bf16.msra.mxu0 0
        %5051 = vmatprep.subr.bf16.mxu0 0
        %5052 = vmatpush1.bf16.msra.mxu0 0
        %5053 = vmatprep.subr.bf16.mxu0 0
        %5054 = vmatpush1.bf16.msra.mxu0 0
        %5055 = vmatprep.subr.bf16.mxu0 0
        %5056 = vmatpush1.bf16.msra.mxu0 0
        %5057 = vmatprep.subr.bf16.mxu0 0
        %5058 = vmatpush1.bf16.msra.mxu0 0
        %5059 = vmatprep.subr.bf16.mxu0 0
        %5060 = vmatpush1.bf16.msra.mxu0 0
        %5061 = vmatprep.subr.bf16.mxu0 0
        %5062 = vmatpush1.bf16.msra.mxu0 0
        %5063 = vmatprep.subr.bf16.mxu0 0
        %5064 = vmatpush1.bf16.msra.mxu0 0
        %5065 = vmatprep.subr.bf16.mxu0 0
        %5066 = vmatpush1.bf16.msra.mxu0 0
        %5067 = vmatprep.subr.bf16.mxu0 0
        %5068 = vmatpush1.bf16.msra.mxu0 0
        %5069 = vmatprep.subr.bf16.mxu0 0
        %5070 = vmatpush1.bf16.msra.mxu0 0
        %5071 = vmatprep.mubr.bf16.mxu0 0
        %5072 = vmatmul.mubr.bf16.gmra.mrb[0].mxu0 %v5027
        %v5073 = vpop.f32.mrb[0].mxu0
        %v5074 = vadd.f32 0.0, %v5073
        %v5075 = vpop.f32.mrb[0].mxu0
        %v5076 = vpop.f32.mrb[0].mxu0
        %v5077 = vadd.f32 0.0, %v5076
        %v5078 = vpop.f32.mrb[0].mxu0
        %5079 = vmatprep.mubr.bf16.mxu0 0
        %5080 = vmatmul.mubr.bf16.gmra.mrb[0].mxu0 %v5030
        %v5081 = vpop.f32.mrb[0].mxu0
        %v5082 = vadd.f32 0.0, %v5081
        %v5083 = vpop.f32.mrb[0].mxu0
        %v5084 = vpop.f32.mrb[0].mxu0
        %v5085 = vadd.f32 0.0, %v5084
        %v5086 = vpop.f32.mrb[0].mxu0
        %5087 = vdwg.mxu0
        %v5088 = vlaneseq
        %v5089 = vshrl.u32 %v5088, 7
        %v5090 = vsub.s32 0, %v5089
        %v5091 = vrot.slane %v5010, %v5090
        %v5092 = vadd.f32 %v5091, %v5074
        %v5093 = vadd.f32 %v5091, %v5077
        %v5094 = vadd.f32 %v5091, %v5082
        %v5095 = vadd.f32 %v5091, %v5085
        %v5096 = vld [vmem:[#allocation7 + $0x608] sm:$0xf]
        %v5097 = vld [vmem:[#allocation7 + $0x60c] sm:$0xf]
        %v5098 = vld [vmem:[#allocation7 + $0x610] sm:$0xf]
        %v5099 = vld [vmem:[#allocation7 + $0x614] sm:$0xf]
        %v5104 = vunpack.c.l.b16 %v5096
        %v5105 = vunpack.c.l.b16 %v5097
        %v5106 = vunpack.c.l.b16 %v5098
        %v5107 = vunpack.c.l.b16 %v5099
        %v5108 = vpack.c.b16 %v5105, %v5104
        %v5109 = vpack.c.b16 %v5107, %v5106
        %v5111 = vsel %vm5025, %v5108, 0
        %v5114 = vsel %vm5025, %v5109, 0
        %v5117 = vand.u32 %v5004, %v5035
        %5119 = vmatprep.subr.bf16.mxu0 0
        %5120 = vmatpush1.bf16.msra.mxu0 %v5117
        %5121 = vmatprep.subr.bf16.mxu0 0
        %5122 = vmatpush1.bf16.msra.mxu0 0
        %5123 = vmatprep.subr.bf16.mxu0 0
        %5124 = vmatpush1.bf16.msra.mxu0 0
        %5125 = vmatprep.subr.bf16.mxu0 0
        %5126 = vmatpush1.bf16.msra.mxu0 0
        %5127 = vmatprep.subr.bf16.mxu0 0
        %5128 = vmatpush1.bf16.msra.mxu0 0
        %5129 = vmatprep.subr.bf16.mxu0 0
        %5130 = vmatpush1.bf16.msra.mxu0 0
        %5131 = vmatprep.subr.bf16.mxu0 0
        %5132 = vmatpush1.bf16.msra.mxu0 0
        %5133 = vmatprep.subr.bf16.mxu0 0
        %5134 = vmatpush1.bf16.msra.mxu0 0
        %5135 = vmatprep.subr.bf16.mxu0 0
        %5136 = vmatpush1.bf16.msra.mxu0 0
        %5137 = vmatprep.subr.bf16.mxu0 0
        %5138 = vmatpush1.bf16.msra.mxu0 0
        %5139 = vmatprep.subr.bf16.mxu0 0
        %5140 = vmatpush1.bf16.msra.mxu0 0
        %5141 = vmatprep.subr.bf16.mxu0 0
        %5142 = vmatpush1.bf16.msra.mxu0 0
        %5143 = vmatprep.subr.bf16.mxu0 0
        %5144 = vmatpush1.bf16.msra.mxu0 0
        %5145 = vmatprep.subr.bf16.mxu0 0
        %5146 = vmatpush1.bf16.msra.mxu0 0
        %5147 = vmatprep.subr.bf16.mxu0 0
        %5148 = vmatpush1.bf16.msra.mxu0 0
        %5149 = vmatprep.subr.bf16.mxu0 0
        %5150 = vmatpush1.bf16.msra.mxu0 0
        %5151 = vmatprep.mubr.bf16.mxu0 0
        %5152 = vmatmul.mubr.bf16.gmra.mrb[0].mxu0 %v5111
        %v5153 = vpop.f32.mrb[0].mxu0
        %v5154 = vadd.f32 0.0, %v5153
        %v5155 = vpop.f32.mrb[0].mxu0
        %v5156 = vpop.f32.mrb[0].mxu0
        %v5157 = vadd.f32 0.0, %v5156
        %v5158 = vpop.f32.mrb[0].mxu0
        %5159 = vmatprep.mubr.bf16.mxu0 0
        %5160 = vmatmul.mubr.bf16.gmra.mrb[0].mxu0 %v5114
        %v5161 = vpop.f32.mrb[0].mxu0
        %v5162 = vadd.f32 0.0, %v5161
        %v5163 = vpop.f32.mrb[0].mxu0
        %v5164 = vpop.f32.mrb[0].mxu0
        %v5165 = vadd.f32 0.0, %v5164
        %v5166 = vpop.f32.mrb[0].mxu0
        %5167 = vdwg.mxu0
        %v5168 = vadd.f32 %v5092, %v5154
        %v5169 = vadd.f32 %v5093, %v5157
        %v5170 = vadd.f32 %v5094, %v5162
        %v5171 = vadd.f32 %v5095, %v5165
        %v5172 = vld [vmem:[#allocation7 + $0x618] sm:$0xf]
        %v5173 = vld [vmem:[#allocation7 + $0x61c] sm:$0xf]
        %v5174 = vld [vmem:[#allocation7 + $0x620] sm:$0xf]
        %v5175 = vld [vmem:[#allocation7 + $0x624] sm:$0xf]
        %v5180 = vunpack.c.l.b16 %v5172
        %v5181 = vunpack.c.l.b16 %v5173
        %v5182 = vunpack.c.l.b16 %v5174
        %v5183 = vunpack.c.l.b16 %v5175
        %v5184 = vpack.c.b16 %v5181, %v5180
        %v5185 = vpack.c.b16 %v5183, %v5182
        %v5187 = vsel %vm5025, %v5184, 0
        %v5190 = vsel %vm5025, %v5185, 0
        %v5193 = vand.u32 %v5005, %v5035
        %5195 = vmatprep.subr.bf16.mxu0 0
        %5196 = vmatpush1.bf16.msra.mxu0 %v5193
        %5197 = vmatprep.subr.bf16.mxu0 0
        %5198 = vmatpush1.bf16.msra.mxu0 0
        %5199 = vmatprep.subr.bf16.mxu0 0
        %5200 = vmatpush1.bf16.msra.mxu0 0
        %5201 = vmatprep.subr.bf16.mxu0 0
        %5202 = vmatpush1.bf16.msra.mxu0 0
        %5203 = vmatprep.subr.bf16.mxu0 0
        %5204 = vmatpush1.bf16.msra.mxu0 0
        %5205 = vmatprep.subr.bf16.mxu0 0
        %5206 = vmatpush1.bf16.msra.mxu0 0
        %5207 = vmatprep.subr.bf16.mxu0 0
        %5208 = vmatpush1.bf16.msra.mxu0 0
        %5209 = vmatprep.subr.bf16.mxu0 0
        %5210 = vmatpush1.bf16.msra.mxu0 0
        %5211 = vmatprep.subr.bf16.mxu0 0
        %5212 = vmatpush1.bf16.msra.mxu0 0
        %5213 = vmatprep.subr.bf16.mxu0 0
        %5214 = vmatpush1.bf16.msra.mxu0 0
        %5215 = vmatprep.subr.bf16.mxu0 0
        %5216 = vmatpush1.bf16.msra.mxu0 0
        %5217 = vmatprep.subr.bf16.mxu0 0
        %5218 = vmatpush1.bf16.msra.mxu0 0
        %5219 = vmatprep.subr.bf16.mxu0 0
        %5220 = vmatpush1.bf16.msra.mxu0 0
        %5221 = vmatprep.subr.bf16.mxu0 0
        %5222 = vmatpush1.bf16.msra.mxu0 0
        %5223 = vmatprep.subr.bf16.mxu0 0
        %5224 = vmatpush1.bf16.msra.mxu0 0
        %5225 = vmatprep.subr.bf16.mxu0 0
        %5226 = vmatpush1.bf16.msra.mxu0 0
        %5227 = vmatprep.mubr.bf16.mxu0 0
        %5228 = vmatmul.mubr.bf16.gmra.mrb[0].mxu0 %v5187
        %v5229 = vpop.f32.mrb[0].mxu0
        %v5230 = vadd.f32 0.0, %v5229
        %v5231 = vpop.f32.mrb[0].mxu0
        %v5232 = vpop.f32.mrb[0].mxu0
        %v5233 = vadd.f32 0.0, %v5232
        %v5234 = vpop.f32.mrb[0].mxu0
        %5235 = vmatprep.mubr.bf16.mxu0 0
        %5236 = vmatmul.mubr.bf16.gmra.mrb[0].mxu0 %v5190
        %v5237 = vpop.f32.mrb[0].mxu0
        %v5238 = vadd.f32 0.0, %v5237
        %v5239 = vpop.f32.mrb[0].mxu0
        %v5240 = vpop.f32.mrb[0].mxu0
        %v5241 = vadd.f32 0.0, %v5240
        %v5242 = vpop.f32.mrb[0].mxu0
        %5243 = vdwg.mxu0
        %v5244 = vadd.f32 %v5168, %v5230
        %v5245 = vadd.f32 %v5169, %v5233
        %v5246 = vadd.f32 %v5170, %v5238
        %v5247 = vadd.f32 %v5171, %v5241
        %v5248 = vld [vmem:[#allocation7 + $0x628] sm:$0xf]
        %v5249 = vld [vmem:[#allocation7 + $0x62c] sm:$0xf]
        %v5250 = vld [vmem:[#allocation7 + $0x630] sm:$0xf]
        %v5251 = vld [vmem:[#allocation7 + $0x634] sm:$0xf]
        %v5256 = vunpack.c.l.b16 %v5248
        %v5257 = vunpack.c.l.b16 %v5249
        %v5258 = vunpack.c.l.b16 %v5250
        %v5259 = vunpack.c.l.b16 %v5251
        %v5260 = vpack.c.b16 %v5257, %v5256
        %v5261 = vpack.c.b16 %v5259, %v5258
        %v5263 = vsel %vm5025, %v5260, 0
        %v5266 = vsel %vm5025, %v5261, 0
        %v5269 = vand.u32 %v5006, %v5035
        %5271 = vmatprep.subr.bf16.mxu0 0
        %5272 = vmatpush1.bf16.msra.mxu0 %v5269
        %5273 = vmatprep.subr.bf16.mxu0 0
        %5274 = vmatpush1.bf16.msra.mxu0 0
        %5275 = vmatprep.subr.bf16.mxu0 0
        %5276 = vmatpush1.bf16.msra.mxu0 0
        %5277 = vmatprep.subr.bf16.mxu0 0
        %5278 = vmatpush1.bf16.msra.mxu0 0
        %5279 = vmatprep.subr.bf16.mxu0 0
        %5280 = vmatpush1.bf16.msra.mxu0 0
        %5281 = vmatprep.subr.bf16.mxu0 0
        %5282 = vmatpush1.bf16.msra.mxu0 0
        %5283 = vmatprep.subr.bf16.mxu0 0
        %5284 = vmatpush1.bf16.msra.mxu0 0
        %5285 = vmatprep.subr.bf16.mxu0 0
        %5286 = vmatpush1.bf16.msra.mxu0 0
        %5287 = vmatprep.subr.bf16.mxu0 0
        %5288 = vmatpush1.bf16.msra.mxu0 0
        %5289 = vmatprep.subr.bf16.mxu0 0
        %5290 = vmatpush1.bf16.msra.mxu0 0
        %5291 = vmatprep.subr.bf16.mxu0 0
        %5292 = vmatpush1.bf16.msra.mxu0 0
        %5293 = vmatprep.subr.bf16.mxu0 0
        %5294 = vmatpush1.bf16.msra.mxu0 0
        %5295 = vmatprep.subr.bf16.mxu0 0
        %5296 = vmatpush1.bf16.msra.mxu0 0
        %5297 = vmatprep.subr.bf16.mxu0 0
        %5298 = vmatpush1.bf16.msra.mxu0 0
        %5299 = vmatprep.subr.bf16.mxu0 0
        %5300 = vmatpush1.bf16.msra.mxu0 0
        %5301 = vmatprep.subr.bf16.mxu0 0
        %5302 = vmatpush1.bf16.msra.mxu0 0
        %5303 = vmatprep.mubr.bf16.mxu0 0
        %5304 = vmatmul.mubr.bf16.gmra.mrb[0].mxu0 %v5263
        %v5305 = vpop.f32.mrb[0].mxu0
        %v5306 = vadd.f32 0.0, %v5305
        %v5307 = vpop.f32.mrb[0].mxu0
        %v5308 = vpop.f32.mrb[0].mxu0
        %v5309 = vadd.f32 0.0, %v5308
        %v5310 = vpop.f32.mrb[0].mxu0
        %5311 = vmatprep.mubr.bf16.mxu0 0
        %5312 = vmatmul.mubr.bf16.gmra.mrb[0].mxu0 %v5266
        %v5313 = vpop.f32.mrb[0].mxu0
        %v5314 = vadd.f32 0.0, %v5313
        %v5315 = vpop.f32.mrb[0].mxu0
        %v5316 = vpop.f32.mrb[0].mxu0
        %v5317 = vadd.f32 0.0, %v5316
        %v5318 = vpop.f32.mrb[0].mxu0
        %5319 = vdwg.mxu0
        %v5320 = vadd.f32 %v5244, %v5306
        %v5321 = vadd.f32 %v5245, %v5309
        %v5322 = vadd.f32 %v5246, %v5314
        %v5323 = vadd.f32 %v5247, %v5317
        %v5324 = vld [vmem:[#allocation7 + $0x638] sm:$0xf]
        %v5325 = vld [vmem:[#allocation7 + $0x63c] sm:$0xf]
        %v5326 = vld [vmem:[#allocation7 + $0x640] sm:$0xf]
        %v5327 = vld [vmem:[#allocation7 + $0x644] sm:$0xf]
        %v5332 = vunpack.c.l.b16 %v5324
        %v5333 = vunpack.c.l.b16 %v5325
        %v5334 = vunpack.c.l.b16 %v5326
        %v5335 = vunpack.c.l.b16 %v5327
        %v5336 = vpack.c.b16 %v5333, %v5332
        %v5337 = vpack.c.b16 %v5335, %v5334
        %v5339 = vsel %vm5025, %v5336, 0
        %v5342 = vsel %vm5025, %v5337, 0
        %v5345 = vand.u32 %v5007, %v5035
        %5347 = vmatprep.subr.bf16.mxu0 0
        %5348 = vmatpush1.bf16.msra.mxu0 %v5345
        %5349 = vmatprep.subr.bf16.mxu0 0
        %5350 = vmatpush1.bf16.msra.mxu0 0
        %5351 = vmatprep.subr.bf16.mxu0 0
        %5352 = vmatpush1.bf16.msra.mxu0 0
        %5353 = vmatprep.subr.bf16.mxu0 0
        %5354 = vmatpush1.bf16.msra.mxu0 0
        %5355 = vmatprep.subr.bf16.mxu0 0
        %5356 = vmatpush1.bf16.msra.mxu0 0
        %5357 = vmatprep.subr.bf16.mxu0 0
        %5358 = vmatpush1.bf16.msra.mxu0 0
        %5359 = vmatprep.subr.bf16.mxu0 0
        %5360 = vmatpush1.bf16.msra.mxu0 0
        %5361 = vmatprep.subr.bf16.mxu0 0
        %5362 = vmatpush1.bf16.msra.mxu0 0
        %5363 = vmatprep.subr.bf16.mxu0 0
        %5364 = vmatpush1.bf16.msra.mxu0 0
        %5365 = vmatprep.subr.bf16.mxu0 0
        %5366 = vmatpush1.bf16.msra.mxu0 0
        %5367 = vmatprep.subr.bf16.mxu0 0
        %5368 = vmatpush1.bf16.msra.mxu0 0
        %5369 = vmatprep.subr.bf16.mxu0 0
        %5370 = vmatpush1.bf16.msra.mxu0 0
        %5371 = vmatprep.subr.bf16.mxu0 0
        %5372 = vmatpush1.bf16.msra.mxu0 0
        %5373 = vmatprep.subr.bf16.mxu0 0
        %5374 = vmatpush1.bf16.msra.mxu0 0
        %5375 = vmatprep.subr.bf16.mxu0 0
        %5376 = vmatpush1.bf16.msra.mxu0 0
        %5377 = vmatprep.subr.bf16.mxu0 0
        %5378 = vmatpush1.bf16.msra.mxu0 0
        %5379 = vmatprep.mubr.bf16.mxu0 0
        %5380 = vmatmul.mubr.bf16.gmra.mrb[0].mxu0 %v5339
        %v5381 = vpop.f32.mrb[0].mxu0
        %v5382 = vadd.f32 0.0, %v5381
        %v5383 = vpop.f32.mrb[0].mxu0
        %v5384 = vpop.f32.mrb[0].mxu0
        %v5385 = vadd.f32 0.0, %v5384
        %v5386 = vpop.f32.mrb[0].mxu0
        %5387 = vmatprep.mubr.bf16.mxu0 0
        %5388 = vmatmul.mubr.bf16.gmra.mrb[0].mxu0 %v5342
        %v5389 = vpop.f32.mrb[0].mxu0
        %v5390 = vadd.f32 0.0, %v5389
        %v5391 = vpop.f32.mrb[0].mxu0
        %v5392 = vpop.f32.mrb[0].mxu0
        %v5393 = vadd.f32 0.0, %v5392
        %v5394 = vpop.f32.mrb[0].mxu0
        %5395 = vdwg.mxu0
        %v5396 = vadd.f32 %v5320, %v5382
        %v5397 = vadd.f32 %v5321, %v5385
        %v5398 = vadd.f32 %v5322, %v5390
        %v5399 = vadd.f32 %v5323, %v5393
        %v5400 = vld [vmem:[#allocation7 + $0x648] sm:$0xf]
        %v5401 = vld [vmem:[#allocation7 + $0x64c] sm:$0xf]
        %v5402 = vld [vmem:[#allocation7 + $0x650] sm:$0xf]
        %v5403 = vld [vmem:[#allocation7 + $0x654] sm:$0xf]
        %v5408 = vunpack.c.l.b16 %v5400
        %v5409 = vunpack.c.l.b16 %v5401
        %v5410 = vunpack.c.l.b16 %v5402
        %v5411 = vunpack.c.l.b16 %v5403
        %v5412 = vpack.c.b16 %v5409, %v5408
        %v5413 = vpack.c.b16 %v5411, %v5410
        %v5415 = vsel %vm5025, %v5412, 0
        %v5418 = vsel %vm5025, %v5413, 0
        %v5421 = vand.u32 %v5008, %v5035
        %5423 = vmatprep.subr.bf16.mxu0 0
        %5424 = vmatpush1.bf16.msra.mxu0 %v5421
        %5425 = vmatprep.subr.bf16.mxu0 0
        %5426 = vmatpush1.bf16.msra.mxu0 0
        %5427 = vmatprep.subr.bf16.mxu0 0
        %5428 = vmatpush1.bf16.msra.mxu0 0
        %5429 = vmatprep.subr.bf16.mxu0 0
        %5430 = vmatpush1.bf16.msra.mxu0 0
        %5431 = vmatprep.subr.bf16.mxu0 0
        %5432 = vmatpush1.bf16.msra.mxu0 0
        %5433 = vmatprep.subr.bf16.mxu0 0
        %5434 = vmatpush1.bf16.msra.mxu0 0
        %5435 = vmatprep.subr.bf16.mxu0 0
        %5436 = vmatpush1.bf16.msra.mxu0 0
        %5437 = vmatprep.subr.bf16.mxu0 0
        %5438 = vmatpush1.bf16.msra.mxu0 0
        %5439 = vmatprep.subr.bf16.mxu0 0
        %5440 = vmatpush1.bf16.msra.mxu0 0
        %5441 = vmatprep.subr.bf16.mxu0 0
        %5442 = vmatpush1.bf16.msra.mxu0 0
        %5443 = vmatprep.subr.bf16.mxu0 0
        %5444 = vmatpush1.bf16.msra.mxu0 0
        %5445 = vmatprep.subr.bf16.mxu0 0
        %5446 = vmatpush1.bf16.msra.mxu0 0
        %5447 = vmatprep.subr.bf16.mxu0 0
        %5448 = vmatpush1.bf16.msra.mxu0 0
        %5449 = vmatprep.subr.bf16.mxu0 0
        %5450 = vmatpush1.bf16.msra.mxu0 0
        %5451 = vmatprep.subr.bf16.mxu0 0
        %5452 = vmatpush1.bf16.msra.mxu0 0
        %5453 = vmatprep.subr.bf16.mxu0 0
        %5454 = vmatpush1.bf16.msra.mxu0 0
        %5455 = vmatprep.mubr.bf16.mxu0 0
        %5456 = vmatmul.mubr.bf16.gmra.mrb[0].mxu0 %v5415
        %v5457 = vpop.f32.mrb[0].mxu0
        %v5458 = vadd.f32 0.0, %v5457
        %v5459 = vpop.f32.mrb[0].mxu0
        %v5460 = vpop.f32.mrb[0].mxu0
        %v5461 = vadd.f32 0.0, %v5460
        %v5462 = vpop.f32.mrb[0].mxu0
        %5463 = vmatprep.mubr.bf16.mxu0 0
        %5464 = vmatmul.mubr.bf16.gmra.mrb[0].mxu0 %v5418
        %v5465 = vpop.f32.mrb[0].mxu0
        %v5466 = vadd.f32 0.0, %v5465
        %v5467 = vpop.f32.mrb[0].mxu0
        %v5468 = vpop.f32.mrb[0].mxu0
        %v5469 = vadd.f32 0.0, %v5468
        %v5470 = vpop.f32.mrb[0].mxu0
        %5471 = vdwg.mxu0
        %v5472 = vadd.f32 %v5396, %v5458
        %v5473 = vadd.f32 %v5397, %v5461
        %v5474 = vadd.f32 %v5398, %v5466
        %v5475 = vadd.f32 %v5399, %v5469
        %v5476 = vtanh.pop %v5472
        %v5477 = vtanh.pop %v5473
        %v5478 = vtanh.pop %v5474
        %v5479 = vtanh.pop %v5475
        %vm5480 = vcmask 261120
        %5481 = vst.msk [vmem:[%s234] sm:$0xff] %vm5480, %v5476
        %5482 = vst.msk [vmem:[%s234 + $0x8] sm:$0xff] %vm5480, %v5477
        %5483 = vst.msk [vmem:[%s234 + $0x10] sm:$0xff] %vm5480, %v5478
        %5484 = vst.msk [vmem:[%s234 + $0x18] sm:$0xff] %vm5480, %v5479
        %s5485 = sand.u32 %s117, 1
        %s5486 = scalar_lea.sflag [#allocation4], %s5485
        %s5487 = sand.u32 %s117, 1
        %s5488 = smul.addr %s5487, 32
        %s5489 = scalar_lea.vmem [#allocation8], %s5488
        // Predicated region
        $region49: #{autoencoder_forward.1} parent=35 // pred_check
          %p5490 = pneg %p127
        $region50: #{autoencoder_forward.1} parent=35 // pred_check_branch
          %5492 = sbr.rel (%p5490) target = $region52
        $region51: #{autoencoder_forward.1} parent=35 // pred_region
          %s5494 = ssub.s32 512, 512
          %5495 = vsyncadd %s5486, %s5494
          %s5496 = smul.addr %s20, 4
          %s5497 = smul.addr %s5496, 128
          %s5498 = scalar_lea.hbm %s4, %s5497
          %s5499 = sshll.u32 %s5489, 4
          %s5500 = int_to_ptr.vmem [resolvable:$true] %s5499
          %5505 = dma.vmem_to_hbm [thread:$0]  %s5500, 512, %s5498, %s5486, 128, 128, 8
        $region52: #{autoencoder_forward.1} parent=35 // pred_fallthru
          _
      $region36: #{autoencoder_forward.1} parent=5 // pred_fallthru
        _
      %p5506 = scmp.le.s32.totalorder 2, %s15
      // Predicated region
      $region53: #{autoencoder_forward.1} parent=5 // pred_check
        %p5507 = pneg %p5506
      $region54: #{autoencoder_forward.1} parent=5 // pred_check_branch
        %5509 = sbr.rel (%p5507) target = $region56
      $region55: #{autoencoder_forward.1} parent=5 // pred_region
        %s5510 = ssub.s32 %s15, 2
        // Predicated region
        $region57: #{autoencoder_forward.1} parent=55 // pred_check
          %p5511 = pneg %p133
        $region58: #{autoencoder_forward.1} parent=55 // pred_check_branch
          %5513 = sbr.rel (%p5511) target = $region60
        $region59: #{autoencoder_forward.1} parent=55 // pred_region
          %s5514 = sand.u32 %s118, 1
          %s5515 = scalar_lea.sflag [#allocation4], %s5514
          %s5516 = sand.u32 %s118, 1
          %s5517 = smul.addr %s5516, 32
          %s5518 = scalar_lea.vmem [#allocation8], %s5517
          %5519 = dma.done %s5515, 512
        $region60: #{autoencoder_forward.1} parent=55 // pred_fallthru
          _
      $region56: #{autoencoder_forward.1} parent=5 // pred_fallthru
        _
    $region6: #{autoencoder_forward.1} parent=1 // loop_footer
      %s19 = sadd.s32 1, %s15
    $region7: #{autoencoder_forward.1} parent=1 // loop_footer_branch
      %14 = sbr.rel target = $region3
    $region8: #{autoencoder_forward.1} parent=1 // loop_exit
      _
    %5520 = vsyncpa [#allocation3], 1
    %s5521 = scalar_lea.sflag [#allocation3], 1
    %5522 = vsyncpa %s5521, 1
    %5523 = vsyncpa [#allocation6], 1
    %5524 = vsyncpa [#allocation4], 1
    %s5525 = scalar_lea.sflag [#allocation4], 1
    %5526 = vsyncpa %s5525, 1

</llo_original>
